<compile_context>
chip_gen: v7x
topology: tpu7x:2x2x1
jax: 0.10.0
libtpu: 0.0.40
codegen_flags: <defaults>
</compile_context>

<pallas_src>
import jax
import jax.numpy as jnp
from jax import lax
from jax.experimental import pallas as pl
from jax.experimental.pallas import tpu as pltpu

# ----------------------------- config (synthetic) -----------------------------
VOCAB = 100        # embed['num_chars']
EMB_DIM = 20       # embed['embedding_dim'] == rnn['input_size']
PAD_IDX = 0        # embed['padding_idx']
HIDDEN = 32        # rnn['hidden_size'], bidirectional => feature size 2*HIDDEN
MAX_LEN = 8        # rnn['max_len']
N_HEADS = 2        # att['heads']
ATT_HID = 16       # att['hidden_size'];  att['in_size'] = 2*HIDDEN
BATCH = 2
FEAT = 2 * HIDDEN  # attention in_size


# ----------------------------- fused kernel -----------------------------
def text_rnn_encoder_kernel(ids_ref, lens_ref, emb_ref,
                            wih_ref, bx_ref, whh_f_ref, whh_b_ref,
                            wh_ref, bh_ref, wo_ref, bo_ref,
                            out_ref,
                            gx_ref, outf_ref, outb_ref, mask_ref):
    # layouts:
    #   ids_ref  [T*B, 1] int32 (time-major flat: row t*B+b = ids[b, t])
    #   lens_ref [1, B, 1] int32
    #   emb_ref  [VOCAB, D]
    #   wih_ref  [D, 8H]  = [wih_f | wih_b],  bx_ref [1, 8H] = [b_f | b_b]
    #   whh_f_ref / whh_b_ref [H, 4H]  (gate order i, f, g, o)
    #   wh_ref [F, nH*A], bh_ref [1, nH*A]
    #   wo_ref [nH*A, nH*F] block-diagonal, bo_ref [1, nH*F]
    #   out_ref [B, nH*F]
    #   scratch: gx_ref [T, B, 8H], outf/outb_ref [T, B, H], mask_ref [T, B, H]
    T, B, H = outf_ref.shape
    TB = T * B
    V, D = emb_ref.shape
    G = 4 * H
    F = 2 * H
    NHF = out_ref.shape[1]
    n_heads = NHF // F

    # ---- validity mask, computed once: mask[t, b, :] = float(t < len[b]) ----
    t_iota = lax.broadcasted_iota(jnp.int32, (T, B, H), 0)
    mask_ref[...] = (t_iota < lens_ref[...]).astype(jnp.float32)

    # ---- embedding lookup (one-hot matmul, exact) + hoisted input projection ----
    ids = ids_ref[...]                                              # [T*B, 1]
    vocab_iota = lax.broadcasted_iota(jnp.int32, (TB, V), 1)
    onehot = (ids == vocab_iota).astype(jnp.float32)                # [T*B, V]
    x_emb = jnp.dot(onehot, emb_ref[...],
                    preferred_element_type=jnp.float32)             # [T*B, D]
    gx = jnp.dot(x_emb, wih_ref[...],
                 preferred_element_type=jnp.float32) + bx_ref[...]  # [T*B, 8H]
    gx_ref[...] = gx.reshape(T, B, 2 * G)

    # ---- interleaved bidirectional recurrence ----
    zeros = jnp.zeros((B, H), jnp.float32)

    def step(i, carry):
        hf, cf, hb, cb = carry
        t_f = i
        t_b = T - 1 - i

        # forward direction (state needs no freezing: padded outputs are masked and
        # no later forward step can be valid again)
        gf = gx_ref[t_f][:, :G] + jnp.dot(hf, whh_f_ref[...],
                                          preferred_element_type=jnp.float32)
        sig_f = jax.nn.sigmoid(gf)
        tnh_f = jnp.tanh(gf)
        cf_new = sig_f[:, H:2 * H] * cf + sig_f[:, :H] * tnh_f[:, 2 * H:3 * H]
        hf_new = sig_f[:, 3 * H:] * jnp.tanh(cf_new)
        outf_ref[t_f] = mask_ref[t_f] * hf_new

        # backward direction (state must stay zero until t < len[b])
        gb = gx_ref[t_b][:, G:] + jnp.dot(hb, whh_b_ref[...],
                                          preferred_element_type=jnp.float32)
        sig_b = jax.nn.sigmoid(gb)
        tnh_b = jnp.tanh(gb)
        cb_new = sig_b[:, H:2 * H] * cb + sig_b[:, :H] * tnh_b[:, 2 * H:3 * H]
        hb_new = sig_b[:, 3 * H:] * jnp.tanh(cb_new)
        mb = mask_ref[t_b]
        outb_ref[t_b] = mb * hb_new
        hb_next = mb * hb_new + (1.0 - mb) * hb
        cb_next = mb * cb_new + (1.0 - mb) * cb

        return (hf_new, cf_new, hb_next, cb_next)

    lax.fori_loop(0, T, step, (zeros, zeros, zeros, zeros), unroll=True)

    # ---- fused multi-head attention pooling over time + L2 normalize ----
    x3 = jnp.concatenate([outf_ref[...], outb_ref[...]], axis=-1)   # [T, B, F]
    x2 = x3.reshape(TB, F)
    hid = jnp.tanh(jnp.dot(x2, wh_ref[...],
                           preferred_element_type=jnp.float32) + bh_ref[...])   # [TB, nH*A]
    scores = jnp.dot(hid, wo_ref[...],
                     preferred_element_type=jnp.float32) + bo_ref[...]          # [TB, nH*F]
    s3 = scores.reshape(T, B, NHF)
    # softmax over time (PyTorch nn.Softmax(dim=1) on [B, T, F]) == axis 0 here;
    # padded timesteps are intentionally included, matching the unmasked reference.
    m = jnp.max(s3, axis=0, keepdims=True)
    e = jnp.exp(s3 - m)
    alpha = e / jnp.sum(e, axis=0, keepdims=True)
    x_rep = jnp.concatenate([x3] * n_heads, axis=-1)                # [T, B, nH*F]
    pooled = jnp.sum(alpha * x_rep, axis=0)                         # [B, nH*F]
    # F.normalize(p=2, dim=1): x / max(||x||, 1e-12) == x * rsqrt(max(||x||^2, 1e-24))
    ss = jnp.sum(pooled * pooled, axis=1, keepdims=True)
    out_ref[...] = pooled * lax.rsqrt(jnp.maximum(ss, 1e-24))


# ----------------------------- wrapper -----------------------------
def text_rnn_encoder_forward(ids, lengths, params):
    (emb, wih_cat, b_cat, whh_f, whh_b, wh_cat, bh_cat, wo_blk, bo_cat) = params
    B, T = ids.shape
    H = whh_f.shape[0]
    NHF = bo_cat.shape[1]

    # tiny index prep (time-major flat ids, [1,B,1] lengths); everything heavy is fused
    ids_tm = jnp.transpose(ids.astype(jnp.int32)).reshape(T * B, 1)
    lens3 = lengths.astype(jnp.int32).reshape(1, B, 1)

    vmem = lambda: pl.BlockSpec(memory_space=pltpu.MemorySpace.VMEM)
    # NOTE: gridless single call — all tensors (<100 KiB) stay resident in VMEM.
    # If batch is ever scaled up, add a grid axis over batch with
    # dimension_semantics=("parallel",) to shard across TensorCores (v7x has 2 TCs).
    return pl.pallas_call(
        text_rnn_encoder_kernel,
        out_shape=jax.ShapeDtypeStruct((B, NHF), jnp.float32),
        in_specs=[vmem() for _ in range(11)],
        out_specs=vmem(),
        scratch_shapes=[
            pltpu.VMEM((T, B, 8 * H), jnp.float32),   # hoisted input-proj gates
            pltpu.VMEM((T, B, H), jnp.float32),       # forward LSTM outputs
            pltpu.VMEM((T, B, H), jnp.float32),       # backward LSTM outputs
            pltpu.VMEM((T, B, H), jnp.float32),       # validity mask
        ],
    )(ids_tm, lens3, emb, wih_cat, b_cat, whh_f, whh_b, wh_cat, bh_cat, wo_blk, bo_cat)


def prepare_params(emb, wih_f, whh_f, b_f, wih_b, whh_b, b_b, wh, bh, wo, bo):
    """One-time re-layout of parameters into the fused-kernel formats."""
    wih_cat = jnp.concatenate([wih_f, wih_b], axis=1)          # [D, 8H]
    b_cat = jnp.concatenate([b_f, b_b], axis=1)                # [1, 8H]
    n_heads, _, att_hid = wh.shape
    feat = wo.shape[2]
    wh_cat = jnp.concatenate([wh[h] for h in range(n_heads)], axis=1)   # [F, nH*A]
    bh_cat = jnp.concatenate([bh[h] for h in range(n_heads)], axis=1)   # [1, nH*A]
    wo_blk = jnp.zeros((n_heads * att_hid, n_heads * feat), jnp.float32)
    for h in range(n_heads):                                    # block-diagonal score proj
        wo_blk = wo_blk.at[h * att_hid:(h + 1) * att_hid,
                           h * feat:(h + 1) * feat].set(wo[h])
    bo_cat = jnp.concatenate([bo[h] for h in range(n_heads)], axis=1)   # [1, nH*F]
    return (emb, wih_cat, b_cat, whh_f, whh_b, wh_cat, bh_cat, wo_blk, bo_cat)


# ----------------------------- main -----------------------------
if __name__ == "__main__":
    key = jax.random.PRNGKey(0)
    ks = jax.random.split(key, 12)

    # embedding table (padding_idx row zeroed, as nn.Embedding does)
    emb = jax.random.normal(ks[0], (VOCAB, EMB_DIM), jnp.float32) * 0.1
    emb = emb.at[PAD_IDX].set(0.0)

    # LSTM parameters (PyTorch weight_ih [4H, D] / weight_hh [4H, H] stored transposed;
    # bias = b_ih + b_hh; gate order i, f, g, o)
    s = 1.0 / jnp.sqrt(jnp.float32(HIDDEN))
    u = lambda k, shp: jax.random.uniform(k, shp, jnp.float32, -s, s)
    wih_f = u(ks[1], (EMB_DIM, 4 * HIDDEN))
    whh_f = u(ks[2], (HIDDEN, 4 * HIDDEN))
    b_f = u(ks[3], (1, 4 * HIDDEN)) + u(ks[4], (1, 4 * HIDDEN))
    wih_b = u(ks[5], (EMB_DIM, 4 * HIDDEN))
    whh_b = u(ks[6], (HIDDEN, 4 * HIDDEN))
    b_b = u(ks[7], (1, 4 * HIDDEN)) + u(ks[8], (1, 4 * HIDDEN))

    # attention head parameters (Linear weights stored transposed: [in, out])
    wh = jax.random.normal(ks[9], (N_HEADS, FEAT, ATT_HID), jnp.float32) * 0.1
    bh = jnp.zeros((N_HEADS, 1, ATT_HID), jnp.float32)
    wo = jax.random.normal(ks[10], (N_HEADS, ATT_HID, FEAT), jnp.float32) * 0.1
    bo = jnp.zeros((N_HEADS, 1, FEAT), jnp.float32)

    params = prepare_params(emb, wih_f, whh_f, b_f, wih_b, whh_b, b_b, wh, bh, wo, bo)

    # inputs: token ids [B, max_len] and per-sequence lengths l (max(l) == MAX_LEN)
    ids = jax.random.randint(ks[11], (BATCH, MAX_LEN), 1, VOCAB)
    lengths = jnp.array([MAX_LEN, 5], dtype=jnp.int32)
    pos = jnp.arange(MAX_LEN)[None, :]
    ids = jnp.where(pos < lengths[:, None], ids, PAD_IDX)

    # TODO(synk): load_embeddings() reads GloVe files from disk; not applicable here
    # (parameters are deterministic in-script per task instructions).

    fwd = jax.jit(text_rnn_encoder_forward)
    out = fwd(ids, lengths, params)
    out = jax.block_until_ready(out)
    assert out.shape == (BATCH, N_HEADS * FEAT)
    print("KERNEL_OK")
</pallas_src>

<mosaic_0001>
module attributes {stable_mosaic.version = 11 : i64} {
  func.func @text_rnn_encoder_kernel(%arg0: memref<16x1xi32, #tpu.memory_space<vmem>>, %arg1: memref<1x2x1xi32, #tpu.memory_space<vmem>>, %arg2: memref<100x20xf32, #tpu.memory_space<vmem>>, %arg3: memref<20x256xf32, #tpu.memory_space<vmem>>, %arg4: memref<1x256xf32, #tpu.memory_space<vmem>>, %arg5: memref<32x128xf32, #tpu.memory_space<vmem>>, %arg6: memref<32x128xf32, #tpu.memory_space<vmem>>, %arg7: memref<64x32xf32, #tpu.memory_space<vmem>>, %arg8: memref<1x32xf32, #tpu.memory_space<vmem>>, %arg9: memref<32x128xf32, #tpu.memory_space<vmem>>, %arg10: memref<1x128xf32, #tpu.memory_space<vmem>>, %arg11: memref<2x128xf32, #tpu.memory_space<vmem>>, %arg12: memref<8x2x256xf32, #tpu.memory_space<vmem>>, %arg13: memref<8x2x32xf32, #tpu.memory_space<vmem>>, %arg14: memref<8x2x32xf32, #tpu.memory_space<vmem>>, %arg15: memref<8x2x32xf32, #tpu.memory_space<vmem>>) attributes {dimension_semantics = [], scalar_prefetch = 0 : i64, scratch_operands = 4 : i64, tpu.core_type = #tpu.core_type<tc>} {
    %0 = tpu.iota {dimensions = array<i32: 0>} : vector<8x2x32xi32>
    %c0 = arith.constant 0 : index
    %c0_0 = arith.constant 0 : index
    %c0_1 = arith.constant 0 : index
    %1 = vector.load %arg1[%c0, %c0_0, %c0_1] : memref<1x2x1xi32, #tpu.memory_space<vmem>>, vector<1x2x1xi32>
    %2 = vector.broadcast %1 : vector<1x2x1xi32> to vector<8x2x32xi32>
    %3 = arith.cmpi slt, %0, %2 : vector<8x2x32xi32>
    %4 = arith.extui %3 : vector<8x2x32xi1> to vector<8x2x32xi32>
    %5 = arith.sitofp %4 : vector<8x2x32xi32> to vector<8x2x32xf32>
    %c0_2 = arith.constant 0 : index
    %c0_3 = arith.constant 0 : index
    %c0_4 = arith.constant 0 : index
    %6 = vector.load %arg15[%c0_2, %c0_3, %c0_4] : memref<8x2x32xf32, #tpu.memory_space<vmem>>, vector<8x2x32xf32>
    tpu.vector_store %arg15[%c0_2, %c0_3, %c0_4], %5 {strides = array<i32>} : memref<8x2x32xf32, #tpu.memory_space<vmem>>, vector<8x2x32xf32>,
    %c0_5 = arith.constant 0 : index
    %c0_6 = arith.constant 0 : index
    %7 = vector.load %arg0[%c0_5, %c0_6] : memref<16x1xi32, #tpu.memory_space<vmem>>, vector<16x1xi32>
    %8 = tpu.iota {dimensions = array<i32: 1>} : vector<16x100xi32>
    %9 = vector.broadcast %7 : vector<16x1xi32> to vector<16x100xi32>
    %10 = arith.cmpi eq, %9, %8 : vector<16x100xi32>
    %11 = arith.extui %10 : vector<16x100xi1> to vector<16x100xi32>
    %12 = arith.sitofp %11 : vector<16x100xi32> to vector<16x100xf32>
    %c0_7 = arith.constant 0 : index
    %c0_8 = arith.constant 0 : index
    %13 = vector.load %arg2[%c0_7, %c0_8] : memref<100x20xf32, #tpu.memory_space<vmem>>, vector<100x20xf32>
    %cst = arith.constant dense<0.000000e+00> : vector<16x20xf32>
    %14 = tpu.matmul %12, %13, %cst {dimension_numbers = #tpu.dot_dimension_numbers<[1], [0], [0], [1], [0, 0, 1, 1], [], []>} : vector<16x100xf32>, vector<100x20xf32>, vector<16x20xf32> -> vector<16x20xf32>
    %c0_9 = arith.constant 0 : index
    %c0_10 = arith.constant 0 : index
    %15 = vector.load %arg3[%c0_9, %c0_10] : memref<20x256xf32, #tpu.memory_space<vmem>>, vector<20x256xf32>
    %cst_11 = arith.constant dense<0.000000e+00> : vector<16x256xf32>
    %16 = tpu.matmul %14, %15, %cst_11 {dimension_numbers = #tpu.dot_dimension_numbers<[1], [0], [0], [1], [0, 0, 1, 1], [], []>} : vector<16x20xf32>, vector<20x256xf32>, vector<16x256xf32> -> vector<16x256xf32>
    %c0_12 = arith.constant 0 : index
    %c0_13 = arith.constant 0 : index
    %17 = vector.load %arg4[%c0_12, %c0_13] : memref<1x256xf32, #tpu.memory_space<vmem>>, vector<1x256xf32>
    %18 = vector.broadcast %17 : vector<1x256xf32> to vector<16x256xf32>
    %19 = arith.addf %16, %18 : vector<16x256xf32>
    %20 = vector.shape_cast %19 : vector<16x256xf32> to vector<8x2x256xf32>
    %c0_14 = arith.constant 0 : index
    %c0_15 = arith.constant 0 : index
    %c0_16 = arith.constant 0 : index
    %21 = vector.load %arg12[%c0_14, %c0_15, %c0_16] : memref<8x2x256xf32, #tpu.memory_space<vmem>>, vector<8x2x256xf32>
    tpu.vector_store %arg12[%c0_14, %c0_15, %c0_16], %20 {strides = array<i32>} : memref<8x2x256xf32, #tpu.memory_space<vmem>>, vector<8x2x256xf32>,
    %cst_17 = arith.constant 0.000000e+00 : f32
    %22 = vector.broadcast %cst_17 : f32 to vector<2x32xf32>
    %c0_i32 = arith.constant 0 : i32
    %c7_i32 = arith.constant 7 : i32
    %23 = arith.subi %c7_i32, %c0_i32 : i32
    %24 = arith.index_cast %c0_i32 : i32 to index
    %c0_18 = arith.constant 0 : index
    %c0_19 = arith.constant 0 : index
    %25 = vector.load %arg12[%24, %c0_18, %c0_19] : memref<8x2x256xf32, #tpu.memory_space<vmem>>, vector<1x2x256xf32>
    %26 = vector.shape_cast %25 : vector<1x2x256xf32> to vector<2x256xf32>
    %27 = vector.extract_strided_slice %26 {offsets = [0, 0], sizes = [2, 128], strides = [1, 1]} : vector<2x256xf32> to vector<2x128xf32>
    %c0_20 = arith.constant 0 : index
    %c0_21 = arith.constant 0 : index
    %28 = vector.load %arg5[%c0_20, %c0_21] : memref<32x128xf32, #tpu.memory_space<vmem>>, vector<32x128xf32>
    %cst_22 = arith.constant dense<0.000000e+00> : vector<2x128xf32>
    %29 = tpu.matmul %22, %28, %cst_22 {dimension_numbers = #tpu.dot_dimension_numbers<[1], [0], [0], [1], [0, 0, 1, 1], [], []>} : vector<2x32xf32>, vector<32x128xf32>, vector<2x128xf32> -> vector<2x128xf32>
    %30 = arith.addf %27, %29 : vector<2x128xf32>
    %31 = arith.negf %30 : vector<2x128xf32>
    %32 = math.exp %31 : vector<2x128xf32>
    %cst_23 = arith.constant 1.000000e+00 : f32
    %33 = vector.broadcast %cst_23 : f32 to vector<2x128xf32>
    %34 = arith.addf %33, %32 : vector<2x128xf32>
    %35 = arith.divf %33, %34 : vector<2x128xf32>
    %36 = math.tanh %30 : vector<2x128xf32>
    %37 = vector.extract_strided_slice %35 {offsets = [0, 32], sizes = [2, 32], strides = [1, 1]} : vector<2x128xf32> to vector<2x32xf32>
    %38 = arith.mulf %37, %22 : vector<2x32xf32>
    %39 = vector.extract_strided_slice %35 {offsets = [0, 0], sizes = [2, 32], strides = [1, 1]} : vector<2x128xf32> to vector<2x32xf32>
    %40 = vector.extract_strided_slice %36 {offsets = [0, 64], sizes = [2, 32], strides = [1, 1]} : vector<2x128xf32> to vector<2x32xf32>
    %41 = arith.mulf %39, %40 : vector<2x32xf32>
    %42 = arith.addf %38, %41 : vector<2x32xf32>
    %43 = vector.extract_strided_slice %35 {offsets = [0, 96], sizes = [2, 32], strides = [1, 1]} : vector<2x128xf32> to vector<2x32xf32>
    %44 = math.tanh %42 : vector<2x32xf32>
    %45 = arith.mulf %43, %44 : vector<2x32xf32>
    %46 = arith.index_cast %c0_i32 : i32 to index
    %c0_24 = arith.constant 0 : index
    %c0_25 = arith.constant 0 : index
    %47 = vector.load %arg15[%46, %c0_24, %c0_25] : memref<8x2x32xf32, #tpu.memory_space<vmem>>, vector<1x2x32xf32>
    %48 = vector.shape_cast %47 : vector<1x2x32xf32> to vector<2x32xf32>
    %49 = arith.mulf %48, %45 : vector<2x32xf32>
    %50 = arith.index_cast %c0_i32 : i32 to index
    %c0_26 = arith.constant 0 : index
    %c0_27 = arith.constant 0 : index
    %51 = vector.load %arg13[%50, %c0_26, %c0_27] : memref<8x2x32xf32, #tpu.memory_space<vmem>>, vector<1x2x32xf32>
    %52 = vector.shape_cast %51 : vector<1x2x32xf32> to vector<2x32xf32>
    %53 = vector.shape_cast %49 : vector<2x32xf32> to vector<1x2x32xf32>
    tpu.vector_store %arg13[%50, %c0_26, %c0_27], %53 {strides = array<i32>} : memref<8x2x32xf32, #tpu.memory_space<vmem>>, vector<1x2x32xf32>,
    %54 = arith.index_cast %23 : i32 to index
    %c0_28 = arith.constant 0 : index
    %c0_29 = arith.constant 0 : index
    %55 = vector.load %arg12[%54, %c0_28, %c0_29] : memref<8x2x256xf32, #tpu.memory_space<vmem>>, vector<1x2x256xf32>
    %56 = vector.shape_cast %55 : vector<1x2x256xf32> to vector<2x256xf32>
    %57 = vector.extract_strided_slice %56 {offsets = [0, 128], sizes = [2, 128], strides = [1, 1]} : vector<2x256xf32> to vector<2x128xf32>
    %c0_30 = arith.constant 0 : index
    %c0_31 = arith.constant 0 : index
    %58 = vector.load %arg6[%c0_30, %c0_31] : memref<32x128xf32, #tpu.memory_space<vmem>>, vector<32x128xf32>
    %cst_32 = arith.constant dense<0.000000e+00> : vector<2x128xf32>
    %59 = tpu.matmul %22, %58, %cst_32 {dimension_numbers = #tpu.dot_dimension_numbers<[1], [0], [0], [1], [0, 0, 1, 1], [], []>} : vector<2x32xf32>, vector<32x128xf32>, vector<2x128xf32> -> vector<2x128xf32>
    %60 = arith.addf %57, %59 : vector<2x128xf32>
    %61 = arith.negf %60 : vector<2x128xf32>
    %62 = math.exp %61 : vector<2x128xf32>
    %cst_33 = arith.constant 1.000000e+00 : f32
    %63 = vector.broadcast %cst_33 : f32 to vector<2x128xf32>
    %64 = arith.addf %63, %62 : vector<2x128xf32>
    %65 = arith.divf %63, %64 : vector<2x128xf32>
    %66 = math.tanh %60 : vector<2x128xf32>
    %67 = vector.extract_strided_slice %65 {offsets = [0, 32], sizes = [2, 32], strides = [1, 1]} : vector<2x128xf32> to vector<2x32xf32>
    %68 = arith.mulf %67, %22 : vector<2x32xf32>
    %69 = vector.extract_strided_slice %65 {offsets = [0, 0], sizes = [2, 32], strides = [1, 1]} : vector<2x128xf32> to vector<2x32xf32>
    %70 = vector.extract_strided_slice %66 {offsets = [0, 64], sizes = [2, 32], strides = [1, 1]} : vector<2x128xf32> to vector<2x32xf32>
    %71 = arith.mulf %69, %70 : vector<2x32xf32>
    %72 = arith.addf %68, %71 : vector<2x32xf32>
    %73 = vector.extract_strided_slice %65 {offsets = [0, 96], sizes = [2, 32], strides = [1, 1]} : vector<2x128xf32> to vector<2x32xf32>
    %74 = math.tanh %72 : vector<2x32xf32>
    %75 = arith.mulf %73, %74 : vector<2x32xf32>
    %76 = arith.index_cast %23 : i32 to index
    %c0_34 = arith.constant 0 : index
    %c0_35 = arith.constant 0 : index
    %77 = vector.load %arg15[%76, %c0_34, %c0_35] : memref<8x2x32xf32, #tpu.memory_space<vmem>>, vector<1x2x32xf32>
    %78 = vector.shape_cast %77 : vector<1x2x32xf32> to vector<2x32xf32>
    %79 = arith.mulf %78, %75 : vector<2x32xf32>
    %80 = arith.index_cast %23 : i32 to index
    %c0_36 = arith.constant 0 : index
    %c0_37 = arith.constant 0 : index
    %81 = vector.load %arg14[%80, %c0_36, %c0_37] : memref<8x2x32xf32, #tpu.memory_space<vmem>>, vector<1x2x32xf32>
    %82 = vector.shape_cast %81 : vector<1x2x32xf32> to vector<2x32xf32>
    %83 = vector.shape_cast %79 : vector<2x32xf32> to vector<1x2x32xf32>
    tpu.vector_store %arg14[%80, %c0_36, %c0_37], %83 {strides = array<i32>} : memref<8x2x32xf32, #tpu.memory_space<vmem>>, vector<1x2x32xf32>,
    %84 = arith.mulf %78, %75 : vector<2x32xf32>
    %cst_38 = arith.constant 1.000000e+00 : f32
    %85 = vector.broadcast %cst_38 : f32 to vector<2x32xf32>
    %86 = arith.subf %85, %78 : vector<2x32xf32>
    %87 = arith.mulf %86, %22 : vector<2x32xf32>
    %88 = arith.addf %84, %87 : vector<2x32xf32>
    %89 = arith.mulf %78, %72 : vector<2x32xf32>
    %cst_39 = arith.constant 1.000000e+00 : f32
    %90 = vector.broadcast %cst_39 : f32 to vector<2x32xf32>
    %91 = arith.subf %90, %78 : vector<2x32xf32>
    %92 = arith.mulf %91, %22 : vector<2x32xf32>
    %93 = arith.addf %89, %92 : vector<2x32xf32>
    %c1_i32 = arith.constant 1 : i32
    %c7_i32_40 = arith.constant 7 : i32
    %94 = arith.subi %c7_i32_40, %c1_i32 : i32
    %95 = arith.index_cast %c1_i32 : i32 to index
    %c0_41 = arith.constant 0 : index
    %c0_42 = arith.constant 0 : index
    %96 = vector.load %arg12[%95, %c0_41, %c0_42] : memref<8x2x256xf32, #tpu.memory_space<vmem>>, vector<1x2x256xf32>
    %97 = vector.shape_cast %96 : vector<1x2x256xf32> to vector<2x256xf32>
    %98 = vector.extract_strided_slice %97 {offsets = [0, 0], sizes = [2, 128], strides = [1, 1]} : vector<2x256xf32> to vector<2x128xf32>
    %c0_43 = arith.constant 0 : index
    %c0_44 = arith.constant 0 : index
    %99 = vector.load %arg5[%c0_43, %c0_44] : memref<32x128xf32, #tpu.memory_space<vmem>>, vector<32x128xf32>
    %cst_45 = arith.constant dense<0.000000e+00> : vector<2x128xf32>
    %100 = tpu.matmul %45, %99, %cst_45 {dimension_numbers = #tpu.dot_dimension_numbers<[1], [0], [0], [1], [0, 0, 1, 1], [], []>} : vector<2x32xf32>, vector<32x128xf32>, vector<2x128xf32> -> vector<2x128xf32>
    %101 = arith.addf %98, %100 : vector<2x128xf32>
    %102 = arith.negf %101 : vector<2x128xf32>
    %103 = math.exp %102 : vector<2x128xf32>
    %cst_46 = arith.constant 1.000000e+00 : f32
    %104 = vector.broadcast %cst_46 : f32 to vector<2x128xf32>
    %105 = arith.addf %104, %103 : vector<2x128xf32>
    %106 = arith.divf %104, %105 : vector<2x128xf32>
    %107 = math.tanh %101 : vector<2x128xf32>
    %108 = vector.extract_strided_slice %106 {offsets = [0, 32], sizes = [2, 32], strides = [1, 1]} : vector<2x128xf32> to vector<2x32xf32>
    %109 = arith.mulf %108, %42 : vector<2x32xf32>
    %110 = vector.extract_strided_slice %106 {offsets = [0, 0], sizes = [2, 32], strides = [1, 1]} : vector<2x128xf32> to vector<2x32xf32>
    %111 = vector.extract_strided_slice %107 {offsets = [0, 64], sizes = [2, 32], strides = [1, 1]} : vector<2x128xf32> to vector<2x32xf32>
    %112 = arith.mulf %110, %111 : vector<2x32xf32>
    %113 = arith.addf %109, %112 : vector<2x32xf32>
    %114 = vector.extract_strided_slice %106 {offsets = [0, 96], sizes = [2, 32], strides = [1, 1]} : vector<2x128xf32> to vector<2x32xf32>
    %115 = math.tanh %113 : vector<2x32xf32>
    %116 = arith.mulf %114, %115 : vector<2x32xf32>
    %117 = arith.index_cast %c1_i32 : i32 to index
    %c0_47 = arith.constant 0 : index
    %c0_48 = arith.constant 0 : index
    %118 = vector.load %arg15[%117, %c0_47, %c0_48] : memref<8x2x32xf32, #tpu.memory_space<vmem>>, vector<1x2x32xf32>
    %119 = vector.shape_cast %118 : vector<1x2x32xf32> to vector<2x32xf32>
    %120 = arith.mulf %119, %116 : vector<2x32xf32>
    %121 = arith.index_cast %c1_i32 : i32 to index
    %c0_49 = arith.constant 0 : index
    %c0_50 = arith.constant 0 : index
    %122 = vector.load %arg13[%121, %c0_49, %c0_50] : memref<8x2x32xf32, #tpu.memory_space<vmem>>, vector<1x2x32xf32>
    %123 = vector.shape_cast %122 : vector<1x2x32xf32> to vector<2x32xf32>
    %124 = vector.shape_cast %120 : vector<2x32xf32> to vector<1x2x32xf32>
    tpu.vector_store %arg13[%121, %c0_49, %c0_50], %124 {strides = array<i32>} : memref<8x2x32xf32, #tpu.memory_space<vmem>>, vector<1x2x32xf32>,
    %125 = arith.index_cast %94 : i32 to index
    %c0_51 = arith.constant 0 : index
    %c0_52 = arith.constant 0 : index
    %126 = vector.load %arg12[%125, %c0_51, %c0_52] : memref<8x2x256xf32, #tpu.memory_space<vmem>>, vector<1x2x256xf32>
    %127 = vector.shape_cast %126 : vector<1x2x256xf32> to vector<2x256xf32>
    %128 = vector.extract_strided_slice %127 {offsets = [0, 128], sizes = [2, 128], strides = [1, 1]} : vector<2x256xf32> to vector<2x128xf32>
    %c0_53 = arith.constant 0 : index
    %c0_54 = arith.constant 0 : index
    %129 = vector.load %arg6[%c0_53, %c0_54] : memref<32x128xf32, #tpu.memory_space<vmem>>, vector<32x128xf32>
    %cst_55 = arith.constant dense<0.000000e+00> : vector<2x128xf32>
    %130 = tpu.matmul %88, %129, %cst_55 {dimension_numbers = #tpu.dot_dimension_numbers<[1], [0], [0], [1], [0, 0, 1, 1], [], []>} : vector<2x32xf32>, vector<32x128xf32>, vector<2x128xf32> -> vector<2x128xf32>
    %131 = arith.addf %128, %130 : vector<2x128xf32>
    %132 = arith.negf %131 : vector<2x128xf32>
    %133 = math.exp %132 : vector<2x128xf32>
    %cst_56 = arith.constant 1.000000e+00 : f32
    %134 = vector.broadcast %cst_56 : f32 to vector<2x128xf32>
    %135 = arith.addf %134, %133 : vector<2x128xf32>
    %136 = arith.divf %134, %135 : vector<2x128xf32>
    %137 = math.tanh %131 : vector<2x128xf32>
    %138 = vector.extract_strided_slice %136 {offsets = [0, 32], sizes = [2, 32], strides = [1, 1]} : vector<2x128xf32> to vector<2x32xf32>
    %139 = arith.mulf %138, %93 : vector<2x32xf32>
    %140 = vector.extract_strided_slice %136 {offsets = [0, 0], sizes = [2, 32], strides = [1, 1]} : vector<2x128xf32> to vector<2x32xf32>
    %141 = vector.extract_strided_slice %137 {offsets = [0, 64], sizes = [2, 32], strides = [1, 1]} : vector<2x128xf32> to vector<2x32xf32>
    %142 = arith.mulf %140, %141 : vector<2x32xf32>
    %143 = arith.addf %139, %142 : vector<2x32xf32>
    %144 = vector.extract_strided_slice %136 {offsets = [0, 96], sizes = [2, 32], strides = [1, 1]} : vector<2x128xf32> to vector<2x32xf32>
    %145 = math.tanh %143 : vector<2x32xf32>
    %146 = arith.mulf %144, %145 : vector<2x32xf32>
    %147 = arith.index_cast %94 : i32 to index
    %c0_57 = arith.constant 0 : index
    %c0_58 = arith.constant 0 : index
    %148 = vector.load %arg15[%147, %c0_57, %c0_58] : memref<8x2x32xf32, #tpu.memory_space<vmem>>, vector<1x2x32xf32>
    %149 = vector.shape_cast %148 : vector<1x2x32xf32> to vector<2x32xf32>
    %150 = arith.mulf %149, %146 : vector<2x32xf32>
    %151 = arith.index_cast %94 : i32 to index
    %c0_59 = arith.constant 0 : index
    %c0_60 = arith.constant 0 : index
    %152 = vector.load %arg14[%151, %c0_59, %c0_60] : memref<8x2x32xf32, #tpu.memory_space<vmem>>, vector<1x2x32xf32>
    %153 = vector.shape_cast %152 : vector<1x2x32xf32> to vector<2x32xf32>
    %154 = vector.shape_cast %150 : vector<2x32xf32> to vector<1x2x32xf32>
    tpu.vector_store %arg14[%151, %c0_59, %c0_60], %154 {strides = array<i32>} : memref<8x2x32xf32, #tpu.memory_space<vmem>>, vector<1x2x32xf32>,
    %155 = arith.mulf %149, %146 : vector<2x32xf32>
    %cst_61 = arith.constant 1.000000e+00 : f32
    %156 = vector.broadcast %cst_61 : f32 to vector<2x32xf32>
    %157 = arith.subf %156, %149 : vector<2x32xf32>
    %158 = arith.mulf %157, %88 : vector<2x32xf32>
    %159 = arith.addf %155, %158 : vector<2x32xf32>
    %160 = arith.mulf %149, %143 : vector<2x32xf32>
    %cst_62 = arith.constant 1.000000e+00 : f32
    %161 = vector.broadcast %cst_62 : f32 to vector<2x32xf32>
    %162 = arith.subf %161, %149 : vector<2x32xf32>
    %163 = arith.mulf %162, %93 : vector<2x32xf32>
    %164 = arith.addf %160, %163 : vector<2x32xf32>
    %c2_i32 = arith.constant 2 : i32
    %c7_i32_63 = arith.constant 7 : i32
    %165 = arith.subi %c7_i32_63, %c2_i32 : i32
    %166 = arith.index_cast %c2_i32 : i32 to index
    %c0_64 = arith.constant 0 : index
    %c0_65 = arith.constant 0 : index
    %167 = vector.load %arg12[%166, %c0_64, %c0_65] : memref<8x2x256xf32, #tpu.memory_space<vmem>>, vector<1x2x256xf32>
    %168 = vector.shape_cast %167 : vector<1x2x256xf32> to vector<2x256xf32>
    %169 = vector.extract_strided_slice %168 {offsets = [0, 0], sizes = [2, 128], strides = [1, 1]} : vector<2x256xf32> to vector<2x128xf32>
    %c0_66 = arith.constant 0 : index
    %c0_67 = arith.constant 0 : index
    %170 = vector.load %arg5[%c0_66, %c0_67] : memref<32x128xf32, #tpu.memory_space<vmem>>, vector<32x128xf32>
    %cst_68 = arith.constant dense<0.000000e+00> : vector<2x128xf32>
    %171 = tpu.matmul %116, %170, %cst_68 {dimension_numbers = #tpu.dot_dimension_numbers<[1], [0], [0], [1], [0, 0, 1, 1], [], []>} : vector<2x32xf32>, vector<32x128xf32>, vector<2x128xf32> -> vector<2x128xf32>
    %172 = arith.addf %169, %171 : vector<2x128xf32>
    %173 = arith.negf %172 : vector<2x128xf32>
    %174 = math.exp %173 : vector<2x128xf32>
    %cst_69 = arith.constant 1.000000e+00 : f32
    %175 = vector.broadcast %cst_69 : f32 to vector<2x128xf32>
    %176 = arith.addf %175, %174 : vector<2x128xf32>
    %177 = arith.divf %175, %176 : vector<2x128xf32>
    %178 = math.tanh %172 : vector<2x128xf32>
    %179 = vector.extract_strided_slice %177 {offsets = [0, 32], sizes = [2, 32], strides = [1, 1]} : vector<2x128xf32> to vector<2x32xf32>
    %180 = arith.mulf %179, %113 : vector<2x32xf32>
    %181 = vector.extract_strided_slice %177 {offsets = [0, 0], sizes = [2, 32], strides = [1, 1]} : vector<2x128xf32> to vector<2x32xf32>
    %182 = vector.extract_strided_slice %178 {offsets = [0, 64], sizes = [2, 32], strides = [1, 1]} : vector<2x128xf32> to vector<2x32xf32>
    %183 = arith.mulf %181, %182 : vector<2x32xf32>
    %184 = arith.addf %180, %183 : vector<2x32xf32>
    %185 = vector.extract_strided_slice %177 {offsets = [0, 96], sizes = [2, 32], strides = [1, 1]} : vector<2x128xf32> to vector<2x32xf32>
    %186 = math.tanh %184 : vector<2x32xf32>
    %187 = arith.mulf %185, %186 : vector<2x32xf32>
    %188 = arith.index_cast %c2_i32 : i32 to index
    %c0_70 = arith.constant 0 : index
    %c0_71 = arith.constant 0 : index
    %189 = vector.load %arg15[%188, %c0_70, %c0_71] : memref<8x2x32xf32, #tpu.memory_space<vmem>>, vector<1x2x32xf32>
    %190 = vector.shape_cast %189 : vector<1x2x32xf32> to vector<2x32xf32>
    %191 = arith.mulf %190, %187 : vector<2x32xf32>
    %192 = arith.index_cast %c2_i32 : i32 to index
    %c0_72 = arith.constant 0 : index
    %c0_73 = arith.constant 0 : index
    %193 = vector.load %arg13[%192, %c0_72, %c0_73] : memref<8x2x32xf32, #tpu.memory_space<vmem>>, vector<1x2x32xf32>
    %194 = vector.shape_cast %193 : vector<1x2x32xf32> to vector<2x32xf32>
    %195 = vector.shape_cast %191 : vector<2x32xf32> to vector<1x2x32xf32>
    tpu.vector_store %arg13[%192, %c0_72, %c0_73], %195 {strides = array<i32>} : memref<8x2x32xf32, #tpu.memory_space<vmem>>, vector<1x2x32xf32>,
    %196 = arith.index_cast %165 : i32 to index
    %c0_74 = arith.constant 0 : index
    %c0_75 = arith.constant 0 : index
    %197 = vector.load %arg12[%196, %c0_74, %c0_75] : memref<8x2x256xf32, #tpu.memory_space<vmem>>, vector<1x2x256xf32>
    %198 = vector.shape_cast %197 : vector<1x2x256xf32> to vector<2x256xf32>
    %199 = vector.extract_strided_slice %198 {offsets = [0, 128], sizes = [2, 128], strides = [1, 1]} : vector<2x256xf32> to vector<2x128xf32>
    %c0_76 = arith.constant 0 : index
    %c0_77 = arith.constant 0 : index
    %200 = vector.load %arg6[%c0_76, %c0_77] : memref<32x128xf32, #tpu.memory_space<vmem>>, vector<32x128xf32>
    %cst_78 = arith.constant dense<0.000000e+00> : vector<2x128xf32>
    %201 = tpu.matmul %159, %200, %cst_78 {dimension_numbers = #tpu.dot_dimension_numbers<[1], [0], [0], [1], [0, 0, 1, 1], [], []>} : vector<2x32xf32>, vector<32x128xf32>, vector<2x128xf32> -> vector<2x128xf32>
    %202 = arith.addf %199, %201 : vector<2x128xf32>
    %203 = arith.negf %202 : vector<2x128xf32>
    %204 = math.exp %203 : vector<2x128xf32>
    %cst_79 = arith.constant 1.000000e+00 : f32
    %205 = vector.broadcast %cst_79 : f32 to vector<2x128xf32>
    %206 = arith.addf %205, %204 : vector<2x128xf32>
    %207 = arith.divf %205, %206 : vector<2x128xf32>
    %208 = math.tanh %202 : vector<2x128xf32>
    %209 = vector.extract_strided_slice %207 {offsets = [0, 32], sizes = [2, 32], strides = [1, 1]} : vector<2x128xf32> to vector<2x32xf32>
    %210 = arith.mulf %209, %164 : vector<2x32xf32>
    %211 = vector.extract_strided_slice %207 {offsets = [0, 0], sizes = [2, 32], strides = [1, 1]} : vector<2x128xf32> to vector<2x32xf32>
    %212 = vector.extract_strided_slice %208 {offsets = [0, 64], sizes = [2, 32], strides = [1, 1]} : vector<2x128xf32> to vector<2x32xf32>
    %213 = arith.mulf %211, %212 : vector<2x32xf32>
    %214 = arith.addf %210, %213 : vector<2x32xf32>
    %215 = vector.extract_strided_slice %207 {offsets = [0, 96], sizes = [2, 32], strides = [1, 1]} : vector<2x128xf32> to vector<2x32xf32>
    %216 = math.tanh %214 : vector<2x32xf32>
    %217 = arith.mulf %215, %216 : vector<2x32xf32>
    %218 = arith.index_cast %165 : i32 to index
    %c0_80 = arith.constant 0 : index
    %c0_81 = arith.constant 0 : index
    %219 = vector.load %arg15[%218, %c0_80, %c0_81] : memref<8x2x32xf32, #tpu.memory_space<vmem>>, vector<1x2x32xf32>
    %220 = vector.shape_cast %219 : vector<1x2x32xf32> to vector<2x32xf32>
    %221 = arith.mulf %220, %217 : vector<2x32xf32>
    %222 = arith.index_cast %165 : i32 to index
    %c0_82 = arith.constant 0 : index
    %c0_83 = arith.constant 0 : index
    %223 = vector.load %arg14[%222, %c0_82, %c0_83] : memref<8x2x32xf32, #tpu.memory_space<vmem>>, vector<1x2x32xf32>
    %224 = vector.shape_cast %223 : vector<1x2x32xf32> to vector<2x32xf32>
    %225 = vector.shape_cast %221 : vector<2x32xf32> to vector<1x2x32xf32>
    tpu.vector_store %arg14[%222, %c0_82, %c0_83], %225 {strides = array<i32>} : memref<8x2x32xf32, #tpu.memory_space<vmem>>, vector<1x2x32xf32>,
    %226 = arith.mulf %220, %217 : vector<2x32xf32>
    %cst_84 = arith.constant 1.000000e+00 : f32
    %227 = vector.broadcast %cst_84 : f32 to vector<2x32xf32>
    %228 = arith.subf %227, %220 : vector<2x32xf32>
    %229 = arith.mulf %228, %159 : vector<2x32xf32>
    %230 = arith.addf %226, %229 : vector<2x32xf32>
    %231 = arith.mulf %220, %214 : vector<2x32xf32>
    %cst_85 = arith.constant 1.000000e+00 : f32
    %232 = vector.broadcast %cst_85 : f32 to vector<2x32xf32>
    %233 = arith.subf %232, %220 : vector<2x32xf32>
    %234 = arith.mulf %233, %164 : vector<2x32xf32>
    %235 = arith.addf %231, %234 : vector<2x32xf32>
    %c3_i32 = arith.constant 3 : i32
    %c7_i32_86 = arith.constant 7 : i32
    %236 = arith.subi %c7_i32_86, %c3_i32 : i32
    %237 = arith.index_cast %c3_i32 : i32 to index
    %c0_87 = arith.constant 0 : index
    %c0_88 = arith.constant 0 : index
    %238 = vector.load %arg12[%237, %c0_87, %c0_88] : memref<8x2x256xf32, #tpu.memory_space<vmem>>, vector<1x2x256xf32>
    %239 = vector.shape_cast %238 : vector<1x2x256xf32> to vector<2x256xf32>
    %240 = vector.extract_strided_slice %239 {offsets = [0, 0], sizes = [2, 128], strides = [1, 1]} : vector<2x256xf32> to vector<2x128xf32>
    %c0_89 = arith.constant 0 : index
    %c0_90 = arith.constant 0 : index
    %241 = vector.load %arg5[%c0_89, %c0_90] : memref<32x128xf32, #tpu.memory_space<vmem>>, vector<32x128xf32>
    %cst_91 = arith.constant dense<0.000000e+00> : vector<2x128xf32>
    %242 = tpu.matmul %187, %241, %cst_91 {dimension_numbers = #tpu.dot_dimension_numbers<[1], [0], [0], [1], [0, 0, 1, 1], [], []>} : vector<2x32xf32>, vector<32x128xf32>, vector<2x128xf32> -> vector<2x128xf32>
    %243 = arith.addf %240, %242 : vector<2x128xf32>
    %244 = arith.negf %243 : vector<2x128xf32>
    %245 = math.exp %244 : vector<2x128xf32>
    %cst_92 = arith.constant 1.000000e+00 : f32
    %246 = vector.broadcast %cst_92 : f32 to vector<2x128xf32>
    %247 = arith.addf %246, %245 : vector<2x128xf32>
    %248 = arith.divf %246, %247 : vector<2x128xf32>
    %249 = math.tanh %243 : vector<2x128xf32>
    %250 = vector.extract_strided_slice %248 {offsets = [0, 32], sizes = [2, 32], strides = [1, 1]} : vector<2x128xf32> to vector<2x32xf32>
    %251 = arith.mulf %250, %184 : vector<2x32xf32>
    %252 = vector.extract_strided_slice %248 {offsets = [0, 0], sizes = [2, 32], strides = [1, 1]} : vector<2x128xf32> to vector<2x32xf32>
    %253 = vector.extract_strided_slice %249 {offsets = [0, 64], sizes = [2, 32], strides = [1, 1]} : vector<2x128xf32> to vector<2x32xf32>
    %254 = arith.mulf %252, %253 : vector<2x32xf32>
    %255 = arith.addf %251, %254 : vector<2x32xf32>
    %256 = vector.extract_strided_slice %248 {offsets = [0, 96], sizes = [2, 32], strides = [1, 1]} : vector<2x128xf32> to vector<2x32xf32>
    %257 = math.tanh %255 : vector<2x32xf32>
    %258 = arith.mulf %256, %257 : vector<2x32xf32>
    %259 = arith.index_cast %c3_i32 : i32 to index
    %c0_93 = arith.constant 0 : index
    %c0_94 = arith.constant 0 : index
    %260 = vector.load %arg15[%259, %c0_93, %c0_94] : memref<8x2x32xf32, #tpu.memory_space<vmem>>, vector<1x2x32xf32>
    %261 = vector.shape_cast %260 : vector<1x2x32xf32> to vector<2x32xf32>
    %262 = arith.mulf %261, %258 : vector<2x32xf32>
    %263 = arith.index_cast %c3_i32 : i32 to index
    %c0_95 = arith.constant 0 : index
    %c0_96 = arith.constant 0 : index
    %264 = vector.load %arg13[%263, %c0_95, %c0_96] : memref<8x2x32xf32, #tpu.memory_space<vmem>>, vector<1x2x32xf32>
    %265 = vector.shape_cast %264 : vector<1x2x32xf32> to vector<2x32xf32>
    %266 = vector.shape_cast %262 : vector<2x32xf32> to vector<1x2x32xf32>
    tpu.vector_store %arg13[%263, %c0_95, %c0_96], %266 {strides = array<i32>} : memref<8x2x32xf32, #tpu.memory_space<vmem>>, vector<1x2x32xf32>,
    %267 = arith.index_cast %236 : i32 to index
    %c0_97 = arith.constant 0 : index
    %c0_98 = arith.constant 0 : index
    %268 = vector.load %arg12[%267, %c0_97, %c0_98] : memref<8x2x256xf32, #tpu.memory_space<vmem>>, vector<1x2x256xf32>
    %269 = vector.shape_cast %268 : vector<1x2x256xf32> to vector<2x256xf32>
    %270 = vector.extract_strided_slice %269 {offsets = [0, 128], sizes = [2, 128], strides = [1, 1]} : vector<2x256xf32> to vector<2x128xf32>
    %c0_99 = arith.constant 0 : index
    %c0_100 = arith.constant 0 : index
    %271 = vector.load %arg6[%c0_99, %c0_100] : memref<32x128xf32, #tpu.memory_space<vmem>>, vector<32x128xf32>
    %cst_101 = arith.constant dense<0.000000e+00> : vector<2x128xf32>
    %272 = tpu.matmul %230, %271, %cst_101 {dimension_numbers = #tpu.dot_dimension_numbers<[1], [0], [0], [1], [0, 0, 1, 1], [], []>} : vector<2x32xf32>, vector<32x128xf32>, vector<2x128xf32> -> vector<2x128xf32>
    %273 = arith.addf %270, %272 : vector<2x128xf32>
    %274 = arith.negf %273 : vector<2x128xf32>
    %275 = math.exp %274 : vector<2x128xf32>
    %cst_102 = arith.constant 1.000000e+00 : f32
    %276 = vector.broadcast %cst_102 : f32 to vector<2x128xf32>
    %277 = arith.addf %276, %275 : vector<2x128xf32>
    %278 = arith.divf %276, %277 : vector<2x128xf32>
    %279 = math.tanh %273 : vector<2x128xf32>
    %280 = vector.extract_strided_slice %278 {offsets = [0, 32], sizes = [2, 32], strides = [1, 1]} : vector<2x128xf32> to vector<2x32xf32>
    %281 = arith.mulf %280, %235 : vector<2x32xf32>
    %282 = vector.extract_strided_slice %278 {offsets = [0, 0], sizes = [2, 32], strides = [1, 1]} : vector<2x128xf32> to vector<2x32xf32>
    %283 = vector.extract_strided_slice %279 {offsets = [0, 64], sizes = [2, 32], strides = [1, 1]} : vector<2x128xf32> to vector<2x32xf32>
    %284 = arith.mulf %282, %283 : vector<2x32xf32>
    %285 = arith.addf %281, %284 : vector<2x32xf32>
    %286 = vector.extract_strided_slice %278 {offsets = [0, 96], sizes = [2, 32], strides = [1, 1]} : vector<2x128xf32> to vector<2x32xf32>
    %287 = math.tanh %285 : vector<2x32xf32>
    %288 = arith.mulf %286, %287 : vector<2x32xf32>
    %289 = arith.index_cast %236 : i32 to index
    %c0_103 = arith.constant 0 : index
    %c0_104 = arith.constant 0 : index
    %290 = vector.load %arg15[%289, %c0_103, %c0_104] : memref<8x2x32xf32, #tpu.memory_space<vmem>>, vector<1x2x32xf32>
    %291 = vector.shape_cast %290 : vector<1x2x32xf32> to vector<2x32xf32>
    %292 = arith.mulf %291, %288 : vector<2x32xf32>
    %293 = arith.index_cast %236 : i32 to index
    %c0_105 = arith.constant 0 : index
    %c0_106 = arith.constant 0 : index
    %294 = vector.load %arg14[%293, %c0_105, %c0_106] : memref<8x2x32xf32, #tpu.memory_space<vmem>>, vector<1x2x32xf32>
    %295 = vector.shape_cast %294 : vector<1x2x32xf32> to vector<2x32xf32>
    %296 = vector.shape_cast %292 : vector<2x32xf32> to vector<1x2x32xf32>
    tpu.vector_store %arg14[%293, %c0_105, %c0_106], %296 {strides = array<i32>} : memref<8x2x32xf32, #tpu.memory_space<vmem>>, vector<1x2x32xf32>,
    %297 = arith.mulf %291, %288 : vector<2x32xf32>
    %cst_107 = arith.constant 1.000000e+00 : f32
    %298 = vector.broadcast %cst_107 : f32 to vector<2x32xf32>
    %299 = arith.subf %298, %291 : vector<2x32xf32>
    %300 = arith.mulf %299, %230 : vector<2x32xf32>
    %301 = arith.addf %297, %300 : vector<2x32xf32>
    %302 = arith.mulf %291, %285 : vector<2x32xf32>
    %cst_108 = arith.constant 1.000000e+00 : f32
    %303 = vector.broadcast %cst_108 : f32 to vector<2x32xf32>
    %304 = arith.subf %303, %291 : vector<2x32xf32>
    %305 = arith.mulf %304, %235 : vector<2x32xf32>
    %306 = arith.addf %302, %305 : vector<2x32xf32>
    %c4_i32 = arith.constant 4 : i32
    %c7_i32_109 = arith.constant 7 : i32
    %307 = arith.subi %c7_i32_109, %c4_i32 : i32
    %308 = arith.index_cast %c4_i32 : i32 to index
    %c0_110 = arith.constant 0 : index
    %c0_111 = arith.constant 0 : index
    %309 = vector.load %arg12[%308, %c0_110, %c0_111] : memref<8x2x256xf32, #tpu.memory_space<vmem>>, vector<1x2x256xf32>
    %310 = vector.shape_cast %309 : vector<1x2x256xf32> to vector<2x256xf32>
    %311 = vector.extract_strided_slice %310 {offsets = [0, 0], sizes = [2, 128], strides = [1, 1]} : vector<2x256xf32> to vector<2x128xf32>
    %c0_112 = arith.constant 0 : index
    %c0_113 = arith.constant 0 : index
    %312 = vector.load %arg5[%c0_112, %c0_113] : memref<32x128xf32, #tpu.memory_space<vmem>>, vector<32x128xf32>
    %cst_114 = arith.constant dense<0.000000e+00> : vector<2x128xf32>
    %313 = tpu.matmul %258, %312, %cst_114 {dimension_numbers = #tpu.dot_dimension_numbers<[1], [0], [0], [1], [0, 0, 1, 1], [], []>} : vector<2x32xf32>, vector<32x128xf32>, vector<2x128xf32> -> vector<2x128xf32>
    %314 = arith.addf %311, %313 : vector<2x128xf32>
    %315 = arith.negf %314 : vector<2x128xf32>
    %316 = math.exp %315 : vector<2x128xf32>
    %cst_115 = arith.constant 1.000000e+00 : f32
    %317 = vector.broadcast %cst_115 : f32 to vector<2x128xf32>
    %318 = arith.addf %317, %316 : vector<2x128xf32>
    %319 = arith.divf %317, %318 : vector<2x128xf32>
    %320 = math.tanh %314 : vector<2x128xf32>
    %321 = vector.extract_strided_slice %319 {offsets = [0, 32], sizes = [2, 32], strides = [1, 1]} : vector<2x128xf32> to vector<2x32xf32>
    %322 = arith.mulf %321, %255 : vector<2x32xf32>
    %323 = vector.extract_strided_slice %319 {offsets = [0, 0], sizes = [2, 32], strides = [1, 1]} : vector<2x128xf32> to vector<2x32xf32>
    %324 = vector.extract_strided_slice %320 {offsets = [0, 64], sizes = [2, 32], strides = [1, 1]} : vector<2x128xf32> to vector<2x32xf32>
    %325 = arith.mulf %323, %324 : vector<2x32xf32>
    %326 = arith.addf %322, %325 : vector<2x32xf32>
    %327 = vector.extract_strided_slice %319 {offsets = [0, 96], sizes = [2, 32], strides = [1, 1]} : vector<2x128xf32> to vector<2x32xf32>
    %328 = math.tanh %326 : vector<2x32xf32>
    %329 = arith.mulf %327, %328 : vector<2x32xf32>
    %330 = arith.index_cast %c4_i32 : i32 to index
    %c0_116 = arith.constant 0 : index
    %c0_117 = arith.constant 0 : index
    %331 = vector.load %arg15[%330, %c0_116, %c0_117] : memref<8x2x32xf32, #tpu.memory_space<vmem>>, vector<1x2x32xf32>
    %332 = vector.shape_cast %331 : vector<1x2x32xf32> to vector<2x32xf32>
    %333 = arith.mulf %332, %329 : vector<2x32xf32>
    %334 = arith.index_cast %c4_i32 : i32 to index
    %c0_118 = arith.constant 0 : index
    %c0_119 = arith.constant 0 : index
    %335 = vector.load %arg13[%334, %c0_118, %c0_119] : memref<8x2x32xf32, #tpu.memory_space<vmem>>, vector<1x2x32xf32>
    %336 = vector.shape_cast %335 : vector<1x2x32xf32> to vector<2x32xf32>
    %337 = vector.shape_cast %333 : vector<2x32xf32> to vector<1x2x32xf32>
    tpu.vector_store %arg13[%334, %c0_118, %c0_119], %337 {strides = array<i32>} : memref<8x2x32xf32, #tpu.memory_space<vmem>>, vector<1x2x32xf32>,
    %338 = arith.index_cast %307 : i32 to index
    %c0_120 = arith.constant 0 : index
    %c0_121 = arith.constant 0 : index
    %339 = vector.load %arg12[%338, %c0_120, %c0_121] : memref<8x2x256xf32, #tpu.memory_space<vmem>>, vector<1x2x256xf32>
    %340 = vector.shape_cast %339 : vector<1x2x256xf32> to vector<2x256xf32>
    %341 = vector.extract_strided_slice %340 {offsets = [0, 128], sizes = [2, 128], strides = [1, 1]} : vector<2x256xf32> to vector<2x128xf32>
    %c0_122 = arith.constant 0 : index
    %c0_123 = arith.constant 0 : index
    %342 = vector.load %arg6[%c0_122, %c0_123] : memref<32x128xf32, #tpu.memory_space<vmem>>, vector<32x128xf32>
    %cst_124 = arith.constant dense<0.000000e+00> : vector<2x128xf32>
    %343 = tpu.matmul %301, %342, %cst_124 {dimension_numbers = #tpu.dot_dimension_numbers<[1], [0], [0], [1], [0, 0, 1, 1], [], []>} : vector<2x32xf32>, vector<32x128xf32>, vector<2x128xf32> -> vector<2x128xf32>
    %344 = arith.addf %341, %343 : vector<2x128xf32>
    %345 = arith.negf %344 : vector<2x128xf32>
    %346 = math.exp %345 : vector<2x128xf32>
    %cst_125 = arith.constant 1.000000e+00 : f32
    %347 = vector.broadcast %cst_125 : f32 to vector<2x128xf32>
    %348 = arith.addf %347, %346 : vector<2x128xf32>
    %349 = arith.divf %347, %348 : vector<2x128xf32>
    %350 = math.tanh %344 : vector<2x128xf32>
    %351 = vector.extract_strided_slice %349 {offsets = [0, 32], sizes = [2, 32], strides = [1, 1]} : vector<2x128xf32> to vector<2x32xf32>
    %352 = arith.mulf %351, %306 : vector<2x32xf32>
    %353 = vector.extract_strided_slice %349 {offsets = [0, 0], sizes = [2, 32], strides = [1, 1]} : vector<2x128xf32> to vector<2x32xf32>
    %354 = vector.extract_strided_slice %350 {offsets = [0, 64], sizes = [2, 32], strides = [1, 1]} : vector<2x128xf32> to vector<2x32xf32>
    %355 = arith.mulf %353, %354 : vector<2x32xf32>
    %356 = arith.addf %352, %355 : vector<2x32xf32>
    %357 = vector.extract_strided_slice %349 {offsets = [0, 96], sizes = [2, 32], strides = [1, 1]} : vector<2x128xf32> to vector<2x32xf32>
    %358 = math.tanh %356 : vector<2x32xf32>
    %359 = arith.mulf %357, %358 : vector<2x32xf32>
    %360 = arith.index_cast %307 : i32 to index
    %c0_126 = arith.constant 0 : index
    %c0_127 = arith.constant 0 : index
    %361 = vector.load %arg15[%360, %c0_126, %c0_127] : memref<8x2x32xf32, #tpu.memory_space<vmem>>, vector<1x2x32xf32>
    %362 = vector.shape_cast %361 : vector<1x2x32xf32> to vector<2x32xf32>
    %363 = arith.mulf %362, %359 : vector<2x32xf32>
    %364 = arith.index_cast %307 : i32 to index
    %c0_128 = arith.constant 0 : index
    %c0_129 = arith.constant 0 : index
    %365 = vector.load %arg14[%364, %c0_128, %c0_129] : memref<8x2x32xf32, #tpu.memory_space<vmem>>, vector<1x2x32xf32>
    %366 = vector.shape_cast %365 : vector<1x2x32xf32> to vector<2x32xf32>
    %367 = vector.shape_cast %363 : vector<2x32xf32> to vector<1x2x32xf32>
    tpu.vector_store %arg14[%364, %c0_128, %c0_129], %367 {strides = array<i32>} : memref<8x2x32xf32, #tpu.memory_space<vmem>>, vector<1x2x32xf32>,
    %368 = arith.mulf %362, %359 : vector<2x32xf32>
    %cst_130 = arith.constant 1.000000e+00 : f32
    %369 = vector.broadcast %cst_130 : f32 to vector<2x32xf32>
    %370 = arith.subf %369, %362 : vector<2x32xf32>
    %371 = arith.mulf %370, %301 : vector<2x32xf32>
    %372 = arith.addf %368, %371 : vector<2x32xf32>
    %373 = arith.mulf %362, %356 : vector<2x32xf32>
    %cst_131 = arith.constant 1.000000e+00 : f32
    %374 = vector.broadcast %cst_131 : f32 to vector<2x32xf32>
    %375 = arith.subf %374, %362 : vector<2x32xf32>
    %376 = arith.mulf %375, %306 : vector<2x32xf32>
    %377 = arith.addf %373, %376 : vector<2x32xf32>
    %c5_i32 = arith.constant 5 : i32
    %c7_i32_132 = arith.constant 7 : i32
    %378 = arith.subi %c7_i32_132, %c5_i32 : i32
    %379 = arith.index_cast %c5_i32 : i32 to index
    %c0_133 = arith.constant 0 : index
    %c0_134 = arith.constant 0 : index
    %380 = vector.load %arg12[%379, %c0_133, %c0_134] : memref<8x2x256xf32, #tpu.memory_space<vmem>>, vector<1x2x256xf32>
    %381 = vector.shape_cast %380 : vector<1x2x256xf32> to vector<2x256xf32>
    %382 = vector.extract_strided_slice %381 {offsets = [0, 0], sizes = [2, 128], strides = [1, 1]} : vector<2x256xf32> to vector<2x128xf32>
    %c0_135 = arith.constant 0 : index
    %c0_136 = arith.constant 0 : index
    %383 = vector.load %arg5[%c0_135, %c0_136] : memref<32x128xf32, #tpu.memory_space<vmem>>, vector<32x128xf32>
    %cst_137 = arith.constant dense<0.000000e+00> : vector<2x128xf32>
    %384 = tpu.matmul %329, %383, %cst_137 {dimension_numbers = #tpu.dot_dimension_numbers<[1], [0], [0], [1], [0, 0, 1, 1], [], []>} : vector<2x32xf32>, vector<32x128xf32>, vector<2x128xf32> -> vector<2x128xf32>
    %385 = arith.addf %382, %384 : vector<2x128xf32>
    %386 = arith.negf %385 : vector<2x128xf32>
    %387 = math.exp %386 : vector<2x128xf32>
    %cst_138 = arith.constant 1.000000e+00 : f32
    %388 = vector.broadcast %cst_138 : f32 to vector<2x128xf32>
    %389 = arith.addf %388, %387 : vector<2x128xf32>
    %390 = arith.divf %388, %389 : vector<2x128xf32>
    %391 = math.tanh %385 : vector<2x128xf32>
    %392 = vector.extract_strided_slice %390 {offsets = [0, 32], sizes = [2, 32], strides = [1, 1]} : vector<2x128xf32> to vector<2x32xf32>
    %393 = arith.mulf %392, %326 : vector<2x32xf32>
    %394 = vector.extract_strided_slice %390 {offsets = [0, 0], sizes = [2, 32], strides = [1, 1]} : vector<2x128xf32> to vector<2x32xf32>
    %395 = vector.extract_strided_slice %391 {offsets = [0, 64], sizes = [2, 32], strides = [1, 1]} : vector<2x128xf32> to vector<2x32xf32>
    %396 = arith.mulf %394, %395 : vector<2x32xf32>
    %397 = arith.addf %393, %396 : vector<2x32xf32>
    %398 = vector.extract_strided_slice %390 {offsets = [0, 96], sizes = [2, 32], strides = [1, 1]} : vector<2x128xf32> to vector<2x32xf32>
    %399 = math.tanh %397 : vector<2x32xf32>
    %400 = arith.mulf %398, %399 : vector<2x32xf32>
    %401 = arith.index_cast %c5_i32 : i32 to index
    %c0_139 = arith.constant 0 : index
    %c0_140 = arith.constant 0 : index
    %402 = vector.load %arg15[%401, %c0_139, %c0_140] : memref<8x2x32xf32, #tpu.memory_space<vmem>>, vector<1x2x32xf32>
    %403 = vector.shape_cast %402 : vector<1x2x32xf32> to vector<2x32xf32>
    %404 = arith.mulf %403, %400 : vector<2x32xf32>
    %405 = arith.index_cast %c5_i32 : i32 to index
    %c0_141 = arith.constant 0 : index
    %c0_142 = arith.constant 0 : index
    %406 = vector.load %arg13[%405, %c0_141, %c0_142] : memref<8x2x32xf32, #tpu.memory_space<vmem>>, vector<1x2x32xf32>
    %407 = vector.shape_cast %406 : vector<1x2x32xf32> to vector<2x32xf32>
    %408 = vector.shape_cast %404 : vector<2x32xf32> to vector<1x2x32xf32>
    tpu.vector_store %arg13[%405, %c0_141, %c0_142], %408 {strides = array<i32>} : memref<8x2x32xf32, #tpu.memory_space<vmem>>, vector<1x2x32xf32>,
    %409 = arith.index_cast %378 : i32 to index
    %c0_143 = arith.constant 0 : index
    %c0_144 = arith.constant 0 : index
    %410 = vector.load %arg12[%409, %c0_143, %c0_144] : memref<8x2x256xf32, #tpu.memory_space<vmem>>, vector<1x2x256xf32>
    %411 = vector.shape_cast %410 : vector<1x2x256xf32> to vector<2x256xf32>
    %412 = vector.extract_strided_slice %411 {offsets = [0, 128], sizes = [2, 128], strides = [1, 1]} : vector<2x256xf32> to vector<2x128xf32>
    %c0_145 = arith.constant 0 : index
    %c0_146 = arith.constant 0 : index
    %413 = vector.load %arg6[%c0_145, %c0_146] : memref<32x128xf32, #tpu.memory_space<vmem>>, vector<32x128xf32>
    %cst_147 = arith.constant dense<0.000000e+00> : vector<2x128xf32>
    %414 = tpu.matmul %372, %413, %cst_147 {dimension_numbers = #tpu.dot_dimension_numbers<[1], [0], [0], [1], [0, 0, 1, 1], [], []>} : vector<2x32xf32>, vector<32x128xf32>, vector<2x128xf32> -> vector<2x128xf32>
    %415 = arith.addf %412, %414 : vector<2x128xf32>
    %416 = arith.negf %415 : vector<2x128xf32>
    %417 = math.exp %416 : vector<2x128xf32>
    %cst_148 = arith.constant 1.000000e+00 : f32
    %418 = vector.broadcast %cst_148 : f32 to vector<2x128xf32>
    %419 = arith.addf %418, %417 : vector<2x128xf32>
    %420 = arith.divf %418, %419 : vector<2x128xf32>
    %421 = math.tanh %415 : vector<2x128xf32>
    %422 = vector.extract_strided_slice %420 {offsets = [0, 32], sizes = [2, 32], strides = [1, 1]} : vector<2x128xf32> to vector<2x32xf32>
    %423 = arith.mulf %422, %377 : vector<2x32xf32>
    %424 = vector.extract_strided_slice %420 {offsets = [0, 0], sizes = [2, 32], strides = [1, 1]} : vector<2x128xf32> to vector<2x32xf32>
    %425 = vector.extract_strided_slice %421 {offsets = [0, 64], sizes = [2, 32], strides = [1, 1]} : vector<2x128xf32> to vector<2x32xf32>
    %426 = arith.mulf %424, %425 : vector<2x32xf32>
    %427 = arith.addf %423, %426 : vector<2x32xf32>
    %428 = vector.extract_strided_slice %420 {offsets = [0, 96], sizes = [2, 32], strides = [1, 1]} : vector<2x128xf32> to vector<2x32xf32>
    %429 = math.tanh %427 : vector<2x32xf32>
    %430 = arith.mulf %428, %429 : vector<2x32xf32>
    %431 = arith.index_cast %378 : i32 to index
    %c0_149 = arith.constant 0 : index
    %c0_150 = arith.constant 0 : index
    %432 = vector.load %arg15[%431, %c0_149, %c0_150] : memref<8x2x32xf32, #tpu.memory_space<vmem>>, vector<1x2x32xf32>
    %433 = vector.shape_cast %432 : vector<1x2x32xf32> to vector<2x32xf32>
    %434 = arith.mulf %433, %430 : vector<2x32xf32>
    %435 = arith.index_cast %378 : i32 to index
    %c0_151 = arith.constant 0 : index
    %c0_152 = arith.constant 0 : index
    %436 = vector.load %arg14[%435, %c0_151, %c0_152] : memref<8x2x32xf32, #tpu.memory_space<vmem>>, vector<1x2x32xf32>
    %437 = vector.shape_cast %436 : vector<1x2x32xf32> to vector<2x32xf32>
    %438 = vector.shape_cast %434 : vector<2x32xf32> to vector<1x2x32xf32>
    tpu.vector_store %arg14[%435, %c0_151, %c0_152], %438 {strides = array<i32>} : memref<8x2x32xf32, #tpu.memory_space<vmem>>, vector<1x2x32xf32>,
    %439 = arith.mulf %433, %430 : vector<2x32xf32>
    %cst_153 = arith.constant 1.000000e+00 : f32
    %440 = vector.broadcast %cst_153 : f32 to vector<2x32xf32>
    %441 = arith.subf %440, %433 : vector<2x32xf32>
    %442 = arith.mulf %441, %372 : vector<2x32xf32>
    %443 = arith.addf %439, %442 : vector<2x32xf32>
    %444 = arith.mulf %433, %427 : vector<2x32xf32>
    %cst_154 = arith.constant 1.000000e+00 : f32
    %445 = vector.broadcast %cst_154 : f32 to vector<2x32xf32>
    %446 = arith.subf %445, %433 : vector<2x32xf32>
    %447 = arith.mulf %446, %377 : vector<2x32xf32>
    %448 = arith.addf %444, %447 : vector<2x32xf32>
    %c6_i32 = arith.constant 6 : i32
    %c7_i32_155 = arith.constant 7 : i32
    %449 = arith.subi %c7_i32_155, %c6_i32 : i32
    %450 = arith.index_cast %c6_i32 : i32 to index
    %c0_156 = arith.constant 0 : index
    %c0_157 = arith.constant 0 : index
    %451 = vector.load %arg12[%450, %c0_156, %c0_157] : memref<8x2x256xf32, #tpu.memory_space<vmem>>, vector<1x2x256xf32>
    %452 = vector.shape_cast %451 : vector<1x2x256xf32> to vector<2x256xf32>
    %453 = vector.extract_strided_slice %452 {offsets = [0, 0], sizes = [2, 128], strides = [1, 1]} : vector<2x256xf32> to vector<2x128xf32>
    %c0_158 = arith.constant 0 : index
    %c0_159 = arith.constant 0 : index
    %454 = vector.load %arg5[%c0_158, %c0_159] : memref<32x128xf32, #tpu.memory_space<vmem>>, vector<32x128xf32>
    %cst_160 = arith.constant dense<0.000000e+00> : vector<2x128xf32>
    %455 = tpu.matmul %400, %454, %cst_160 {dimension_numbers = #tpu.dot_dimension_numbers<[1], [0], [0], [1], [0, 0, 1, 1], [], []>} : vector<2x32xf32>, vector<32x128xf32>, vector<2x128xf32> -> vector<2x128xf32>
    %456 = arith.addf %453, %455 : vector<2x128xf32>
    %457 = arith.negf %456 : vector<2x128xf32>
    %458 = math.exp %457 : vector<2x128xf32>
    %cst_161 = arith.constant 1.000000e+00 : f32
    %459 = vector.broadcast %cst_161 : f32 to vector<2x128xf32>
    %460 = arith.addf %459, %458 : vector<2x128xf32>
    %461 = arith.divf %459, %460 : vector<2x128xf32>
    %462 = math.tanh %456 : vector<2x128xf32>
    %463 = vector.extract_strided_slice %461 {offsets = [0, 32], sizes = [2, 32], strides = [1, 1]} : vector<2x128xf32> to vector<2x32xf32>
    %464 = arith.mulf %463, %397 : vector<2x32xf32>
    %465 = vector.extract_strided_slice %461 {offsets = [0, 0], sizes = [2, 32], strides = [1, 1]} : vector<2x128xf32> to vector<2x32xf32>
    %466 = vector.extract_strided_slice %462 {offsets = [0, 64], sizes = [2, 32], strides = [1, 1]} : vector<2x128xf32> to vector<2x32xf32>
    %467 = arith.mulf %465, %466 : vector<2x32xf32>
    %468 = arith.addf %464, %467 : vector<2x32xf32>
    %469 = vector.extract_strided_slice %461 {offsets = [0, 96], sizes = [2, 32], strides = [1, 1]} : vector<2x128xf32> to vector<2x32xf32>
    %470 = math.tanh %468 : vector<2x32xf32>
    %471 = arith.mulf %469, %470 : vector<2x32xf32>
    %472 = arith.index_cast %c6_i32 : i32 to index
    %c0_162 = arith.constant 0 : index
    %c0_163 = arith.constant 0 : index
    %473 = vector.load %arg15[%472, %c0_162, %c0_163] : memref<8x2x32xf32, #tpu.memory_space<vmem>>, vector<1x2x32xf32>
    %474 = vector.shape_cast %473 : vector<1x2x32xf32> to vector<2x32xf32>
    %475 = arith.mulf %474, %471 : vector<2x32xf32>
    %476 = arith.index_cast %c6_i32 : i32 to index
    %c0_164 = arith.constant 0 : index
    %c0_165 = arith.constant 0 : index
    %477 = vector.load %arg13[%476, %c0_164, %c0_165] : memref<8x2x32xf32, #tpu.memory_space<vmem>>, vector<1x2x32xf32>
    %478 = vector.shape_cast %477 : vector<1x2x32xf32> to vector<2x32xf32>
    %479 = vector.shape_cast %475 : vector<2x32xf32> to vector<1x2x32xf32>
    tpu.vector_store %arg13[%476, %c0_164, %c0_165], %479 {strides = array<i32>} : memref<8x2x32xf32, #tpu.memory_space<vmem>>, vector<1x2x32xf32>,
    %480 = arith.index_cast %449 : i32 to index
    %c0_166 = arith.constant 0 : index
    %c0_167 = arith.constant 0 : index
    %481 = vector.load %arg12[%480, %c0_166, %c0_167] : memref<8x2x256xf32, #tpu.memory_space<vmem>>, vector<1x2x256xf32>
    %482 = vector.shape_cast %481 : vector<1x2x256xf32> to vector<2x256xf32>
    %483 = vector.extract_strided_slice %482 {offsets = [0, 128], sizes = [2, 128], strides = [1, 1]} : vector<2x256xf32> to vector<2x128xf32>
    %c0_168 = arith.constant 0 : index
    %c0_169 = arith.constant 0 : index
    %484 = vector.load %arg6[%c0_168, %c0_169] : memref<32x128xf32, #tpu.memory_space<vmem>>, vector<32x128xf32>
    %cst_170 = arith.constant dense<0.000000e+00> : vector<2x128xf32>
    %485 = tpu.matmul %443, %484, %cst_170 {dimension_numbers = #tpu.dot_dimension_numbers<[1], [0], [0], [1], [0, 0, 1, 1], [], []>} : vector<2x32xf32>, vector<32x128xf32>, vector<2x128xf32> -> vector<2x128xf32>
    %486 = arith.addf %483, %485 : vector<2x128xf32>
    %487 = arith.negf %486 : vector<2x128xf32>
    %488 = math.exp %487 : vector<2x128xf32>
    %cst_171 = arith.constant 1.000000e+00 : f32
    %489 = vector.broadcast %cst_171 : f32 to vector<2x128xf32>
    %490 = arith.addf %489, %488 : vector<2x128xf32>
    %491 = arith.divf %489, %490 : vector<2x128xf32>
    %492 = math.tanh %486 : vector<2x128xf32>
    %493 = vector.extract_strided_slice %491 {offsets = [0, 32], sizes = [2, 32], strides = [1, 1]} : vector<2x128xf32> to vector<2x32xf32>
    %494 = arith.mulf %493, %448 : vector<2x32xf32>
    %495 = vector.extract_strided_slice %491 {offsets = [0, 0], sizes = [2, 32], strides = [1, 1]} : vector<2x128xf32> to vector<2x32xf32>
    %496 = vector.extract_strided_slice %492 {offsets = [0, 64], sizes = [2, 32], strides = [1, 1]} : vector<2x128xf32> to vector<2x32xf32>
    %497 = arith.mulf %495, %496 : vector<2x32xf32>
    %498 = arith.addf %494, %497 : vector<2x32xf32>
    %499 = vector.extract_strided_slice %491 {offsets = [0, 96], sizes = [2, 32], strides = [1, 1]} : vector<2x128xf32> to vector<2x32xf32>
    %500 = math.tanh %498 : vector<2x32xf32>
    %501 = arith.mulf %499, %500 : vector<2x32xf32>
    %502 = arith.index_cast %449 : i32 to index
    %c0_172 = arith.constant 0 : index
    %c0_173 = arith.constant 0 : index
    %503 = vector.load %arg15[%502, %c0_172, %c0_173] : memref<8x2x32xf32, #tpu.memory_space<vmem>>, vector<1x2x32xf32>
    %504 = vector.shape_cast %503 : vector<1x2x32xf32> to vector<2x32xf32>
    %505 = arith.mulf %504, %501 : vector<2x32xf32>
    %506 = arith.index_cast %449 : i32 to index
    %c0_174 = arith.constant 0 : index
    %c0_175 = arith.constant 0 : index
    %507 = vector.load %arg14[%506, %c0_174, %c0_175] : memref<8x2x32xf32, #tpu.memory_space<vmem>>, vector<1x2x32xf32>
    %508 = vector.shape_cast %507 : vector<1x2x32xf32> to vector<2x32xf32>
    %509 = vector.shape_cast %505 : vector<2x32xf32> to vector<1x2x32xf32>
    tpu.vector_store %arg14[%506, %c0_174, %c0_175], %509 {strides = array<i32>} : memref<8x2x32xf32, #tpu.memory_space<vmem>>, vector<1x2x32xf32>,
    %510 = arith.mulf %504, %501 : vector<2x32xf32>
    %cst_176 = arith.constant 1.000000e+00 : f32
    %511 = vector.broadcast %cst_176 : f32 to vector<2x32xf32>
    %512 = arith.subf %511, %504 : vector<2x32xf32>
    %513 = arith.mulf %512, %443 : vector<2x32xf32>
    %514 = arith.addf %510, %513 : vector<2x32xf32>
    %515 = arith.mulf %504, %498 : vector<2x32xf32>
    %cst_177 = arith.constant 1.000000e+00 : f32
    %516 = vector.broadcast %cst_177 : f32 to vector<2x32xf32>
    %517 = arith.subf %516, %504 : vector<2x32xf32>
    %518 = arith.mulf %517, %448 : vector<2x32xf32>
    %519 = arith.addf %515, %518 : vector<2x32xf32>
    %c7_i32_178 = arith.constant 7 : i32
    %c7_i32_179 = arith.constant 7 : i32
    %520 = arith.subi %c7_i32_179, %c7_i32_178 : i32
    %521 = arith.index_cast %c7_i32_178 : i32 to index
    %c0_180 = arith.constant 0 : index
    %c0_181 = arith.constant 0 : index
    %522 = vector.load %arg12[%521, %c0_180, %c0_181] : memref<8x2x256xf32, #tpu.memory_space<vmem>>, vector<1x2x256xf32>
    %523 = vector.shape_cast %522 : vector<1x2x256xf32> to vector<2x256xf32>
    %524 = vector.extract_strided_slice %523 {offsets = [0, 0], sizes = [2, 128], strides = [1, 1]} : vector<2x256xf32> to vector<2x128xf32>
    %c0_182 = arith.constant 0 : index
    %c0_183 = arith.constant 0 : index
    %525 = vector.load %arg5[%c0_182, %c0_183] : memref<32x128xf32, #tpu.memory_space<vmem>>, vector<32x128xf32>
    %cst_184 = arith.constant dense<0.000000e+00> : vector<2x128xf32>
    %526 = tpu.matmul %471, %525, %cst_184 {dimension_numbers = #tpu.dot_dimension_numbers<[1], [0], [0], [1], [0, 0, 1, 1], [], []>} : vector<2x32xf32>, vector<32x128xf32>, vector<2x128xf32> -> vector<2x128xf32>
    %527 = arith.addf %524, %526 : vector<2x128xf32>
    %528 = arith.negf %527 : vector<2x128xf32>
    %529 = math.exp %528 : vector<2x128xf32>
    %cst_185 = arith.constant 1.000000e+00 : f32
    %530 = vector.broadcast %cst_185 : f32 to vector<2x128xf32>
    %531 = arith.addf %530, %529 : vector<2x128xf32>
    %532 = arith.divf %530, %531 : vector<2x128xf32>
    %533 = math.tanh %527 : vector<2x128xf32>
    %534 = vector.extract_strided_slice %532 {offsets = [0, 32], sizes = [2, 32], strides = [1, 1]} : vector<2x128xf32> to vector<2x32xf32>
    %535 = arith.mulf %534, %468 : vector<2x32xf32>
    %536 = vector.extract_strided_slice %532 {offsets = [0, 0], sizes = [2, 32], strides = [1, 1]} : vector<2x128xf32> to vector<2x32xf32>
    %537 = vector.extract_strided_slice %533 {offsets = [0, 64], sizes = [2, 32], strides = [1, 1]} : vector<2x128xf32> to vector<2x32xf32>
    %538 = arith.mulf %536, %537 : vector<2x32xf32>
    %539 = arith.addf %535, %538 : vector<2x32xf32>
    %540 = vector.extract_strided_slice %532 {offsets = [0, 96], sizes = [2, 32], strides = [1, 1]} : vector<2x128xf32> to vector<2x32xf32>
    %541 = math.tanh %539 : vector<2x32xf32>
    %542 = arith.mulf %540, %541 : vector<2x32xf32>
    %543 = arith.index_cast %c7_i32_178 : i32 to index
    %c0_186 = arith.constant 0 : index
    %c0_187 = arith.constant 0 : index
    %544 = vector.load %arg15[%543, %c0_186, %c0_187] : memref<8x2x32xf32, #tpu.memory_space<vmem>>, vector<1x2x32xf32>
    %545 = vector.shape_cast %544 : vector<1x2x32xf32> to vector<2x32xf32>
    %546 = arith.mulf %545, %542 : vector<2x32xf32>
    %547 = arith.index_cast %c7_i32_178 : i32 to index
    %c0_188 = arith.constant 0 : index
    %c0_189 = arith.constant 0 : index
    %548 = vector.load %arg13[%547, %c0_188, %c0_189] : memref<8x2x32xf32, #tpu.memory_space<vmem>>, vector<1x2x32xf32>
    %549 = vector.shape_cast %548 : vector<1x2x32xf32> to vector<2x32xf32>
    %550 = vector.shape_cast %546 : vector<2x32xf32> to vector<1x2x32xf32>
    tpu.vector_store %arg13[%547, %c0_188, %c0_189], %550 {strides = array<i32>} : memref<8x2x32xf32, #tpu.memory_space<vmem>>, vector<1x2x32xf32>,
    %551 = arith.index_cast %520 : i32 to index
    %c0_190 = arith.constant 0 : index
    %c0_191 = arith.constant 0 : index
    %552 = vector.load %arg12[%551, %c0_190, %c0_191] : memref<8x2x256xf32, #tpu.memory_space<vmem>>, vector<1x2x256xf32>
    %553 = vector.shape_cast %552 : vector<1x2x256xf32> to vector<2x256xf32>
    %554 = vector.extract_strided_slice %553 {offsets = [0, 128], sizes = [2, 128], strides = [1, 1]} : vector<2x256xf32> to vector<2x128xf32>
    %c0_192 = arith.constant 0 : index
    %c0_193 = arith.constant 0 : index
    %555 = vector.load %arg6[%c0_192, %c0_193] : memref<32x128xf32, #tpu.memory_space<vmem>>, vector<32x128xf32>
    %cst_194 = arith.constant dense<0.000000e+00> : vector<2x128xf32>
    %556 = tpu.matmul %514, %555, %cst_194 {dimension_numbers = #tpu.dot_dimension_numbers<[1], [0], [0], [1], [0, 0, 1, 1], [], []>} : vector<2x32xf32>, vector<32x128xf32>, vector<2x128xf32> -> vector<2x128xf32>
    %557 = arith.addf %554, %556 : vector<2x128xf32>
    %558 = arith.negf %557 : vector<2x128xf32>
    %559 = math.exp %558 : vector<2x128xf32>
    %cst_195 = arith.constant 1.000000e+00 : f32
    %560 = vector.broadcast %cst_195 : f32 to vector<2x128xf32>
    %561 = arith.addf %560, %559 : vector<2x128xf32>
    %562 = arith.divf %560, %561 : vector<2x128xf32>
    %563 = math.tanh %557 : vector<2x128xf32>
    %564 = vector.extract_strided_slice %562 {offsets = [0, 32], sizes = [2, 32], strides = [1, 1]} : vector<2x128xf32> to vector<2x32xf32>
    %565 = arith.mulf %564, %519 : vector<2x32xf32>
    %566 = vector.extract_strided_slice %562 {offsets = [0, 0], sizes = [2, 32], strides = [1, 1]} : vector<2x128xf32> to vector<2x32xf32>
    %567 = vector.extract_strided_slice %563 {offsets = [0, 64], sizes = [2, 32], strides = [1, 1]} : vector<2x128xf32> to vector<2x32xf32>
    %568 = arith.mulf %566, %567 : vector<2x32xf32>
    %569 = arith.addf %565, %568 : vector<2x32xf32>
    %570 = vector.extract_strided_slice %562 {offsets = [0, 96], sizes = [2, 32], strides = [1, 1]} : vector<2x128xf32> to vector<2x32xf32>
    %571 = math.tanh %569 : vector<2x32xf32>
    %572 = arith.mulf %570, %571 : vector<2x32xf32>
    %573 = arith.index_cast %520 : i32 to index
    %c0_196 = arith.constant 0 : index
    %c0_197 = arith.constant 0 : index
    %574 = vector.load %arg15[%573, %c0_196, %c0_197] : memref<8x2x32xf32, #tpu.memory_space<vmem>>, vector<1x2x32xf32>
    %575 = vector.shape_cast %574 : vector<1x2x32xf32> to vector<2x32xf32>
    %576 = arith.mulf %575, %572 : vector<2x32xf32>
    %577 = arith.index_cast %520 : i32 to index
    %c0_198 = arith.constant 0 : index
    %c0_199 = arith.constant 0 : index
    %578 = vector.load %arg14[%577, %c0_198, %c0_199] : memref<8x2x32xf32, #tpu.memory_space<vmem>>, vector<1x2x32xf32>
    %579 = vector.shape_cast %578 : vector<1x2x32xf32> to vector<2x32xf32>
    %580 = vector.shape_cast %576 : vector<2x32xf32> to vector<1x2x32xf32>
    tpu.vector_store %arg14[%577, %c0_198, %c0_199], %580 {strides = array<i32>} : memref<8x2x32xf32, #tpu.memory_space<vmem>>, vector<1x2x32xf32>,
    %581 = arith.mulf %575, %572 : vector<2x32xf32>
    %cst_200 = arith.constant 1.000000e+00 : f32
    %582 = vector.broadcast %cst_200 : f32 to vector<2x32xf32>
    %583 = arith.subf %582, %575 : vector<2x32xf32>
    %584 = arith.mulf %583, %514 : vector<2x32xf32>
    %585 = arith.addf %581, %584 : vector<2x32xf32>
    %586 = arith.mulf %575, %569 : vector<2x32xf32>
    %cst_201 = arith.constant 1.000000e+00 : f32
    %587 = vector.broadcast %cst_201 : f32 to vector<2x32xf32>
    %588 = arith.subf %587, %575 : vector<2x32xf32>
    %589 = arith.mulf %588, %519 : vector<2x32xf32>
    %590 = arith.addf %586, %589 : vector<2x32xf32>
    %c8_i32 = arith.constant 8 : i32
    %c0_202 = arith.constant 0 : index
    %c0_203 = arith.constant 0 : index
    %c0_204 = arith.constant 0 : index
    %591 = vector.load %arg13[%c0_202, %c0_203, %c0_204] : memref<8x2x32xf32, #tpu.memory_space<vmem>>, vector<8x2x32xf32>
    %c0_205 = arith.constant 0 : index
    %c0_206 = arith.constant 0 : index
    %c0_207 = arith.constant 0 : index
    %592 = vector.load %arg14[%c0_205, %c0_206, %c0_207] : memref<8x2x32xf32, #tpu.memory_space<vmem>>, vector<8x2x32xf32>
    %593 = tpu.concatenate %591, %592 in 2 : vector<8x2x32xf32>, vector<8x2x32xf32> -> vector<8x2x64xf32>
    %594 = vector.shape_cast %593 : vector<8x2x64xf32> to vector<16x64xf32>
    %c0_208 = arith.constant 0 : index
    %c0_209 = arith.constant 0 : index
    %595 = vector.load %arg7[%c0_208, %c0_209] : memref<64x32xf32, #tpu.memory_space<vmem>>, vector<64x32xf32>
    %cst_210 = arith.constant dense<0.000000e+00> : vector<16x32xf32>
    %596 = tpu.matmul %594, %595, %cst_210 {dimension_numbers = #tpu.dot_dimension_numbers<[1], [0], [0], [1], [0, 0, 1, 1], [], []>} : vector<16x64xf32>, vector<64x32xf32>, vector<16x32xf32> -> vector<16x32xf32>
    %c0_211 = arith.constant 0 : index
    %c0_212 = arith.constant 0 : index
    %597 = vector.load %arg8[%c0_211, %c0_212] : memref<1x32xf32, #tpu.memory_space<vmem>>, vector<1x32xf32>
    %598 = vector.broadcast %597 : vector<1x32xf32> to vector<16x32xf32>
    %599 = arith.addf %596, %598 : vector<16x32xf32>
    %600 = math.tanh %599 : vector<16x32xf32>
    %c0_213 = arith.constant 0 : index
    %c0_214 = arith.constant 0 : index
    %601 = vector.load %arg9[%c0_213, %c0_214] : memref<32x128xf32, #tpu.memory_space<vmem>>, vector<32x128xf32>
    %cst_215 = arith.constant dense<0.000000e+00> : vector<16x128xf32>
    %602 = tpu.matmul %600, %601, %cst_215 {dimension_numbers = #tpu.dot_dimension_numbers<[1], [0], [0], [1], [0, 0, 1, 1], [], []>} : vector<16x32xf32>, vector<32x128xf32>, vector<16x128xf32> -> vector<16x128xf32>
    %c0_216 = arith.constant 0 : index
    %c0_217 = arith.constant 0 : index
    %603 = vector.load %arg10[%c0_216, %c0_217] : memref<1x128xf32, #tpu.memory_space<vmem>>, vector<1x128xf32>
    %604 = vector.broadcast %603 : vector<1x128xf32> to vector<16x128xf32>
    %605 = arith.addf %602, %604 : vector<16x128xf32>
    %606 = vector.shape_cast %605 : vector<16x128xf32> to vector<8x2x128xf32>
    %cst_218 = arith.constant dense<0xFF800000> : vector<2x128xf32>
    %607 = vector.multi_reduction <maximumf>, %606, %cst_218 [0] : vector<8x2x128xf32> to vector<2x128xf32>
    %608 = vector.shape_cast %607 : vector<2x128xf32> to vector<1x2x128xf32>
    %609 = vector.broadcast %608 : vector<1x2x128xf32> to vector<8x2x128xf32>
    %610 = arith.subf %606, %609 : vector<8x2x128xf32>
    %611 = math.exp %610 : vector<8x2x128xf32>
    %cst_219 = arith.constant dense<0.000000e+00> : vector<2x128xf32>
    %612 = vector.multi_reduction <add>, %611, %cst_219 [0] : vector<8x2x128xf32> to vector<2x128xf32>
    %613 = vector.shape_cast %612 : vector<2x128xf32> to vector<1x2x128xf32>
    %614 = vector.broadcast %613 : vector<1x2x128xf32> to vector<8x2x128xf32>
    %615 = arith.divf %611, %614 : vector<8x2x128xf32>
    %616 = tpu.concatenate %593, %593 in 2 : vector<8x2x64xf32>, vector<8x2x64xf32> -> vector<8x2x128xf32>
    %617 = arith.mulf %615, %616 : vector<8x2x128xf32>
    %cst_220 = arith.constant dense<0.000000e+00> : vector<2x128xf32>
    %618 = vector.multi_reduction <add>, %617, %cst_220 [0] : vector<8x2x128xf32> to vector<2x128xf32>
    %619 = arith.mulf %618, %618 : vector<2x128xf32>
    %cst_221 = arith.constant dense<0.000000e+00> : vector<2xf32>
    %620 = vector.multi_reduction <add>, %619, %cst_221 [1] : vector<2x128xf32> to vector<2xf32>
    %621 = vector.shape_cast %620 : vector<2xf32> to vector<2x1xf32>
    %cst_222 = arith.constant 1.000000e-24 : f32
    %622 = vector.broadcast %cst_222 : f32 to vector<2x1xf32>
    %623 = arith.maximumf %621, %622 : vector<2x1xf32>
    %624 = math.rsqrt %623 : vector<2x1xf32>
    %625 = vector.broadcast %624 : vector<2x1xf32> to vector<2x128xf32>
    %626 = arith.mulf %618, %625 : vector<2x128xf32>
    %c0_223 = arith.constant 0 : index
    %c0_224 = arith.constant 0 : index
    %627 = vector.load %arg11[%c0_223, %c0_224] : memref<2x128xf32, #tpu.memory_space<vmem>>, vector<2x128xf32>
    tpu.vector_store %arg11[%c0_223, %c0_224], %626 {strides = array<i32>} : memref<2x128xf32, #tpu.memory_space<vmem>>, vector<2x128xf32>,
    return
  }
}

</mosaic_0001>

<llo_original>
// kernel: text_rnn_encoder_forward.1
$region0: #{text_rnn_encoder_forward.1}
  #allocation0 [shape = 'u32[]', space=smem, size = 0x4, offset = 0x4, fixed_abs, tag = 'smem constant byte address 0x4 - core index']
  #allocation1 [shape = 'u32[144,128]{1,0:T(1,128)}', space=vmem, size = 0x12000, scoped, tag = 'internal scratch']
  #allocation2 [shape = 'f32[8,2,256]{2,1,0:T(2,128)}', space=vmem, size = 0x4000, scoped, tag = 'scratch operand']
  #allocation3 [shape = 'f32[8,2,32]{2,1,0:T(2,128)}', space=vmem, size = 0x2000, scoped, tag = 'scratch operand']
  #allocation4 [shape = 'f32[8,2,32]{2,1,0:T(2,128)}', space=vmem, size = 0x2000, scoped, tag = 'scratch operand']
  #allocation5 [shape = 'f32[8,2,32]{2,1,0:T(2,128)}', space=vmem, size = 0x2000, scoped, tag = 'scratch operand']
  %s0 = inlined_call_operand.vmem [shape: s32[16,1], index: 0, kind: input, shape index: {}]
  %s1 = inlined_call_operand.vmem [shape: s32[1,2,1], index: 1, kind: input, shape index: {}]
  %s2 = inlined_call_operand.vmem [shape: f32[100,20], index: 2, kind: input, shape index: {}]
  %s3 = inlined_call_operand.vmem [shape: f32[20,256], index: 3, kind: input, shape index: {}]
  %s4 = inlined_call_operand.vmem [shape: f32[1,256], index: 4, kind: input, shape index: {}]
  %s5 = inlined_call_operand.vmem [shape: f32[32,128], index: 5, kind: input, shape index: {}]
  %s6 = inlined_call_operand.vmem [shape: f32[32,128], index: 6, kind: input, shape index: {}]
  %s7 = inlined_call_operand.vmem [shape: f32[64,32], index: 7, kind: input, shape index: {}]
  %s8 = inlined_call_operand.vmem [shape: f32[1,32], index: 8, kind: input, shape index: {}]
  %s9 = inlined_call_operand.vmem [shape: f32[32,128], index: 9, kind: input, shape index: {}]
  %s10 = inlined_call_operand.vmem [shape: f32[1,128], index: 10, kind: input, shape index: {}]
  %s11 = inlined_call_operand.hbm [shape: f32[2,128], index: 11, kind: output, shape index: {}]
  %s12 = sld [smem:[#allocation0]]
  $region54: #{text_rnn_encoder_forward.1} parent=0
    _
  %s14 = ssub.s32 1, %s12
  %s15 = scalar_select 0, %s14, %s12
  $region1: #{text_rnn_encoder_forward.1} parent=0
    #allocation6 [shape = 'u8[1024]{0}', space=vmem, size = 0x400, scoped, tag = 'output window, operand 0, single buffered']
    #allocation7 [shape = 's32[1]{0}', space=sflag, size = 0x4, scoped, tag = 'scoped memory for text_rnn_encoder_forward.1']
    %16 = vsyncpa [#allocation7], 0
    // Predicated region
    $region2: #{text_rnn_encoder_forward.1} parent=1 // pred_check
      _
    $region3: #{text_rnn_encoder_forward.1} parent=1 // pred_check_branch
      %18 = sbr.rel (0) target = $region5
    $region4: #{text_rnn_encoder_forward.1} parent=1 // pred_region
      _
    $region5: #{text_rnn_encoder_forward.1} parent=1 // pred_fallthru
      _
    // Predicated region
    $region6: #{text_rnn_encoder_forward.1} parent=1 // pred_check
      _
    $region7: #{text_rnn_encoder_forward.1} parent=1 // pred_check_branch
      %20 = sbr.rel (0) target = $region9
    $region8: #{text_rnn_encoder_forward.1} parent=1 // pred_region
      _
    $region9: #{text_rnn_encoder_forward.1} parent=1 // pred_fallthru
      _
    // Predicated region
    $region10: #{text_rnn_encoder_forward.1} parent=1 // pred_check
      _
    $region11: #{text_rnn_encoder_forward.1} parent=1 // pred_check_branch
      %22 = sbr.rel (0) target = $region13
    $region12: #{text_rnn_encoder_forward.1} parent=1 // pred_region
      _
    $region13: #{text_rnn_encoder_forward.1} parent=1 // pred_fallthru
      _
    // Predicated region
    $region14: #{text_rnn_encoder_forward.1} parent=1 // pred_check
      _
    $region15: #{text_rnn_encoder_forward.1} parent=1 // pred_check_branch
      %24 = sbr.rel (0) target = $region17
    $region16: #{text_rnn_encoder_forward.1} parent=1 // pred_region
      _
    $region17: #{text_rnn_encoder_forward.1} parent=1 // pred_fallthru
      _
    // Predicated region
    $region18: #{text_rnn_encoder_forward.1} parent=1 // pred_check
      _
    $region19: #{text_rnn_encoder_forward.1} parent=1 // pred_check_branch
      %26 = sbr.rel (0) target = $region21
    $region20: #{text_rnn_encoder_forward.1} parent=1 // pred_region
      _
    $region21: #{text_rnn_encoder_forward.1} parent=1 // pred_fallthru
      _
    // Predicated region
    $region22: #{text_rnn_encoder_forward.1} parent=1 // pred_check
      _
    $region23: #{text_rnn_encoder_forward.1} parent=1 // pred_check_branch
      %28 = sbr.rel (0) target = $region25
    $region24: #{text_rnn_encoder_forward.1} parent=1 // pred_region
      _
    $region25: #{text_rnn_encoder_forward.1} parent=1 // pred_fallthru
      _
    // Predicated region
    $region26: #{text_rnn_encoder_forward.1} parent=1 // pred_check
      _
    $region27: #{text_rnn_encoder_forward.1} parent=1 // pred_check_branch
      %30 = sbr.rel (0) target = $region29
    $region28: #{text_rnn_encoder_forward.1} parent=1 // pred_region
      _
    $region29: #{text_rnn_encoder_forward.1} parent=1 // pred_fallthru
      _
    // Predicated region
    $region30: #{text_rnn_encoder_forward.1} parent=1 // pred_check
      _
    $region31: #{text_rnn_encoder_forward.1} parent=1 // pred_check_branch
      %32 = sbr.rel (0) target = $region33
    $region32: #{text_rnn_encoder_forward.1} parent=1 // pred_region
      _
    $region33: #{text_rnn_encoder_forward.1} parent=1 // pred_fallthru
      _
    // Predicated region
    $region34: #{text_rnn_encoder_forward.1} parent=1 // pred_check
      _
    $region35: #{text_rnn_encoder_forward.1} parent=1 // pred_check_branch
      %34 = sbr.rel (0) target = $region37
    $region36: #{text_rnn_encoder_forward.1} parent=1 // pred_region
      _
    $region37: #{text_rnn_encoder_forward.1} parent=1 // pred_fallthru
      _
    // Predicated region
    $region38: #{text_rnn_encoder_forward.1} parent=1 // pred_check
      _
    $region39: #{text_rnn_encoder_forward.1} parent=1 // pred_check_branch
      %36 = sbr.rel (0) target = $region41
    $region40: #{text_rnn_encoder_forward.1} parent=1 // pred_region
      _
    $region41: #{text_rnn_encoder_forward.1} parent=1 // pred_fallthru
      _
    // Predicated region
    $region42: #{text_rnn_encoder_forward.1} parent=1 // pred_check
      _
    $region43: #{text_rnn_encoder_forward.1} parent=1 // pred_check_branch
      %38 = sbr.rel (0) target = $region45
    $region44: #{text_rnn_encoder_forward.1} parent=1 // pred_region
      _
    $region45: #{text_rnn_encoder_forward.1} parent=1 // pred_fallthru
      _
    %v39 = vld [vmem:[%s1] sm:$0x3]
    %40 = vset.pattern.permute.xlu0 0
    %41 = vperm.xlu0 %40, %v39
    %v42 = vpop.permute.xlu0 %41
    %vm43 = vcmp.gt.s32.totalorder %v42, 0
    %vm44 = vcmp.gt.s32.totalorder %v42, 1
    %vm45 = vcmp.gt.s32.totalorder %v42, 2
    %vm46 = vcmp.gt.s32.totalorder %v42, 3
    %vm47 = vcmp.gt.s32.totalorder %v42, 4
    %vm48 = vcmp.gt.s32.totalorder %v42, 5
    %vm49 = vcmp.gt.s32.totalorder %v42, 6
    %vm50 = vcmp.gt.s32.totalorder %v42, 7
    %v51 = vsel %vm43, 1, 0
    %v52 = vsel %vm44, 1, 0
    %v53 = vsel %vm45, 1, 0
    %v54 = vsel %vm46, 1, 0
    %v55 = vsel %vm47, 1, 0
    %v56 = vsel %vm48, 1, 0
    %v57 = vsel %vm49, 1, 0
    %v58 = vsel %vm50, 1, 0
    %v59 = vcvt.s32.f32 %v51
    %v60 = vcvt.s32.f32 %v52
    %v61 = vcvt.s32.f32 %v53
    %v62 = vcvt.s32.f32 %v54
    %v63 = vcvt.s32.f32 %v55
    %v64 = vcvt.s32.f32 %v56
    %v65 = vcvt.s32.f32 %v57
    %v66 = vcvt.s32.f32 %v58
    %vm67 = vcmask 254976
    %68 = vst.msk [vmem:[#allocation5] sm:$0x3] %vm67, %v59
    %69 = vst.msk [vmem:[#allocation5 + $0x2] sm:$0x3] %vm67, %v60
    %70 = vst.msk [vmem:[#allocation5 + $0x4] sm:$0x3] %vm67, %v61
    %71 = vst.msk [vmem:[#allocation5 + $0x6] sm:$0x3] %vm67, %v62
    %72 = vst.msk [vmem:[#allocation5 + $0x8] sm:$0x3] %vm67, %v63
    %73 = vst.msk [vmem:[#allocation5 + $0xa] sm:$0x3] %vm67, %v64
    %74 = vst.msk [vmem:[#allocation5 + $0xc] sm:$0x3] %vm67, %v65
    %75 = vst.msk [vmem:[#allocation5 + $0xe] sm:$0x3] %vm67, %v66
    %v76 = vld [vmem:[%s0] sm:$0xff]
    %v77 = vld [vmem:[%s0 + $0x8] sm:$0xff]
    %v78 = vlaneseq
    %v79 = vand.u32 %v78, 127
    %80 = vset.pattern.permute.xlu0 0
    %81 = vperm.xlu0 %80, %v76
    %v82 = vpop.permute.xlu0 %81
    %83 = vset.pattern.permute.xlu0 0
    %84 = vperm.xlu0 %83, %v77
    %v85 = vpop.permute.xlu0 %84
    %vm86 = vcmp.eq.s32.totalorder %v82, %v79
    %vm87 = vcmp.eq.s32.totalorder %v85, %v79
    %v88 = vsel %vm86, 1, 0
    %v89 = vsel %vm87, 1, 0
    %v90 = vcvt.s32.f32 %v88
    %v91 = vcvt.s32.f32 %v89
    %v92 = vld [vmem:[%s2] sm:$0xff]
    %v93 = vld [vmem:[%s2 + $0x8] sm:$0xff]
    %v94 = vld [vmem:[%s2 + $0x10] sm:$0xff]
    %v95 = vld [vmem:[%s2 + $0x18] sm:$0xff]
    %v96 = vld [vmem:[%s2 + $0x20] sm:$0xff]
    %v97 = vld [vmem:[%s2 + $0x28] sm:$0xff]
    %v98 = vld [vmem:[%s2 + $0x30] sm:$0xff]
    %v99 = vld [vmem:[%s2 + $0x38] sm:$0xff]
    %v100 = vld [vmem:[%s2 + $0x40] sm:$0xff]
    %v101 = vld [vmem:[%s2 + $0x48] sm:$0xff]
    %v102 = vld [vmem:[%s2 + $0x50] sm:$0xff]
    %v103 = vld [vmem:[%s2 + $0x58] sm:$0xff]
    %v104 = vld [vmem:[%s2 + $0x60] sm:$0xf]
    %vm105 = vcmask 818176
    %v107 = vsel %vm105, %v90, 0
    %v110 = vsel %vm105, %v91, 0
    %vm112 = vcmask 1043456
    %v114 = vsel %vm112, %v104, 0
    %116 = vmatprep.subr.mxu0 0.0
    %117 = vmatpush1.msra.mxu0 %v92
    %118 = vmatprep.subr.mxu0 0.0
    %119 = vmatpush1.msra.mxu0 %v93
    %120 = vmatprep.subr.mxu0 0.0
    %121 = vmatpush1.msra.mxu0 %v94
    %122 = vmatprep.subr.mxu0 0.0
    %123 = vmatpush1.msra.mxu0 %v95
    %124 = vmatprep.subr.mxu0 0.0
    %125 = vmatpush1.msra.mxu0 %v96
    %126 = vmatprep.subr.mxu0 0.0
    %127 = vmatpush1.msra.mxu0 %v97
    %128 = vmatprep.subr.mxu0 0.0
    %129 = vmatpush1.msra.mxu0 %v98
    %130 = vmatprep.subr.mxu0 0.0
    %131 = vmatpush1.msra.mxu0 %v99
    %132 = vmatprep.subr.mxu0 0.0
    %133 = vmatpush1.msra.mxu0 %v100
    %134 = vmatprep.subr.mxu0 0.0
    %135 = vmatpush1.msra.mxu0 %v101
    %136 = vmatprep.subr.mxu0 0.0
    %137 = vmatpush1.msra.mxu0 %v102
    %138 = vmatprep.subr.mxu0 0.0
    %139 = vmatpush1.msra.mxu0 %v103
    %140 = vmatprep.subr.mxu0 0.0
    %141 = vmatpush1.msra.mxu0 %v114
    %142 = vmatprep.subr.mxu0 0.0
    %143 = vmatpush1.msra.mxu0 0.0
    %144 = vmatprep.subr.mxu0 0.0
    %145 = vmatpush1.msra.mxu0 0.0
    %146 = vmatprep.subr.mxu0 0.0
    %147 = vmatpush1.msra.mxu0 0.0
    %148 = vmatprep.subr.mxu0 0.0
    %149 = vmatpush1.msra.mxu0 0.0
    %150 = vmatprep.subr.mxu0 0.0
    %151 = vmatpush1.msra.mxu0 0.0
    %152 = vmatprep.subr.mxu0 0.0
    %153 = vmatpush1.msra.mxu0 0.0
    %154 = vmatprep.subr.mxu0 0.0
    %155 = vmatpush1.msra.mxu0 0.0
    %156 = vmatprep.subr.mxu0 0.0
    %157 = vmatpush1.msra.mxu0 0.0
    %158 = vmatprep.subr.mxu0 0.0
    %159 = vmatpush1.msra.mxu0 0.0
    %160 = vmatprep.subr.mxu0 0.0
    %161 = vmatpush1.msra.mxu0 0.0
    %162 = vmatprep.subr.mxu0 0.0
    %163 = vmatpush1.msra.mxu0 0.0
    %164 = vmatprep.subr.mxu0 0.0
    %165 = vmatpush1.msra.mxu0 0.0
    %166 = vmatprep.subr.mxu0 0.0
    %167 = vmatpush1.msra.mxu0 0.0
    %168 = vmatprep.subr.mxu0 0.0
    %169 = vmatpush1.msra.mxu0 0.0
    %170 = vmatprep.subr.mxu0 0.0
    %171 = vmatpush1.msra.mxu0 0.0
    %172 = vmatprep.subr.mxu0 0.0
    %173 = vmatpush1.msra.mxu0 0.0
    %174 = vmatprep.subr.mxu0 0.0
    %175 = vmatpush1.msra.mxu0 0.0
    %176 = vmatprep.subr.mxu0 0.0
    %177 = vmatpush1.msra.mxu0 0.0
    %178 = vmatprep.subr.mxu0 0.0
    %179 = vmatpush1.msra.mxu0 0.0
    %180 = vmatprep.mubr.f32.mxu0 0.0
    %181 = vmatmul.mubr.f32.gmra.mrb[0].mxu0 %v107
    %v182 = vpop.f32.mrb[0].mxu0
    %v183 = vadd.f32 0.0, %v182
    %v184 = vpop.f32.mrb[0].mxu0
    %185 = vmatprep.mubr.f32.mxu0 0.0
    %186 = vmatmul.mubr.f32.gmra.mrb[0].mxu0 %v110
    %v187 = vpop.f32.mrb[0].mxu0
    %v188 = vadd.f32 0.0, %v187
    %v189 = vpop.f32.mrb[0].mxu0
    %190 = vdwg.mxu0
    %v191 = vld [vmem:[%s3] sm:$0xff]
    %v192 = vld [vmem:[%s3 + $0x8] sm:$0xff]
    %v193 = vld [vmem:[%s3 + $0x10] sm:$0xff]
    %v194 = vld [vmem:[%s3 + $0x18] sm:$0xff]
    %v195 = vld [vmem:[%s3 + $0x20] sm:$0xf]
    %v196 = vld [vmem:[%s3 + $0x28] sm:$0xf]
    %v197 = vld [vmem:[%s4] sm:$0x3]
    %v199 = vlaneseq
    %v200 = vshrl.u32 %v199, 7
    %v201 = vsub.s32 0, %v200
    %v202 = vrot.slane %v197, %v201
    %v203 = vlaneseq
    %v204 = vshrl.u32 %v203, 7
    %v205 = vsub.s32 1, %v204
    %v206 = vrot.slane %v197, %v205
    %vm209 = vcmask 162816
    %v211 = vsel %vm209, %v183, 0
    %v214 = vsel %vm209, %v188, 0
    %v217 = vsel %vm112, %v195, 0
    %v220 = vsel %vm112, %v196, 0
    %222 = vmatprep.subr.mxu0 %v192
    %223 = vmatpush1.msra.mxu0 %v191
    %224 = vmatprep.subr.mxu0 %v194
    %225 = vmatpush1.msra.mxu0 %v193
    %226 = vmatprep.subr.mxu0 %v220
    %227 = vmatpush1.msra.mxu0 %v217
    %228 = vmatprep.subr.mxu0 0.0
    %229 = vmatpush1.msra.mxu0 0.0
    %230 = vmatprep.subr.mxu0 0.0
    %231 = vmatpush1.msra.mxu0 0.0
    %232 = vmatprep.subr.mxu0 0.0
    %233 = vmatpush1.msra.mxu0 0.0
    %234 = vmatprep.subr.mxu0 0.0
    %235 = vmatpush1.msra.mxu0 0.0
    %236 = vmatprep.subr.mxu0 0.0
    %237 = vmatpush1.msra.mxu0 0.0
    %238 = vmatprep.subr.mxu0 0.0
    %239 = vmatpush1.msra.mxu0 0.0
    %240 = vmatprep.subr.mxu0 0.0
    %241 = vmatpush1.msra.mxu0 0.0
    %242 = vmatprep.subr.mxu0 0.0
    %243 = vmatpush1.msra.mxu0 0.0
    %244 = vmatprep.subr.mxu0 0.0
    %245 = vmatpush1.msra.mxu0 0.0
    %246 = vmatprep.subr.mxu0 0.0
    %247 = vmatpush1.msra.mxu0 0.0
    %248 = vmatprep.subr.mxu0 0.0
    %249 = vmatpush1.msra.mxu0 0.0
    %250 = vmatprep.subr.mxu0 0.0
    %251 = vmatpush1.msra.mxu0 0.0
    %252 = vmatprep.subr.mxu0 0.0
    %253 = vmatpush1.msra.mxu0 0.0
    %254 = vmatprep.subr.mxu0 0.0
    %255 = vmatpush1.msra.mxu0 0.0
    %256 = vmatprep.subr.mxu0 0.0
    %257 = vmatpush1.msra.mxu0 0.0
    %258 = vmatprep.subr.mxu0 0.0
    %259 = vmatpush1.msra.mxu0 0.0
    %260 = vmatprep.subr.mxu0 0.0
    %261 = vmatpush1.msra.mxu0 0.0
    %262 = vmatprep.subr.mxu0 0.0
    %263 = vmatpush1.msra.mxu0 0.0
    %264 = vmatprep.subr.mxu0 0.0
    %265 = vmatpush1.msra.mxu0 0.0
    %266 = vmatprep.subr.mxu0 0.0
    %267 = vmatpush1.msra.mxu0 0.0
    %268 = vmatprep.subr.mxu0 0.0
    %269 = vmatpush1.msra.mxu0 0.0
    %270 = vmatprep.subr.mxu0 0.0
    %271 = vmatpush1.msra.mxu0 0.0
    %272 = vmatprep.subr.mxu0 0.0
    %273 = vmatpush1.msra.mxu0 0.0
    %274 = vmatprep.subr.mxu0 0.0
    %275 = vmatpush1.msra.mxu0 0.0
    %276 = vmatprep.subr.mxu0 0.0
    %277 = vmatpush1.msra.mxu0 0.0
    %278 = vmatprep.subr.mxu0 0.0
    %279 = vmatpush1.msra.mxu0 0.0
    %280 = vmatprep.subr.mxu0 0.0
    %281 = vmatpush1.msra.mxu0 0.0
    %282 = vmatprep.subr.mxu0 0.0
    %283 = vmatpush1.msra.mxu0 0.0
    %284 = vmatprep.subr.mxu0 0.0
    %285 = vmatpush1.msra.mxu0 0.0
    %286 = vmatprep.mubr.f32.mxu0 0.0
    %287 = vmatmul.mubr.f32.gmra.mrb[0].mxu0 %v211
    %v288 = vpop.f32.mrb[0].mxu0
    %v289 = vadd.f32 %v202, %v288
    %v290 = vpop.f32.mrb[0].mxu0
    %v291 = vadd.f32 %v206, %v290
    %292 = vmatprep.mubr.f32.mxu0 0.0
    %293 = vmatmul.mubr.f32.gmra.mrb[0].mxu0 %v214
    %v294 = vpop.f32.mrb[0].mxu0
    %v295 = vadd.f32 %v202, %v294
    %v296 = vpop.f32.mrb[0].mxu0
    %v297 = vadd.f32 %v206, %v296
    %298 = vdwg.mxu0
    %v303 = vcombine.low %v289, %v291
    %v304 = vcombine.high %v289, %v291
    %v306 = vunpack.c.l.s4 1983009808
    %v307 = vunpack.c.0.s8 %v306
    %v308 = vlaneseq
    %v309 = vshrl.u32 %v308, 7
    %v310 = vsub.s32 %v307, %v309
    %v311 = vrot.slane %v303, %v310
    %v313 = vunpack.c.l.s4 1983009808
    %v314 = vunpack.c.0.s8 %v313
    %v315 = vlaneseq
    %v316 = vshrl.u32 %v315, 7
    %v317 = vsub.s32 %v314, %v316
    %v318 = vrot.slane %v304, %v317
    %v319 = vcombine.high %v311, %v311
    %v320 = vcombine.high %v318, %v318
    %v321 = vcombine.low %v295, %v297
    %v322 = vcombine.high %v295, %v297
    %v324 = vunpack.c.l.s4 1983009808
    %v325 = vunpack.c.0.s8 %v324
    %v326 = vlaneseq
    %v327 = vshrl.u32 %v326, 7
    %v328 = vsub.s32 %v325, %v327
    %v329 = vrot.slane %v321, %v328
    %v331 = vunpack.c.l.s4 1983009808
    %v332 = vunpack.c.0.s8 %v331
    %v333 = vlaneseq
    %v334 = vshrl.u32 %v333, 7
    %v335 = vsub.s32 %v332, %v334
    %v336 = vrot.slane %v322, %v335
    %v337 = vcombine.high %v329, %v329
    %v338 = vcombine.high %v336, %v336
    %347 = vst [vmem:[#allocation2] sm:$0xf] %v311
    %348 = vst [vmem:[#allocation2 + $0x4] sm:$0xf] %v319
    %349 = vst [vmem:[#allocation2 + $0x8] sm:$0xf] %v318
    %350 = vst [vmem:[#allocation2 + $0xc] sm:$0xf] %v320
    %351 = vst [vmem:[#allocation2 + $0x10] sm:$0xf] %v329
    %352 = vst [vmem:[#allocation2 + $0x14] sm:$0xf] %v337
    %353 = vst [vmem:[#allocation2 + $0x18] sm:$0xf] %v336
    %354 = vst [vmem:[#allocation2 + $0x1c] sm:$0xf] %v338
    %v355 = vld [vmem:[#allocation2] sm:$0xf]
    %v356 = vld [vmem:[%s5] sm:$0xff]
    %v357 = vld [vmem:[%s5 + $0x8] sm:$0xff]
    %v358 = vld [vmem:[%s5 + $0x10] sm:$0xff]
    %v359 = vld [vmem:[%s5 + $0x18] sm:$0xff]
    %vm360 = vcmask 261120
    %v362 = vsel %vm360, 0.0, 0
    %364 = vmatprep.subr.mxu0 0.0
    %365 = vmatpush1.msra.mxu0 %v356
    %366 = vmatprep.subr.mxu0 0.0
    %367 = vmatpush1.msra.mxu0 %v357
    %368 = vmatprep.subr.mxu0 0.0
    %369 = vmatpush1.msra.mxu0 %v358
    %370 = vmatprep.subr.mxu0 0.0
    %371 = vmatpush1.msra.mxu0 %v359
    %372 = vmatprep.subr.mxu0 0.0
    %373 = vmatpush1.msra.mxu0 0.0
    %374 = vmatprep.subr.mxu0 0.0
    %375 = vmatpush1.msra.mxu0 0.0
    %376 = vmatprep.subr.mxu0 0.0
    %377 = vmatpush1.msra.mxu0 0.0
    %378 = vmatprep.subr.mxu0 0.0
    %379 = vmatpush1.msra.mxu0 0.0
    %380 = vmatprep.subr.mxu0 0.0
    %381 = vmatpush1.msra.mxu0 0.0
    %382 = vmatprep.subr.mxu0 0.0
    %383 = vmatpush1.msra.mxu0 0.0
    %384 = vmatprep.subr.mxu0 0.0
    %385 = vmatpush1.msra.mxu0 0.0
    %386 = vmatprep.subr.mxu0 0.0
    %387 = vmatpush1.msra.mxu0 0.0
    %388 = vmatprep.subr.mxu0 0.0
    %389 = vmatpush1.msra.mxu0 0.0
    %390 = vmatprep.subr.mxu0 0.0
    %391 = vmatpush1.msra.mxu0 0.0
    %392 = vmatprep.subr.mxu0 0.0
    %393 = vmatpush1.msra.mxu0 0.0
    %394 = vmatprep.subr.mxu0 0.0
    %395 = vmatpush1.msra.mxu0 0.0
    %396 = vmatprep.subr.mxu0 0.0
    %397 = vmatpush1.msra.mxu0 0.0
    %398 = vmatprep.subr.mxu0 0.0
    %399 = vmatpush1.msra.mxu0 0.0
    %400 = vmatprep.subr.mxu0 0.0
    %401 = vmatpush1.msra.mxu0 0.0
    %402 = vmatprep.subr.mxu0 0.0
    %403 = vmatpush1.msra.mxu0 0.0
    %404 = vmatprep.subr.mxu0 0.0
    %405 = vmatpush1.msra.mxu0 0.0
    %406 = vmatprep.subr.mxu0 0.0
    %407 = vmatpush1.msra.mxu0 0.0
    %408 = vmatprep.subr.mxu0 0.0
    %409 = vmatpush1.msra.mxu0 0.0
    %410 = vmatprep.subr.mxu0 0.0
    %411 = vmatpush1.msra.mxu0 0.0
    %412 = vmatprep.subr.mxu0 0.0
    %413 = vmatpush1.msra.mxu0 0.0
    %414 = vmatprep.subr.mxu0 0.0
    %415 = vmatpush1.msra.mxu0 0.0
    %416 = vmatprep.subr.mxu0 0.0
    %417 = vmatpush1.msra.mxu0 0.0
    %418 = vmatprep.subr.mxu0 0.0
    %419 = vmatpush1.msra.mxu0 0.0
    %420 = vmatprep.subr.mxu0 0.0
    %421 = vmatpush1.msra.mxu0 0.0
    %422 = vmatprep.subr.mxu0 0.0
    %423 = vmatpush1.msra.mxu0 0.0
    %424 = vmatprep.subr.mxu0 0.0
    %425 = vmatpush1.msra.mxu0 0.0
    %426 = vmatprep.subr.mxu0 0.0
    %427 = vmatpush1.msra.mxu0 0.0
    %428 = vmatprep.mubr.f32.mxu0 0.0
    %429 = vmatmul.mubr.f32.gmra.mrb[0].mxu0 %v362
    %v430 = vpop.f32.mrb[0].mxu0
    %v431 = vadd.f32 0.0, %v430
    %v432 = vpop.f32.mrb[0].mxu0
    %433 = vdwg.mxu0
    %v434 = vadd.f32 %v355, %v431
    %v435 = vxor.u32 %v434, 2147483648
    %v436 = vmul.f32 %v435, 1.442695
    %v437 = vpow.pop %v436
    %v438 = vadd.f32 %v437, 1.0
    %v439 = vrcp.pop %v438
    %v440 = vmul.f32 1.0, %v439
    %v441 = vtanh.pop %v434
    %v442 = vmul.f32 %v440, 0.0
    %444 = vrot.lane.b32.xlu0 %v441, 64
    %v445 = vpop.permute.xlu0 %444
    %v447 = vmul.f32 %v440, %v445
    %449 = vrot.lane.b32.xlu0 %v447, 32
    %v450 = vpop.permute.xlu0 %449
    %v452 = vadd.f32 %v442, %v450
    %v453 = vtanh.pop %v452
    %455 = vrot.lane.b32.xlu0 %v453, 64
    %v456 = vpop.permute.xlu0 %455
    %v458 = vmul.f32 %v440, %v456
    %v459 = vld [vmem:[#allocation5] sm:$0x3]
    %v462 = vunpack.c.l.s4 1983009808
    %v463 = vunpack.c.0.s8 %v462
    %v464 = vlaneseq
    %v465 = vshrl.u32 %v464, 7
    %v466 = vsub.s32 %v463, %v465
    %v467 = vrot.slane %v458, %v466
    %468 = vrot.lane.b32.xlu0 %v467, 32
    %v469 = vpop.permute.xlu0 %468
    %v471 = vmul.f32 %v459, %v469
    %472 = vst.msk [vmem:[#allocation3] sm:$0x3] %vm67, %v471
    %s473 = scalar_lea.vmem [#allocation2], 28
    %v474 = vld [vmem:[%s473] sm:$0xf]
    %v475 = vld [vmem:[%s6] sm:$0xff]
    %v476 = vld [vmem:[%s6 + $0x8] sm:$0xff]
    %v477 = vld [vmem:[%s6 + $0x10] sm:$0xff]
    %v478 = vld [vmem:[%s6 + $0x18] sm:$0xff]
    %479 = vmatprep.subr.mxu0 0.0
    %480 = vmatpush1.msra.mxu0 %v475
    %481 = vmatprep.subr.mxu0 0.0
    %482 = vmatpush1.msra.mxu0 %v476
    %483 = vmatprep.subr.mxu0 0.0
    %484 = vmatpush1.msra.mxu0 %v477
    %485 = vmatprep.subr.mxu0 0.0
    %486 = vmatpush1.msra.mxu0 %v478
    %487 = vmatprep.subr.mxu0 0.0
    %488 = vmatpush1.msra.mxu0 0.0
    %489 = vmatprep.subr.mxu0 0.0
    %490 = vmatpush1.msra.mxu0 0.0
    %491 = vmatprep.subr.mxu0 0.0
    %492 = vmatpush1.msra.mxu0 0.0
    %493 = vmatprep.subr.mxu0 0.0
    %494 = vmatpush1.msra.mxu0 0.0
    %495 = vmatprep.subr.mxu0 0.0
    %496 = vmatpush1.msra.mxu0 0.0
    %497 = vmatprep.subr.mxu0 0.0
    %498 = vmatpush1.msra.mxu0 0.0
    %499 = vmatprep.subr.mxu0 0.0
    %500 = vmatpush1.msra.mxu0 0.0
    %501 = vmatprep.subr.mxu0 0.0
    %502 = vmatpush1.msra.mxu0 0.0
    %503 = vmatprep.subr.mxu0 0.0
    %504 = vmatpush1.msra.mxu0 0.0
    %505 = vmatprep.subr.mxu0 0.0
    %506 = vmatpush1.msra.mxu0 0.0
    %507 = vmatprep.subr.mxu0 0.0
    %508 = vmatpush1.msra.mxu0 0.0
    %509 = vmatprep.subr.mxu0 0.0
    %510 = vmatpush1.msra.mxu0 0.0
    %511 = vmatprep.subr.mxu0 0.0
    %512 = vmatpush1.msra.mxu0 0.0
    %513 = vmatprep.subr.mxu0 0.0
    %514 = vmatpush1.msra.mxu0 0.0
    %515 = vmatprep.subr.mxu0 0.0
    %516 = vmatpush1.msra.mxu0 0.0
    %517 = vmatprep.subr.mxu0 0.0
    %518 = vmatpush1.msra.mxu0 0.0
    %519 = vmatprep.subr.mxu0 0.0
    %520 = vmatpush1.msra.mxu0 0.0
    %521 = vmatprep.subr.mxu0 0.0
    %522 = vmatpush1.msra.mxu0 0.0
    %523 = vmatprep.subr.mxu0 0.0
    %524 = vmatpush1.msra.mxu0 0.0
    %525 = vmatprep.subr.mxu0 0.0
    %526 = vmatpush1.msra.mxu0 0.0
    %527 = vmatprep.subr.mxu0 0.0
    %528 = vmatpush1.msra.mxu0 0.0
    %529 = vmatprep.subr.mxu0 0.0
    %530 = vmatpush1.msra.mxu0 0.0
    %531 = vmatprep.subr.mxu0 0.0
    %532 = vmatpush1.msra.mxu0 0.0
    %533 = vmatprep.subr.mxu0 0.0
    %534 = vmatpush1.msra.mxu0 0.0
    %535 = vmatprep.subr.mxu0 0.0
    %536 = vmatpush1.msra.mxu0 0.0
    %537 = vmatprep.subr.mxu0 0.0
    %538 = vmatpush1.msra.mxu0 0.0
    %539 = vmatprep.subr.mxu0 0.0
    %540 = vmatpush1.msra.mxu0 0.0
    %541 = vmatprep.subr.mxu0 0.0
    %542 = vmatpush1.msra.mxu0 0.0
    %543 = vmatprep.mubr.f32.mxu0 0.0
    %544 = vmatmul.mubr.f32.gmra.mrb[0].mxu0 %v362
    %v545 = vpop.f32.mrb[0].mxu0
    %v546 = vadd.f32 0.0, %v545
    %v547 = vpop.f32.mrb[0].mxu0
    %548 = vdwg.mxu0
    %v550 = vrot.slane %v474, 2
    %v552 = vadd.f32 %v550, %v546
    %v553 = vxor.u32 %v552, 2147483648
    %v554 = vmul.f32 %v553, 1.442695
    %v555 = vpow.pop %v554
    %v556 = vadd.f32 %v555, 1.0
    %v557 = vrcp.pop %v556
    %v558 = vmul.f32 1.0, %v557
    %v559 = vtanh.pop %v552
    %v560 = vmul.f32 %v558, 0.0
    %562 = vrot.lane.b32.xlu0 %v559, 64
    %v563 = vpop.permute.xlu0 %562
    %v565 = vmul.f32 %v558, %v563
    %567 = vrot.lane.b32.xlu0 %v565, 32
    %v568 = vpop.permute.xlu0 %567
    %v570 = vadd.f32 %v560, %v568
    %v571 = vtanh.pop %v570
    %573 = vrot.lane.b32.xlu0 %v571, 64
    %v574 = vpop.permute.xlu0 %573
    %v576 = vmul.f32 %v558, %v574
    %s577 = scalar_lea.vmem [#allocation5], 14
    %v578 = vld [vmem:[%s577] sm:$0x3]
    %v581 = vunpack.c.l.s4 1983009808
    %v582 = vunpack.c.0.s8 %v581
    %v583 = vlaneseq
    %v584 = vshrl.u32 %v583, 7
    %v585 = vsub.s32 %v582, %v584
    %v586 = vrot.slane %v576, %v585
    %587 = vrot.lane.b32.xlu0 %v586, 32
    %v588 = vpop.permute.xlu0 %587
    %v590 = vmul.f32 %v578, %v588
    %s591 = scalar_lea.vmem [#allocation4], 14
    %592 = vst.msk [vmem:[%s591] sm:$0x3] %vm67, %v590
    %v593 = vsub.f32 1.0, %v578
    %v594 = vmul.f32 %v593, 0.0
    %v595 = vadd.f32 %v590, %v594
    %v598 = vunpack.c.l.s4 1983009808
    %v599 = vunpack.c.0.s8 %v598
    %v600 = vlaneseq
    %v601 = vshrl.u32 %v600, 7
    %v602 = vsub.s32 %v599, %v601
    %v603 = vrot.slane %v570, %v602
    %604 = vrot.lane.b32.xlu0 %v603, 96
    %v605 = vpop.permute.xlu0 %604
    %v607 = vmul.f32 %v578, %v605
    %v608 = vadd.f32 %v607, %v594
    %s609 = scalar_lea.vmem [#allocation2], 4
    %v610 = vld [vmem:[%s609] sm:$0xf]
    %v611 = vld [vmem:[%s5] sm:$0xff]
    %v612 = vld [vmem:[%s5 + $0x8] sm:$0xff]
    %v613 = vld [vmem:[%s5 + $0x10] sm:$0xff]
    %v614 = vld [vmem:[%s5 + $0x18] sm:$0xff]
    %v615 = vsel %vm360, %v469, 0
    %617 = vmatprep.subr.mxu0 0.0
    %618 = vmatpush1.msra.mxu0 %v611
    %619 = vmatprep.subr.mxu0 0.0
    %620 = vmatpush1.msra.mxu0 %v612
    %621 = vmatprep.subr.mxu0 0.0
    %622 = vmatpush1.msra.mxu0 %v613
    %623 = vmatprep.subr.mxu0 0.0
    %624 = vmatpush1.msra.mxu0 %v614
    %625 = vmatprep.subr.mxu0 0.0
    %626 = vmatpush1.msra.mxu0 0.0
    %627 = vmatprep.subr.mxu0 0.0
    %628 = vmatpush1.msra.mxu0 0.0
    %629 = vmatprep.subr.mxu0 0.0
    %630 = vmatpush1.msra.mxu0 0.0
    %631 = vmatprep.subr.mxu0 0.0
    %632 = vmatpush1.msra.mxu0 0.0
    %633 = vmatprep.subr.mxu0 0.0
    %634 = vmatpush1.msra.mxu0 0.0
    %635 = vmatprep.subr.mxu0 0.0
    %636 = vmatpush1.msra.mxu0 0.0
    %637 = vmatprep.subr.mxu0 0.0
    %638 = vmatpush1.msra.mxu0 0.0
    %639 = vmatprep.subr.mxu0 0.0
    %640 = vmatpush1.msra.mxu0 0.0
    %641 = vmatprep.subr.mxu0 0.0
    %642 = vmatpush1.msra.mxu0 0.0
    %643 = vmatprep.subr.mxu0 0.0
    %644 = vmatpush1.msra.mxu0 0.0
    %645 = vmatprep.subr.mxu0 0.0
    %646 = vmatpush1.msra.mxu0 0.0
    %647 = vmatprep.subr.mxu0 0.0
    %648 = vmatpush1.msra.mxu0 0.0
    %649 = vmatprep.subr.mxu0 0.0
    %650 = vmatpush1.msra.mxu0 0.0
    %651 = vmatprep.subr.mxu0 0.0
    %652 = vmatpush1.msra.mxu0 0.0
    %653 = vmatprep.subr.mxu0 0.0
    %654 = vmatpush1.msra.mxu0 0.0
    %655 = vmatprep.subr.mxu0 0.0
    %656 = vmatpush1.msra.mxu0 0.0
    %657 = vmatprep.subr.mxu0 0.0
    %658 = vmatpush1.msra.mxu0 0.0
    %659 = vmatprep.subr.mxu0 0.0
    %660 = vmatpush1.msra.mxu0 0.0
    %661 = vmatprep.subr.mxu0 0.0
    %662 = vmatpush1.msra.mxu0 0.0
    %663 = vmatprep.subr.mxu0 0.0
    %664 = vmatpush1.msra.mxu0 0.0
    %665 = vmatprep.subr.mxu0 0.0
    %666 = vmatpush1.msra.mxu0 0.0
    %667 = vmatprep.subr.mxu0 0.0
    %668 = vmatpush1.msra.mxu0 0.0
    %669 = vmatprep.subr.mxu0 0.0
    %670 = vmatpush1.msra.mxu0 0.0
    %671 = vmatprep.subr.mxu0 0.0
    %672 = vmatpush1.msra.mxu0 0.0
    %673 = vmatprep.subr.mxu0 0.0
    %674 = vmatpush1.msra.mxu0 0.0
    %675 = vmatprep.subr.mxu0 0.0
    %676 = vmatpush1.msra.mxu0 0.0
    %677 = vmatprep.subr.mxu0 0.0
    %678 = vmatpush1.msra.mxu0 0.0
    %679 = vmatprep.subr.mxu0 0.0
    %680 = vmatpush1.msra.mxu0 0.0
    %681 = vmatprep.mubr.f32.mxu0 0.0
    %682 = vmatmul.mubr.f32.gmra.mrb[0].mxu0 %v615
    %v683 = vpop.f32.mrb[0].mxu0
    %v684 = vadd.f32 0.0, %v683
    %v685 = vpop.f32.mrb[0].mxu0
    %686 = vdwg.mxu0
    %v687 = vadd.f32 %v610, %v684
    %v688 = vxor.u32 %v687, 2147483648
    %v689 = vmul.f32 %v688, 1.442695
    %v690 = vpow.pop %v689
    %v691 = vadd.f32 %v690, 1.0
    %v692 = vrcp.pop %v691
    %v693 = vmul.f32 1.0, %v692
    %v694 = vtanh.pop %v687
    %v695 = vmul.f32 %v693, %v452
    %697 = vrot.lane.b32.xlu0 %v694, 64
    %v698 = vpop.permute.xlu0 %697
    %v700 = vmul.f32 %v693, %v698
    %702 = vrot.lane.b32.xlu0 %v700, 32
    %v703 = vpop.permute.xlu0 %702
    %v705 = vadd.f32 %v695, %v703
    %v706 = vtanh.pop %v705
    %708 = vrot.lane.b32.xlu0 %v706, 64
    %v709 = vpop.permute.xlu0 %708
    %v711 = vmul.f32 %v693, %v709
    %s712 = scalar_lea.vmem [#allocation5], 2
    %v713 = vld [vmem:[%s712] sm:$0x3]
    %v716 = vunpack.c.l.s4 1983009808
    %v717 = vunpack.c.0.s8 %v716
    %v718 = vlaneseq
    %v719 = vshrl.u32 %v718, 7
    %v720 = vsub.s32 %v717, %v719
    %v721 = vrot.slane %v711, %v720
    %722 = vrot.lane.b32.xlu0 %v721, 32
    %v723 = vpop.permute.xlu0 %722
    %v725 = vmul.f32 %v713, %v723
    %s726 = scalar_lea.vmem [#allocation3], 2
    %727 = vst.msk [vmem:[%s726] sm:$0x3] %vm67, %v725
    %s728 = scalar_lea.vmem [#allocation2], 24
    %v729 = vld [vmem:[%s728] sm:$0xf]
    %v730 = vld [vmem:[%s6] sm:$0xff]
    %v731 = vld [vmem:[%s6 + $0x8] sm:$0xff]
    %v732 = vld [vmem:[%s6 + $0x10] sm:$0xff]
    %v733 = vld [vmem:[%s6 + $0x18] sm:$0xff]
    %v735 = vsel %vm360, %v595, 0
    %737 = vmatprep.subr.mxu0 0.0
    %738 = vmatpush1.msra.mxu0 %v730
    %739 = vmatprep.subr.mxu0 0.0
    %740 = vmatpush1.msra.mxu0 %v731
    %741 = vmatprep.subr.mxu0 0.0
    %742 = vmatpush1.msra.mxu0 %v732
    %743 = vmatprep.subr.mxu0 0.0
    %744 = vmatpush1.msra.mxu0 %v733
    %745 = vmatprep.subr.mxu0 0.0
    %746 = vmatpush1.msra.mxu0 0.0
    %747 = vmatprep.subr.mxu0 0.0
    %748 = vmatpush1.msra.mxu0 0.0
    %749 = vmatprep.subr.mxu0 0.0
    %750 = vmatpush1.msra.mxu0 0.0
    %751 = vmatprep.subr.mxu0 0.0
    %752 = vmatpush1.msra.mxu0 0.0
    %753 = vmatprep.subr.mxu0 0.0
    %754 = vmatpush1.msra.mxu0 0.0
    %755 = vmatprep.subr.mxu0 0.0
    %756 = vmatpush1.msra.mxu0 0.0
    %757 = vmatprep.subr.mxu0 0.0
    %758 = vmatpush1.msra.mxu0 0.0
    %759 = vmatprep.subr.mxu0 0.0
    %760 = vmatpush1.msra.mxu0 0.0
    %761 = vmatprep.subr.mxu0 0.0
    %762 = vmatpush1.msra.mxu0 0.0
    %763 = vmatprep.subr.mxu0 0.0
    %764 = vmatpush1.msra.mxu0 0.0
    %765 = vmatprep.subr.mxu0 0.0
    %766 = vmatpush1.msra.mxu0 0.0
    %767 = vmatprep.subr.mxu0 0.0
    %768 = vmatpush1.msra.mxu0 0.0
    %769 = vmatprep.subr.mxu0 0.0
    %770 = vmatpush1.msra.mxu0 0.0
    %771 = vmatprep.subr.mxu0 0.0
    %772 = vmatpush1.msra.mxu0 0.0
    %773 = vmatprep.subr.mxu0 0.0
    %774 = vmatpush1.msra.mxu0 0.0
    %775 = vmatprep.subr.mxu0 0.0
    %776 = vmatpush1.msra.mxu0 0.0
    %777 = vmatprep.subr.mxu0 0.0
    %778 = vmatpush1.msra.mxu0 0.0
    %779 = vmatprep.subr.mxu0 0.0
    %780 = vmatpush1.msra.mxu0 0.0
    %781 = vmatprep.subr.mxu0 0.0
    %782 = vmatpush1.msra.mxu0 0.0
    %783 = vmatprep.subr.mxu0 0.0
    %784 = vmatpush1.msra.mxu0 0.0
    %785 = vmatprep.subr.mxu0 0.0
    %786 = vmatpush1.msra.mxu0 0.0
    %787 = vmatprep.subr.mxu0 0.0
    %788 = vmatpush1.msra.mxu0 0.0
    %789 = vmatprep.subr.mxu0 0.0
    %790 = vmatpush1.msra.mxu0 0.0
    %791 = vmatprep.subr.mxu0 0.0
    %792 = vmatpush1.msra.mxu0 0.0
    %793 = vmatprep.subr.mxu0 0.0
    %794 = vmatpush1.msra.mxu0 0.0
    %795 = vmatprep.subr.mxu0 0.0
    %796 = vmatpush1.msra.mxu0 0.0
    %797 = vmatprep.subr.mxu0 0.0
    %798 = vmatpush1.msra.mxu0 0.0
    %799 = vmatprep.subr.mxu0 0.0
    %800 = vmatpush1.msra.mxu0 0.0
    %801 = vmatprep.mubr.f32.mxu0 0.0
    %802 = vmatmul.mubr.f32.gmra.mrb[0].mxu0 %v735
    %v803 = vpop.f32.mrb[0].mxu0
    %v804 = vadd.f32 0.0, %v803
    %v805 = vpop.f32.mrb[0].mxu0
    %806 = vdwg.mxu0
    %v808 = vrot.slane %v729, 2
    %v810 = vadd.f32 %v808, %v804
    %v811 = vxor.u32 %v810, 2147483648
    %v812 = vmul.f32 %v811, 1.442695
    %v813 = vpow.pop %v812
    %v814 = vadd.f32 %v813, 1.0
    %v815 = vrcp.pop %v814
    %v816 = vmul.f32 1.0, %v815
    %v817 = vtanh.pop %v810
    %v820 = vunpack.c.l.s4 1983009808
    %v821 = vunpack.c.0.s8 %v820
    %v822 = vlaneseq
    %v823 = vshrl.u32 %v822, 7
    %v824 = vsub.s32 %v821, %v823
    %v825 = vrot.slane %v608, %v824
    %826 = vrot.lane.b32.xlu0 %v825, 32
    %v827 = vpop.permute.xlu0 %826
    %v829 = vmul.f32 %v816, %v827
    %831 = vrot.lane.b32.xlu0 %v817, 64
    %v832 = vpop.permute.xlu0 %831
    %v834 = vmul.f32 %v816, %v832
    %836 = vrot.lane.b32.xlu0 %v834, 32
    %v837 = vpop.permute.xlu0 %836
    %v839 = vadd.f32 %v829, %v837
    %v840 = vtanh.pop %v839
    %842 = vrot.lane.b32.xlu0 %v840, 64
    %v843 = vpop.permute.xlu0 %842
    %v845 = vmul.f32 %v816, %v843
    %s846 = scalar_lea.vmem [#allocation5], 12
    %v847 = vld [vmem:[%s846] sm:$0x3]
    %v850 = vunpack.c.l.s4 1983009808
    %v851 = vunpack.c.0.s8 %v850
    %v852 = vlaneseq
    %v853 = vshrl.u32 %v852, 7
    %v854 = vsub.s32 %v851, %v853
    %v855 = vrot.slane %v845, %v854
    %856 = vrot.lane.b32.xlu0 %v855, 32
    %v857 = vpop.permute.xlu0 %856
    %v859 = vmul.f32 %v847, %v857
    %s860 = scalar_lea.vmem [#allocation4], 12
    %861 = vst.msk [vmem:[%s860] sm:$0x3] %vm67, %v859
    %v862 = vsub.f32 1.0, %v847
    %v863 = vmul.f32 %v862, %v595
    %v864 = vadd.f32 %v859, %v863
    %v867 = vunpack.c.l.s4 1983009808
    %v868 = vunpack.c.0.s8 %v867
    %v869 = vlaneseq
    %v870 = vshrl.u32 %v869, 7
    %v871 = vsub.s32 %v868, %v870
    %v872 = vrot.slane %v839, %v871
    %873 = vrot.lane.b32.xlu0 %v872, 96
    %v874 = vpop.permute.xlu0 %873
    %v876 = vmul.f32 %v847, %v874
    %v877 = vmul.f32 %v862, %v608
    %v878 = vadd.f32 %v876, %v877
    %s879 = scalar_lea.vmem [#allocation2], 8
    %v880 = vld [vmem:[%s879] sm:$0xf]
    %v881 = vld [vmem:[%s5] sm:$0xff]
    %v882 = vld [vmem:[%s5 + $0x8] sm:$0xff]
    %v883 = vld [vmem:[%s5 + $0x10] sm:$0xff]
    %v884 = vld [vmem:[%s5 + $0x18] sm:$0xff]
    %v885 = vsel %vm360, %v723, 0
    %887 = vmatprep.subr.mxu0 0.0
    %888 = vmatpush1.msra.mxu0 %v881
    %889 = vmatprep.subr.mxu0 0.0
    %890 = vmatpush1.msra.mxu0 %v882
    %891 = vmatprep.subr.mxu0 0.0
    %892 = vmatpush1.msra.mxu0 %v883
    %893 = vmatprep.subr.mxu0 0.0
    %894 = vmatpush1.msra.mxu0 %v884
    %895 = vmatprep.subr.mxu0 0.0
    %896 = vmatpush1.msra.mxu0 0.0
    %897 = vmatprep.subr.mxu0 0.0
    %898 = vmatpush1.msra.mxu0 0.0
    %899 = vmatprep.subr.mxu0 0.0
    %900 = vmatpush1.msra.mxu0 0.0
    %901 = vmatprep.subr.mxu0 0.0
    %902 = vmatpush1.msra.mxu0 0.0
    %903 = vmatprep.subr.mxu0 0.0
    %904 = vmatpush1.msra.mxu0 0.0
    %905 = vmatprep.subr.mxu0 0.0
    %906 = vmatpush1.msra.mxu0 0.0
    %907 = vmatprep.subr.mxu0 0.0
    %908 = vmatpush1.msra.mxu0 0.0
    %909 = vmatprep.subr.mxu0 0.0
    %910 = vmatpush1.msra.mxu0 0.0
    %911 = vmatprep.subr.mxu0 0.0
    %912 = vmatpush1.msra.mxu0 0.0
    %913 = vmatprep.subr.mxu0 0.0
    %914 = vmatpush1.msra.mxu0 0.0
    %915 = vmatprep.subr.mxu0 0.0
    %916 = vmatpush1.msra.mxu0 0.0
    %917 = vmatprep.subr.mxu0 0.0
    %918 = vmatpush1.msra.mxu0 0.0
    %919 = vmatprep.subr.mxu0 0.0
    %920 = vmatpush1.msra.mxu0 0.0
    %921 = vmatprep.subr.mxu0 0.0
    %922 = vmatpush1.msra.mxu0 0.0
    %923 = vmatprep.subr.mxu0 0.0
    %924 = vmatpush1.msra.mxu0 0.0
    %925 = vmatprep.subr.mxu0 0.0
    %926 = vmatpush1.msra.mxu0 0.0
    %927 = vmatprep.subr.mxu0 0.0
    %928 = vmatpush1.msra.mxu0 0.0
    %929 = vmatprep.subr.mxu0 0.0
    %930 = vmatpush1.msra.mxu0 0.0
    %931 = vmatprep.subr.mxu0 0.0
    %932 = vmatpush1.msra.mxu0 0.0
    %933 = vmatprep.subr.mxu0 0.0
    %934 = vmatpush1.msra.mxu0 0.0
    %935 = vmatprep.subr.mxu0 0.0
    %936 = vmatpush1.msra.mxu0 0.0
    %937 = vmatprep.subr.mxu0 0.0
    %938 = vmatpush1.msra.mxu0 0.0
    %939 = vmatprep.subr.mxu0 0.0
    %940 = vmatpush1.msra.mxu0 0.0
    %941 = vmatprep.subr.mxu0 0.0
    %942 = vmatpush1.msra.mxu0 0.0
    %943 = vmatprep.subr.mxu0 0.0
    %944 = vmatpush1.msra.mxu0 0.0
    %945 = vmatprep.subr.mxu0 0.0
    %946 = vmatpush1.msra.mxu0 0.0
    %947 = vmatprep.subr.mxu0 0.0
    %948 = vmatpush1.msra.mxu0 0.0
    %949 = vmatprep.subr.mxu0 0.0
    %950 = vmatpush1.msra.mxu0 0.0
    %951 = vmatprep.mubr.f32.mxu0 0.0
    %952 = vmatmul.mubr.f32.gmra.mrb[0].mxu0 %v885
    %v953 = vpop.f32.mrb[0].mxu0
    %v954 = vadd.f32 0.0, %v953
    %v955 = vpop.f32.mrb[0].mxu0
    %956 = vdwg.mxu0
    %v957 = vadd.f32 %v880, %v954
    %v958 = vxor.u32 %v957, 2147483648
    %v959 = vmul.f32 %v958, 1.442695
    %v960 = vpow.pop %v959
    %v961 = vadd.f32 %v960, 1.0
    %v962 = vrcp.pop %v961
    %v963 = vmul.f32 1.0, %v962
    %v964 = vtanh.pop %v957
    %v965 = vmul.f32 %v963, %v705
    %967 = vrot.lane.b32.xlu0 %v964, 64
    %v968 = vpop.permute.xlu0 %967
    %v970 = vmul.f32 %v963, %v968
    %972 = vrot.lane.b32.xlu0 %v970, 32
    %v973 = vpop.permute.xlu0 %972
    %v975 = vadd.f32 %v965, %v973
    %v976 = vtanh.pop %v975
    %978 = vrot.lane.b32.xlu0 %v976, 64
    %v979 = vpop.permute.xlu0 %978
    %v981 = vmul.f32 %v963, %v979
    %s982 = scalar_lea.vmem [#allocation5], 4
    %v983 = vld [vmem:[%s982] sm:$0x3]
    %v986 = vunpack.c.l.s4 1983009808
    %v987 = vunpack.c.0.s8 %v986
    %v988 = vlaneseq
    %v989 = vshrl.u32 %v988, 7
    %v990 = vsub.s32 %v987, %v989
    %v991 = vrot.slane %v981, %v990
    %992 = vrot.lane.b32.xlu0 %v991, 32
    %v993 = vpop.permute.xlu0 %992
    %v995 = vmul.f32 %v983, %v993
    %s996 = scalar_lea.vmem [#allocation3], 4
    %997 = vst.msk [vmem:[%s996] sm:$0x3] %vm67, %v995
    %s998 = scalar_lea.vmem [#allocation2], 20
    %v999 = vld [vmem:[%s998] sm:$0xf]
    %v1000 = vld [vmem:[%s6] sm:$0xff]
    %v1001 = vld [vmem:[%s6 + $0x8] sm:$0xff]
    %v1002 = vld [vmem:[%s6 + $0x10] sm:$0xff]
    %v1003 = vld [vmem:[%s6 + $0x18] sm:$0xff]
    %v1005 = vsel %vm360, %v864, 0
    %1007 = vmatprep.subr.mxu0 0.0
    %1008 = vmatpush1.msra.mxu0 %v1000
    %1009 = vmatprep.subr.mxu0 0.0
    %1010 = vmatpush1.msra.mxu0 %v1001
    %1011 = vmatprep.subr.mxu0 0.0
    %1012 = vmatpush1.msra.mxu0 %v1002
    %1013 = vmatprep.subr.mxu0 0.0
    %1014 = vmatpush1.msra.mxu0 %v1003
    %1015 = vmatprep.subr.mxu0 0.0
    %1016 = vmatpush1.msra.mxu0 0.0
    %1017 = vmatprep.subr.mxu0 0.0
    %1018 = vmatpush1.msra.mxu0 0.0
    %1019 = vmatprep.subr.mxu0 0.0
    %1020 = vmatpush1.msra.mxu0 0.0
    %1021 = vmatprep.subr.mxu0 0.0
    %1022 = vmatpush1.msra.mxu0 0.0
    %1023 = vmatprep.subr.mxu0 0.0
    %1024 = vmatpush1.msra.mxu0 0.0
    %1025 = vmatprep.subr.mxu0 0.0
    %1026 = vmatpush1.msra.mxu0 0.0
    %1027 = vmatprep.subr.mxu0 0.0
    %1028 = vmatpush1.msra.mxu0 0.0
    %1029 = vmatprep.subr.mxu0 0.0
    %1030 = vmatpush1.msra.mxu0 0.0
    %1031 = vmatprep.subr.mxu0 0.0
    %1032 = vmatpush1.msra.mxu0 0.0
    %1033 = vmatprep.subr.mxu0 0.0
    %1034 = vmatpush1.msra.mxu0 0.0
    %1035 = vmatprep.subr.mxu0 0.0
    %1036 = vmatpush1.msra.mxu0 0.0
    %1037 = vmatprep.subr.mxu0 0.0
    %1038 = vmatpush1.msra.mxu0 0.0
    %1039 = vmatprep.subr.mxu0 0.0
    %1040 = vmatpush1.msra.mxu0 0.0
    %1041 = vmatprep.subr.mxu0 0.0
    %1042 = vmatpush1.msra.mxu0 0.0
    %1043 = vmatprep.subr.mxu0 0.0
    %1044 = vmatpush1.msra.mxu0 0.0
    %1045 = vmatprep.subr.mxu0 0.0
    %1046 = vmatpush1.msra.mxu0 0.0
    %1047 = vmatprep.subr.mxu0 0.0
    %1048 = vmatpush1.msra.mxu0 0.0
    %1049 = vmatprep.subr.mxu0 0.0
    %1050 = vmatpush1.msra.mxu0 0.0
    %1051 = vmatprep.subr.mxu0 0.0
    %1052 = vmatpush1.msra.mxu0 0.0
    %1053 = vmatprep.subr.mxu0 0.0
    %1054 = vmatpush1.msra.mxu0 0.0
    %1055 = vmatprep.subr.mxu0 0.0
    %1056 = vmatpush1.msra.mxu0 0.0
    %1057 = vmatprep.subr.mxu0 0.0
    %1058 = vmatpush1.msra.mxu0 0.0
    %1059 = vmatprep.subr.mxu0 0.0
    %1060 = vmatpush1.msra.mxu0 0.0
    %1061 = vmatprep.subr.mxu0 0.0
    %1062 = vmatpush1.msra.mxu0 0.0
    %1063 = vmatprep.subr.mxu0 0.0
    %1064 = vmatpush1.msra.mxu0 0.0
    %1065 = vmatprep.subr.mxu0 0.0
    %1066 = vmatpush1.msra.mxu0 0.0
    %1067 = vmatprep.subr.mxu0 0.0
    %1068 = vmatpush1.msra.mxu0 0.0
    %1069 = vmatprep.subr.mxu0 0.0
    %1070 = vmatpush1.msra.mxu0 0.0
    %1071 = vmatprep.mubr.f32.mxu0 0.0
    %1072 = vmatmul.mubr.f32.gmra.mrb[0].mxu0 %v1005
    %v1073 = vpop.f32.mrb[0].mxu0
    %v1074 = vadd.f32 0.0, %v1073
    %v1075 = vpop.f32.mrb[0].mxu0
    %1076 = vdwg.mxu0
    %v1078 = vrot.slane %v999, 2
    %v1080 = vadd.f32 %v1078, %v1074
    %v1081 = vxor.u32 %v1080, 2147483648
    %v1082 = vmul.f32 %v1081, 1.442695
    %v1083 = vpow.pop %v1082
    %v1084 = vadd.f32 %v1083, 1.0
    %v1085 = vrcp.pop %v1084
    %v1086 = vmul.f32 1.0, %v1085
    %v1087 = vtanh.pop %v1080
    %v1090 = vunpack.c.l.s4 1983009808
    %v1091 = vunpack.c.0.s8 %v1090
    %v1092 = vlaneseq
    %v1093 = vshrl.u32 %v1092, 7
    %v1094 = vsub.s32 %v1091, %v1093
    %v1095 = vrot.slane %v878, %v1094
    %1096 = vrot.lane.b32.xlu0 %v1095, 32
    %v1097 = vpop.permute.xlu0 %1096
    %v1099 = vmul.f32 %v1086, %v1097
    %1101 = vrot.lane.b32.xlu0 %v1087, 64
    %v1102 = vpop.permute.xlu0 %1101
    %v1104 = vmul.f32 %v1086, %v1102
    %1106 = vrot.lane.b32.xlu0 %v1104, 32
    %v1107 = vpop.permute.xlu0 %1106
    %v1109 = vadd.f32 %v1099, %v1107
    %v1110 = vtanh.pop %v1109
    %1112 = vrot.lane.b32.xlu0 %v1110, 64
    %v1113 = vpop.permute.xlu0 %1112
    %v1115 = vmul.f32 %v1086, %v1113
    %s1116 = scalar_lea.vmem [#allocation5], 10
    %v1117 = vld [vmem:[%s1116] sm:$0x3]
    %v1120 = vunpack.c.l.s4 1983009808
    %v1121 = vunpack.c.0.s8 %v1120
    %v1122 = vlaneseq
    %v1123 = vshrl.u32 %v1122, 7
    %v1124 = vsub.s32 %v1121, %v1123
    %v1125 = vrot.slane %v1115, %v1124
    %1126 = vrot.lane.b32.xlu0 %v1125, 32
    %v1127 = vpop.permute.xlu0 %1126
    %v1129 = vmul.f32 %v1117, %v1127
    %s1130 = scalar_lea.vmem [#allocation4], 10
    %1131 = vst.msk [vmem:[%s1130] sm:$0x3] %vm67, %v1129
    %v1132 = vsub.f32 1.0, %v1117
    %v1133 = vmul.f32 %v1132, %v864
    %v1134 = vadd.f32 %v1129, %v1133
    %v1137 = vunpack.c.l.s4 1983009808
    %v1138 = vunpack.c.0.s8 %v1137
    %v1139 = vlaneseq
    %v1140 = vshrl.u32 %v1139, 7
    %v1141 = vsub.s32 %v1138, %v1140
    %v1142 = vrot.slane %v1109, %v1141
    %1143 = vrot.lane.b32.xlu0 %v1142, 96
    %v1144 = vpop.permute.xlu0 %1143
    %v1146 = vmul.f32 %v1117, %v1144
    %v1147 = vmul.f32 %v1132, %v878
    %v1148 = vadd.f32 %v1146, %v1147
    %s1149 = scalar_lea.vmem [#allocation2], 12
    %v1150 = vld [vmem:[%s1149] sm:$0xf]
    %v1151 = vld [vmem:[%s5] sm:$0xff]
    %v1152 = vld [vmem:[%s5 + $0x8] sm:$0xff]
    %v1153 = vld [vmem:[%s5 + $0x10] sm:$0xff]
    %v1154 = vld [vmem:[%s5 + $0x18] sm:$0xff]
    %v1155 = vsel %vm360, %v993, 0
    %1157 = vmatprep.subr.mxu0 0.0
    %1158 = vmatpush1.msra.mxu0 %v1151
    %1159 = vmatprep.subr.mxu0 0.0
    %1160 = vmatpush1.msra.mxu0 %v1152
    %1161 = vmatprep.subr.mxu0 0.0
    %1162 = vmatpush1.msra.mxu0 %v1153
    %1163 = vmatprep.subr.mxu0 0.0
    %1164 = vmatpush1.msra.mxu0 %v1154
    %1165 = vmatprep.subr.mxu0 0.0
    %1166 = vmatpush1.msra.mxu0 0.0
    %1167 = vmatprep.subr.mxu0 0.0
    %1168 = vmatpush1.msra.mxu0 0.0
    %1169 = vmatprep.subr.mxu0 0.0
    %1170 = vmatpush1.msra.mxu0 0.0
    %1171 = vmatprep.subr.mxu0 0.0
    %1172 = vmatpush1.msra.mxu0 0.0
    %1173 = vmatprep.subr.mxu0 0.0
    %1174 = vmatpush1.msra.mxu0 0.0
    %1175 = vmatprep.subr.mxu0 0.0
    %1176 = vmatpush1.msra.mxu0 0.0
    %1177 = vmatprep.subr.mxu0 0.0
    %1178 = vmatpush1.msra.mxu0 0.0
    %1179 = vmatprep.subr.mxu0 0.0
    %1180 = vmatpush1.msra.mxu0 0.0
    %1181 = vmatprep.subr.mxu0 0.0
    %1182 = vmatpush1.msra.mxu0 0.0
    %1183 = vmatprep.subr.mxu0 0.0
    %1184 = vmatpush1.msra.mxu0 0.0
    %1185 = vmatprep.subr.mxu0 0.0
    %1186 = vmatpush1.msra.mxu0 0.0
    %1187 = vmatprep.subr.mxu0 0.0
    %1188 = vmatpush1.msra.mxu0 0.0
    %1189 = vmatprep.subr.mxu0 0.0
    %1190 = vmatpush1.msra.mxu0 0.0
    %1191 = vmatprep.subr.mxu0 0.0
    %1192 = vmatpush1.msra.mxu0 0.0
    %1193 = vmatprep.subr.mxu0 0.0
    %1194 = vmatpush1.msra.mxu0 0.0
    %1195 = vmatprep.subr.mxu0 0.0
    %1196 = vmatpush1.msra.mxu0 0.0
    %1197 = vmatprep.subr.mxu0 0.0
    %1198 = vmatpush1.msra.mxu0 0.0
    %1199 = vmatprep.subr.mxu0 0.0
    %1200 = vmatpush1.msra.mxu0 0.0
    %1201 = vmatprep.subr.mxu0 0.0
    %1202 = vmatpush1.msra.mxu0 0.0
    %1203 = vmatprep.subr.mxu0 0.0
    %1204 = vmatpush1.msra.mxu0 0.0
    %1205 = vmatprep.subr.mxu0 0.0
    %1206 = vmatpush1.msra.mxu0 0.0
    %1207 = vmatprep.subr.mxu0 0.0
    %1208 = vmatpush1.msra.mxu0 0.0
    %1209 = vmatprep.subr.mxu0 0.0
    %1210 = vmatpush1.msra.mxu0 0.0
    %1211 = vmatprep.subr.mxu0 0.0
    %1212 = vmatpush1.msra.mxu0 0.0
    %1213 = vmatprep.subr.mxu0 0.0
    %1214 = vmatpush1.msra.mxu0 0.0
    %1215 = vmatprep.subr.mxu0 0.0
    %1216 = vmatpush1.msra.mxu0 0.0
    %1217 = vmatprep.subr.mxu0 0.0
    %1218 = vmatpush1.msra.mxu0 0.0
    %1219 = vmatprep.subr.mxu0 0.0
    %1220 = vmatpush1.msra.mxu0 0.0
    %1221 = vmatprep.mubr.f32.mxu0 0.0
    %1222 = vmatmul.mubr.f32.gmra.mrb[0].mxu0 %v1155
    %v1223 = vpop.f32.mrb[0].mxu0
    %v1224 = vadd.f32 0.0, %v1223
    %v1225 = vpop.f32.mrb[0].mxu0
    %1226 = vdwg.mxu0
    %v1227 = vadd.f32 %v1150, %v1224
    %v1228 = vxor.u32 %v1227, 2147483648
    %v1229 = vmul.f32 %v1228, 1.442695
    %v1230 = vpow.pop %v1229
    %v1231 = vadd.f32 %v1230, 1.0
    %v1232 = vrcp.pop %v1231
    %v1233 = vmul.f32 1.0, %v1232
    %v1234 = vtanh.pop %v1227
    %v1235 = vmul.f32 %v1233, %v975
    %1237 = vrot.lane.b32.xlu0 %v1234, 64
    %v1238 = vpop.permute.xlu0 %1237
    %v1240 = vmul.f32 %v1233, %v1238
    %1242 = vrot.lane.b32.xlu0 %v1240, 32
    %v1243 = vpop.permute.xlu0 %1242
    %v1245 = vadd.f32 %v1235, %v1243
    %v1246 = vtanh.pop %v1245
    %1248 = vrot.lane.b32.xlu0 %v1246, 64
    %v1249 = vpop.permute.xlu0 %1248
    %v1251 = vmul.f32 %v1233, %v1249
    %s1252 = scalar_lea.vmem [#allocation5], 6
    %v1253 = vld [vmem:[%s1252] sm:$0x3]
    %v1256 = vunpack.c.l.s4 1983009808
    %v1257 = vunpack.c.0.s8 %v1256
    %v1258 = vlaneseq
    %v1259 = vshrl.u32 %v1258, 7
    %v1260 = vsub.s32 %v1257, %v1259
    %v1261 = vrot.slane %v1251, %v1260
    %1262 = vrot.lane.b32.xlu0 %v1261, 32
    %v1263 = vpop.permute.xlu0 %1262
    %v1265 = vmul.f32 %v1253, %v1263
    %s1266 = scalar_lea.vmem [#allocation3], 6
    %1267 = vst.msk [vmem:[%s1266] sm:$0x3] %vm67, %v1265
    %s1268 = scalar_lea.vmem [#allocation2], 16
    %v1269 = vld [vmem:[%s1268] sm:$0xf]
    %v1270 = vld [vmem:[%s6] sm:$0xff]
    %v1271 = vld [vmem:[%s6 + $0x8] sm:$0xff]
    %v1272 = vld [vmem:[%s6 + $0x10] sm:$0xff]
    %v1273 = vld [vmem:[%s6 + $0x18] sm:$0xff]
    %v1275 = vsel %vm360, %v1134, 0
    %1277 = vmatprep.subr.mxu0 0.0
    %1278 = vmatpush1.msra.mxu0 %v1270
    %1279 = vmatprep.subr.mxu0 0.0
    %1280 = vmatpush1.msra.mxu0 %v1271
    %1281 = vmatprep.subr.mxu0 0.0
    %1282 = vmatpush1.msra.mxu0 %v1272
    %1283 = vmatprep.subr.mxu0 0.0
    %1284 = vmatpush1.msra.mxu0 %v1273
    %1285 = vmatprep.subr.mxu0 0.0
    %1286 = vmatpush1.msra.mxu0 0.0
    %1287 = vmatprep.subr.mxu0 0.0
    %1288 = vmatpush1.msra.mxu0 0.0
    %1289 = vmatprep.subr.mxu0 0.0
    %1290 = vmatpush1.msra.mxu0 0.0
    %1291 = vmatprep.subr.mxu0 0.0
    %1292 = vmatpush1.msra.mxu0 0.0
    %1293 = vmatprep.subr.mxu0 0.0
    %1294 = vmatpush1.msra.mxu0 0.0
    %1295 = vmatprep.subr.mxu0 0.0
    %1296 = vmatpush1.msra.mxu0 0.0
    %1297 = vmatprep.subr.mxu0 0.0
    %1298 = vmatpush1.msra.mxu0 0.0
    %1299 = vmatprep.subr.mxu0 0.0
    %1300 = vmatpush1.msra.mxu0 0.0
    %1301 = vmatprep.subr.mxu0 0.0
    %1302 = vmatpush1.msra.mxu0 0.0
    %1303 = vmatprep.subr.mxu0 0.0
    %1304 = vmatpush1.msra.mxu0 0.0
    %1305 = vmatprep.subr.mxu0 0.0
    %1306 = vmatpush1.msra.mxu0 0.0
    %1307 = vmatprep.subr.mxu0 0.0
    %1308 = vmatpush1.msra.mxu0 0.0
    %1309 = vmatprep.subr.mxu0 0.0
    %1310 = vmatpush1.msra.mxu0 0.0
    %1311 = vmatprep.subr.mxu0 0.0
    %1312 = vmatpush1.msra.mxu0 0.0
    %1313 = vmatprep.subr.mxu0 0.0
    %1314 = vmatpush1.msra.mxu0 0.0
    %1315 = vmatprep.subr.mxu0 0.0
    %1316 = vmatpush1.msra.mxu0 0.0
    %1317 = vmatprep.subr.mxu0 0.0
    %1318 = vmatpush1.msra.mxu0 0.0
    %1319 = vmatprep.subr.mxu0 0.0
    %1320 = vmatpush1.msra.mxu0 0.0
    %1321 = vmatprep.subr.mxu0 0.0
    %1322 = vmatpush1.msra.mxu0 0.0
    %1323 = vmatprep.subr.mxu0 0.0
    %1324 = vmatpush1.msra.mxu0 0.0
    %1325 = vmatprep.subr.mxu0 0.0
    %1326 = vmatpush1.msra.mxu0 0.0
    %1327 = vmatprep.subr.mxu0 0.0
    %1328 = vmatpush1.msra.mxu0 0.0
    %1329 = vmatprep.subr.mxu0 0.0
    %1330 = vmatpush1.msra.mxu0 0.0
    %1331 = vmatprep.subr.mxu0 0.0
    %1332 = vmatpush1.msra.mxu0 0.0
    %1333 = vmatprep.subr.mxu0 0.0
    %1334 = vmatpush1.msra.mxu0 0.0
    %1335 = vmatprep.subr.mxu0 0.0
    %1336 = vmatpush1.msra.mxu0 0.0
    %1337 = vmatprep.subr.mxu0 0.0
    %1338 = vmatpush1.msra.mxu0 0.0
    %1339 = vmatprep.subr.mxu0 0.0
    %1340 = vmatpush1.msra.mxu0 0.0
    %1341 = vmatprep.mubr.f32.mxu0 0.0
    %1342 = vmatmul.mubr.f32.gmra.mrb[0].mxu0 %v1275
    %v1343 = vpop.f32.mrb[0].mxu0
    %v1344 = vadd.f32 0.0, %v1343
    %v1345 = vpop.f32.mrb[0].mxu0
    %1346 = vdwg.mxu0
    %v1348 = vrot.slane %v1269, 2
    %v1350 = vadd.f32 %v1348, %v1344
    %v1351 = vxor.u32 %v1350, 2147483648
    %v1352 = vmul.f32 %v1351, 1.442695
    %v1353 = vpow.pop %v1352
    %v1354 = vadd.f32 %v1353, 1.0
    %v1355 = vrcp.pop %v1354
    %v1356 = vmul.f32 1.0, %v1355
    %v1357 = vtanh.pop %v1350
    %v1360 = vunpack.c.l.s4 1983009808
    %v1361 = vunpack.c.0.s8 %v1360
    %v1362 = vlaneseq
    %v1363 = vshrl.u32 %v1362, 7
    %v1364 = vsub.s32 %v1361, %v1363
    %v1365 = vrot.slane %v1148, %v1364
    %1366 = vrot.lane.b32.xlu0 %v1365, 32
    %v1367 = vpop.permute.xlu0 %1366
    %v1369 = vmul.f32 %v1356, %v1367
    %1371 = vrot.lane.b32.xlu0 %v1357, 64
    %v1372 = vpop.permute.xlu0 %1371
    %v1374 = vmul.f32 %v1356, %v1372
    %1376 = vrot.lane.b32.xlu0 %v1374, 32
    %v1377 = vpop.permute.xlu0 %1376
    %v1379 = vadd.f32 %v1369, %v1377
    %v1380 = vtanh.pop %v1379
    %1382 = vrot.lane.b32.xlu0 %v1380, 64
    %v1383 = vpop.permute.xlu0 %1382
    %v1385 = vmul.f32 %v1356, %v1383
    %s1386 = scalar_lea.vmem [#allocation5], 8
    %v1387 = vld [vmem:[%s1386] sm:$0x3]
    %v1390 = vunpack.c.l.s4 1983009808
    %v1391 = vunpack.c.0.s8 %v1390
    %v1392 = vlaneseq
    %v1393 = vshrl.u32 %v1392, 7
    %v1394 = vsub.s32 %v1391, %v1393
    %v1395 = vrot.slane %v1385, %v1394
    %1396 = vrot.lane.b32.xlu0 %v1395, 32
    %v1397 = vpop.permute.xlu0 %1396
    %v1399 = vmul.f32 %v1387, %v1397
    %s1400 = scalar_lea.vmem [#allocation4], 8
    %1401 = vst.msk [vmem:[%s1400] sm:$0x3] %vm67, %v1399
    %v1402 = vsub.f32 1.0, %v1387
    %v1403 = vmul.f32 %v1402, %v1134
    %v1404 = vadd.f32 %v1399, %v1403
    %v1407 = vunpack.c.l.s4 1983009808
    %v1408 = vunpack.c.0.s8 %v1407
    %v1409 = vlaneseq
    %v1410 = vshrl.u32 %v1409, 7
    %v1411 = vsub.s32 %v1408, %v1410
    %v1412 = vrot.slane %v1379, %v1411
    %1413 = vrot.lane.b32.xlu0 %v1412, 96
    %v1414 = vpop.permute.xlu0 %1413
    %v1416 = vmul.f32 %v1387, %v1414
    %v1417 = vmul.f32 %v1402, %v1148
    %v1418 = vadd.f32 %v1416, %v1417
    %v1419 = vld [vmem:[%s1268] sm:$0xf]
    %v1420 = vld [vmem:[%s5] sm:$0xff]
    %v1421 = vld [vmem:[%s5 + $0x8] sm:$0xff]
    %v1422 = vld [vmem:[%s5 + $0x10] sm:$0xff]
    %v1423 = vld [vmem:[%s5 + $0x18] sm:$0xff]
    %v1424 = vsel %vm360, %v1263, 0
    %1426 = vmatprep.subr.mxu0 0.0
    %1427 = vmatpush1.msra.mxu0 %v1420
    %1428 = vmatprep.subr.mxu0 0.0
    %1429 = vmatpush1.msra.mxu0 %v1421
    %1430 = vmatprep.subr.mxu0 0.0
    %1431 = vmatpush1.msra.mxu0 %v1422
    %1432 = vmatprep.subr.mxu0 0.0
    %1433 = vmatpush1.msra.mxu0 %v1423
    %1434 = vmatprep.subr.mxu0 0.0
    %1435 = vmatpush1.msra.mxu0 0.0
    %1436 = vmatprep.subr.mxu0 0.0
    %1437 = vmatpush1.msra.mxu0 0.0
    %1438 = vmatprep.subr.mxu0 0.0
    %1439 = vmatpush1.msra.mxu0 0.0
    %1440 = vmatprep.subr.mxu0 0.0
    %1441 = vmatpush1.msra.mxu0 0.0
    %1442 = vmatprep.subr.mxu0 0.0
    %1443 = vmatpush1.msra.mxu0 0.0
    %1444 = vmatprep.subr.mxu0 0.0
    %1445 = vmatpush1.msra.mxu0 0.0
    %1446 = vmatprep.subr.mxu0 0.0
    %1447 = vmatpush1.msra.mxu0 0.0
    %1448 = vmatprep.subr.mxu0 0.0
    %1449 = vmatpush1.msra.mxu0 0.0
    %1450 = vmatprep.subr.mxu0 0.0
    %1451 = vmatpush1.msra.mxu0 0.0
    %1452 = vmatprep.subr.mxu0 0.0
    %1453 = vmatpush1.msra.mxu0 0.0
    %1454 = vmatprep.subr.mxu0 0.0
    %1455 = vmatpush1.msra.mxu0 0.0
    %1456 = vmatprep.subr.mxu0 0.0
    %1457 = vmatpush1.msra.mxu0 0.0
    %1458 = vmatprep.subr.mxu0 0.0
    %1459 = vmatpush1.msra.mxu0 0.0
    %1460 = vmatprep.subr.mxu0 0.0
    %1461 = vmatpush1.msra.mxu0 0.0
    %1462 = vmatprep.subr.mxu0 0.0
    %1463 = vmatpush1.msra.mxu0 0.0
    %1464 = vmatprep.subr.mxu0 0.0
    %1465 = vmatpush1.msra.mxu0 0.0
    %1466 = vmatprep.subr.mxu0 0.0
    %1467 = vmatpush1.msra.mxu0 0.0
    %1468 = vmatprep.subr.mxu0 0.0
    %1469 = vmatpush1.msra.mxu0 0.0
    %1470 = vmatprep.subr.mxu0 0.0
    %1471 = vmatpush1.msra.mxu0 0.0
    %1472 = vmatprep.subr.mxu0 0.0
    %1473 = vmatpush1.msra.mxu0 0.0
    %1474 = vmatprep.subr.mxu0 0.0
    %1475 = vmatpush1.msra.mxu0 0.0
    %1476 = vmatprep.subr.mxu0 0.0
    %1477 = vmatpush1.msra.mxu0 0.0
    %1478 = vmatprep.subr.mxu0 0.0
    %1479 = vmatpush1.msra.mxu0 0.0
    %1480 = vmatprep.subr.mxu0 0.0
    %1481 = vmatpush1.msra.mxu0 0.0
    %1482 = vmatprep.subr.mxu0 0.0
    %1483 = vmatpush1.msra.mxu0 0.0
    %1484 = vmatprep.subr.mxu0 0.0
    %1485 = vmatpush1.msra.mxu0 0.0
    %1486 = vmatprep.subr.mxu0 0.0
    %1487 = vmatpush1.msra.mxu0 0.0
    %1488 = vmatprep.subr.mxu0 0.0
    %1489 = vmatpush1.msra.mxu0 0.0
    %1490 = vmatprep.mubr.f32.mxu0 0.0
    %1491 = vmatmul.mubr.f32.gmra.mrb[0].mxu0 %v1424
    %v1492 = vpop.f32.mrb[0].mxu0
    %v1493 = vadd.f32 0.0, %v1492
    %v1494 = vpop.f32.mrb[0].mxu0
    %1495 = vdwg.mxu0
    %v1496 = vadd.f32 %v1419, %v1493
    %v1497 = vxor.u32 %v1496, 2147483648
    %v1498 = vmul.f32 %v1497, 1.442695
    %v1499 = vpow.pop %v1498
    %v1500 = vadd.f32 %v1499, 1.0
    %v1501 = vrcp.pop %v1500
    %v1502 = vmul.f32 1.0, %v1501
    %v1503 = vtanh.pop %v1496
    %v1504 = vmul.f32 %v1502, %v1245
    %1506 = vrot.lane.b32.xlu0 %v1503, 64
    %v1507 = vpop.permute.xlu0 %1506
    %v1509 = vmul.f32 %v1502, %v1507
    %1511 = vrot.lane.b32.xlu0 %v1509, 32
    %v1512 = vpop.permute.xlu0 %1511
    %v1514 = vadd.f32 %v1504, %v1512
    %v1515 = vtanh.pop %v1514
    %1517 = vrot.lane.b32.xlu0 %v1515, 64
    %v1518 = vpop.permute.xlu0 %1517
    %v1520 = vmul.f32 %v1502, %v1518
    %v1521 = vld [vmem:[%s1386] sm:$0x3]
    %v1524 = vunpack.c.l.s4 1983009808
    %v1525 = vunpack.c.0.s8 %v1524
    %v1526 = vlaneseq
    %v1527 = vshrl.u32 %v1526, 7
    %v1528 = vsub.s32 %v1525, %v1527
    %v1529 = vrot.slane %v1520, %v1528
    %1530 = vrot.lane.b32.xlu0 %v1529, 32
    %v1531 = vpop.permute.xlu0 %1530
    %v1533 = vmul.f32 %v1521, %v1531
    %s1534 = scalar_lea.vmem [#allocation3], 8
    %1535 = vst.msk [vmem:[%s1534] sm:$0x3] %vm67, %v1533
    %v1536 = vld [vmem:[%s1149] sm:$0xf]
    %v1537 = vld [vmem:[%s6] sm:$0xff]
    %v1538 = vld [vmem:[%s6 + $0x8] sm:$0xff]
    %v1539 = vld [vmem:[%s6 + $0x10] sm:$0xff]
    %v1540 = vld [vmem:[%s6 + $0x18] sm:$0xff]
    %v1542 = vsel %vm360, %v1404, 0
    %1544 = vmatprep.subr.mxu0 0.0
    %1545 = vmatpush1.msra.mxu0 %v1537
    %1546 = vmatprep.subr.mxu0 0.0
    %1547 = vmatpush1.msra.mxu0 %v1538
    %1548 = vmatprep.subr.mxu0 0.0
    %1549 = vmatpush1.msra.mxu0 %v1539
    %1550 = vmatprep.subr.mxu0 0.0
    %1551 = vmatpush1.msra.mxu0 %v1540
    %1552 = vmatprep.subr.mxu0 0.0
    %1553 = vmatpush1.msra.mxu0 0.0
    %1554 = vmatprep.subr.mxu0 0.0
    %1555 = vmatpush1.msra.mxu0 0.0
    %1556 = vmatprep.subr.mxu0 0.0
    %1557 = vmatpush1.msra.mxu0 0.0
    %1558 = vmatprep.subr.mxu0 0.0
    %1559 = vmatpush1.msra.mxu0 0.0
    %1560 = vmatprep.subr.mxu0 0.0
    %1561 = vmatpush1.msra.mxu0 0.0
    %1562 = vmatprep.subr.mxu0 0.0
    %1563 = vmatpush1.msra.mxu0 0.0
    %1564 = vmatprep.subr.mxu0 0.0
    %1565 = vmatpush1.msra.mxu0 0.0
    %1566 = vmatprep.subr.mxu0 0.0
    %1567 = vmatpush1.msra.mxu0 0.0
    %1568 = vmatprep.subr.mxu0 0.0
    %1569 = vmatpush1.msra.mxu0 0.0
    %1570 = vmatprep.subr.mxu0 0.0
    %1571 = vmatpush1.msra.mxu0 0.0
    %1572 = vmatprep.subr.mxu0 0.0
    %1573 = vmatpush1.msra.mxu0 0.0
    %1574 = vmatprep.subr.mxu0 0.0
    %1575 = vmatpush1.msra.mxu0 0.0
    %1576 = vmatprep.subr.mxu0 0.0
    %1577 = vmatpush1.msra.mxu0 0.0
    %1578 = vmatprep.subr.mxu0 0.0
    %1579 = vmatpush1.msra.mxu0 0.0
    %1580 = vmatprep.subr.mxu0 0.0
    %1581 = vmatpush1.msra.mxu0 0.0
    %1582 = vmatprep.subr.mxu0 0.0
    %1583 = vmatpush1.msra.mxu0 0.0
    %1584 = vmatprep.subr.mxu0 0.0
    %1585 = vmatpush1.msra.mxu0 0.0
    %1586 = vmatprep.subr.mxu0 0.0
    %1587 = vmatpush1.msra.mxu0 0.0
    %1588 = vmatprep.subr.mxu0 0.0
    %1589 = vmatpush1.msra.mxu0 0.0
    %1590 = vmatprep.subr.mxu0 0.0
    %1591 = vmatpush1.msra.mxu0 0.0
    %1592 = vmatprep.subr.mxu0 0.0
    %1593 = vmatpush1.msra.mxu0 0.0
    %1594 = vmatprep.subr.mxu0 0.0
    %1595 = vmatpush1.msra.mxu0 0.0
    %1596 = vmatprep.subr.mxu0 0.0
    %1597 = vmatpush1.msra.mxu0 0.0
    %1598 = vmatprep.subr.mxu0 0.0
    %1599 = vmatpush1.msra.mxu0 0.0
    %1600 = vmatprep.subr.mxu0 0.0
    %1601 = vmatpush1.msra.mxu0 0.0
    %1602 = vmatprep.subr.mxu0 0.0
    %1603 = vmatpush1.msra.mxu0 0.0
    %1604 = vmatprep.subr.mxu0 0.0
    %1605 = vmatpush1.msra.mxu0 0.0
    %1606 = vmatprep.subr.mxu0 0.0
    %1607 = vmatpush1.msra.mxu0 0.0
    %1608 = vmatprep.mubr.f32.mxu0 0.0
    %1609 = vmatmul.mubr.f32.gmra.mrb[0].mxu0 %v1542
    %v1610 = vpop.f32.mrb[0].mxu0
    %v1611 = vadd.f32 0.0, %v1610
    %v1612 = vpop.f32.mrb[0].mxu0
    %1613 = vdwg.mxu0
    %v1615 = vrot.slane %v1536, 2
    %v1617 = vadd.f32 %v1615, %v1611
    %v1618 = vxor.u32 %v1617, 2147483648
    %v1619 = vmul.f32 %v1618, 1.442695
    %v1620 = vpow.pop %v1619
    %v1621 = vadd.f32 %v1620, 1.0
    %v1622 = vrcp.pop %v1621
    %v1623 = vmul.f32 1.0, %v1622
    %v1624 = vtanh.pop %v1617
    %v1627 = vunpack.c.l.s4 1983009808
    %v1628 = vunpack.c.0.s8 %v1627
    %v1629 = vlaneseq
    %v1630 = vshrl.u32 %v1629, 7
    %v1631 = vsub.s32 %v1628, %v1630
    %v1632 = vrot.slane %v1418, %v1631
    %1633 = vrot.lane.b32.xlu0 %v1632, 32
    %v1634 = vpop.permute.xlu0 %1633
    %v1636 = vmul.f32 %v1623, %v1634
    %1638 = vrot.lane.b32.xlu0 %v1624, 64
    %v1639 = vpop.permute.xlu0 %1638
    %v1641 = vmul.f32 %v1623, %v1639
    %1643 = vrot.lane.b32.xlu0 %v1641, 32
    %v1644 = vpop.permute.xlu0 %1643
    %v1646 = vadd.f32 %v1636, %v1644
    %v1647 = vtanh.pop %v1646
    %1649 = vrot.lane.b32.xlu0 %v1647, 64
    %v1650 = vpop.permute.xlu0 %1649
    %v1652 = vmul.f32 %v1623, %v1650
    %v1653 = vld [vmem:[%s1252] sm:$0x3]
    %v1656 = vunpack.c.l.s4 1983009808
    %v1657 = vunpack.c.0.s8 %v1656
    %v1658 = vlaneseq
    %v1659 = vshrl.u32 %v1658, 7
    %v1660 = vsub.s32 %v1657, %v1659
    %v1661 = vrot.slane %v1652, %v1660
    %1662 = vrot.lane.b32.xlu0 %v1661, 32
    %v1663 = vpop.permute.xlu0 %1662
    %v1665 = vmul.f32 %v1653, %v1663
    %s1666 = scalar_lea.vmem [#allocation4], 6
    %1667 = vst.msk [vmem:[%s1666] sm:$0x3] %vm67, %v1665
    %v1668 = vsub.f32 1.0, %v1653
    %v1669 = vmul.f32 %v1668, %v1404
    %v1670 = vadd.f32 %v1665, %v1669
    %v1673 = vunpack.c.l.s4 1983009808
    %v1674 = vunpack.c.0.s8 %v1673
    %v1675 = vlaneseq
    %v1676 = vshrl.u32 %v1675, 7
    %v1677 = vsub.s32 %v1674, %v1676
    %v1678 = vrot.slane %v1646, %v1677
    %1679 = vrot.lane.b32.xlu0 %v1678, 96
    %v1680 = vpop.permute.xlu0 %1679
    %v1682 = vmul.f32 %v1653, %v1680
    %v1683 = vmul.f32 %v1668, %v1418
    %v1684 = vadd.f32 %v1682, %v1683
    %v1685 = vld [vmem:[%s998] sm:$0xf]
    %v1686 = vld [vmem:[%s5] sm:$0xff]
    %v1687 = vld [vmem:[%s5 + $0x8] sm:$0xff]
    %v1688 = vld [vmem:[%s5 + $0x10] sm:$0xff]
    %v1689 = vld [vmem:[%s5 + $0x18] sm:$0xff]
    %v1690 = vsel %vm360, %v1531, 0
    %1692 = vmatprep.subr.mxu0 0.0
    %1693 = vmatpush1.msra.mxu0 %v1686
    %1694 = vmatprep.subr.mxu0 0.0
    %1695 = vmatpush1.msra.mxu0 %v1687
    %1696 = vmatprep.subr.mxu0 0.0
    %1697 = vmatpush1.msra.mxu0 %v1688
    %1698 = vmatprep.subr.mxu0 0.0
    %1699 = vmatpush1.msra.mxu0 %v1689
    %1700 = vmatprep.subr.mxu0 0.0
    %1701 = vmatpush1.msra.mxu0 0.0
    %1702 = vmatprep.subr.mxu0 0.0
    %1703 = vmatpush1.msra.mxu0 0.0
    %1704 = vmatprep.subr.mxu0 0.0
    %1705 = vmatpush1.msra.mxu0 0.0
    %1706 = vmatprep.subr.mxu0 0.0
    %1707 = vmatpush1.msra.mxu0 0.0
    %1708 = vmatprep.subr.mxu0 0.0
    %1709 = vmatpush1.msra.mxu0 0.0
    %1710 = vmatprep.subr.mxu0 0.0
    %1711 = vmatpush1.msra.mxu0 0.0
    %1712 = vmatprep.subr.mxu0 0.0
    %1713 = vmatpush1.msra.mxu0 0.0
    %1714 = vmatprep.subr.mxu0 0.0
    %1715 = vmatpush1.msra.mxu0 0.0
    %1716 = vmatprep.subr.mxu0 0.0
    %1717 = vmatpush1.msra.mxu0 0.0
    %1718 = vmatprep.subr.mxu0 0.0
    %1719 = vmatpush1.msra.mxu0 0.0
    %1720 = vmatprep.subr.mxu0 0.0
    %1721 = vmatpush1.msra.mxu0 0.0
    %1722 = vmatprep.subr.mxu0 0.0
    %1723 = vmatpush1.msra.mxu0 0.0
    %1724 = vmatprep.subr.mxu0 0.0
    %1725 = vmatpush1.msra.mxu0 0.0
    %1726 = vmatprep.subr.mxu0 0.0
    %1727 = vmatpush1.msra.mxu0 0.0
    %1728 = vmatprep.subr.mxu0 0.0
    %1729 = vmatpush1.msra.mxu0 0.0
    %1730 = vmatprep.subr.mxu0 0.0
    %1731 = vmatpush1.msra.mxu0 0.0
    %1732 = vmatprep.subr.mxu0 0.0
    %1733 = vmatpush1.msra.mxu0 0.0
    %1734 = vmatprep.subr.mxu0 0.0
    %1735 = vmatpush1.msra.mxu0 0.0
    %1736 = vmatprep.subr.mxu0 0.0
    %1737 = vmatpush1.msra.mxu0 0.0
    %1738 = vmatprep.subr.mxu0 0.0
    %1739 = vmatpush1.msra.mxu0 0.0
    %1740 = vmatprep.subr.mxu0 0.0
    %1741 = vmatpush1.msra.mxu0 0.0
    %1742 = vmatprep.subr.mxu0 0.0
    %1743 = vmatpush1.msra.mxu0 0.0
    %1744 = vmatprep.subr.mxu0 0.0
    %1745 = vmatpush1.msra.mxu0 0.0
    %1746 = vmatprep.subr.mxu0 0.0
    %1747 = vmatpush1.msra.mxu0 0.0
    %1748 = vmatprep.subr.mxu0 0.0
    %1749 = vmatpush1.msra.mxu0 0.0
    %1750 = vmatprep.subr.mxu0 0.0
    %1751 = vmatpush1.msra.mxu0 0.0
    %1752 = vmatprep.subr.mxu0 0.0
    %1753 = vmatpush1.msra.mxu0 0.0
    %1754 = vmatprep.subr.mxu0 0.0
    %1755 = vmatpush1.msra.mxu0 0.0
    %1756 = vmatprep.mubr.f32.mxu0 0.0
    %1757 = vmatmul.mubr.f32.gmra.mrb[0].mxu0 %v1690
    %v1758 = vpop.f32.mrb[0].mxu0
    %v1759 = vadd.f32 0.0, %v1758
    %v1760 = vpop.f32.mrb[0].mxu0
    %1761 = vdwg.mxu0
    %v1762 = vadd.f32 %v1685, %v1759
    %v1763 = vxor.u32 %v1762, 2147483648
    %v1764 = vmul.f32 %v1763, 1.442695
    %v1765 = vpow.pop %v1764
    %v1766 = vadd.f32 %v1765, 1.0
    %v1767 = vrcp.pop %v1766
    %v1768 = vmul.f32 1.0, %v1767
    %v1769 = vtanh.pop %v1762
    %v1770 = vmul.f32 %v1768, %v1514
    %1772 = vrot.lane.b32.xlu0 %v1769, 64
    %v1773 = vpop.permute.xlu0 %1772
    %v1775 = vmul.f32 %v1768, %v1773
    %1777 = vrot.lane.b32.xlu0 %v1775, 32
    %v1778 = vpop.permute.xlu0 %1777
    %v1780 = vadd.f32 %v1770, %v1778
    %v1781 = vtanh.pop %v1780
    %1783 = vrot.lane.b32.xlu0 %v1781, 64
    %v1784 = vpop.permute.xlu0 %1783
    %v1786 = vmul.f32 %v1768, %v1784
    %v1787 = vld [vmem:[%s1116] sm:$0x3]
    %v1790 = vunpack.c.l.s4 1983009808
    %v1791 = vunpack.c.0.s8 %v1790
    %v1792 = vlaneseq
    %v1793 = vshrl.u32 %v1792, 7
    %v1794 = vsub.s32 %v1791, %v1793
    %v1795 = vrot.slane %v1786, %v1794
    %1796 = vrot.lane.b32.xlu0 %v1795, 32
    %v1797 = vpop.permute.xlu0 %1796
    %v1799 = vmul.f32 %v1787, %v1797
    %s1800 = scalar_lea.vmem [#allocation3], 10
    %1801 = vst.msk [vmem:[%s1800] sm:$0x3] %vm67, %v1799
    %v1802 = vld [vmem:[%s879] sm:$0xf]
    %v1803 = vld [vmem:[%s6] sm:$0xff]
    %v1804 = vld [vmem:[%s6 + $0x8] sm:$0xff]
    %v1805 = vld [vmem:[%s6 + $0x10] sm:$0xff]
    %v1806 = vld [vmem:[%s6 + $0x18] sm:$0xff]
    %v1808 = vsel %vm360, %v1670, 0
    %1810 = vmatprep.subr.mxu0 0.0
    %1811 = vmatpush1.msra.mxu0 %v1803
    %1812 = vmatprep.subr.mxu0 0.0
    %1813 = vmatpush1.msra.mxu0 %v1804
    %1814 = vmatprep.subr.mxu0 0.0
    %1815 = vmatpush1.msra.mxu0 %v1805
    %1816 = vmatprep.subr.mxu0 0.0
    %1817 = vmatpush1.msra.mxu0 %v1806
    %1818 = vmatprep.subr.mxu0 0.0
    %1819 = vmatpush1.msra.mxu0 0.0
    %1820 = vmatprep.subr.mxu0 0.0
    %1821 = vmatpush1.msra.mxu0 0.0
    %1822 = vmatprep.subr.mxu0 0.0
    %1823 = vmatpush1.msra.mxu0 0.0
    %1824 = vmatprep.subr.mxu0 0.0
    %1825 = vmatpush1.msra.mxu0 0.0
    %1826 = vmatprep.subr.mxu0 0.0
    %1827 = vmatpush1.msra.mxu0 0.0
    %1828 = vmatprep.subr.mxu0 0.0
    %1829 = vmatpush1.msra.mxu0 0.0
    %1830 = vmatprep.subr.mxu0 0.0
    %1831 = vmatpush1.msra.mxu0 0.0
    %1832 = vmatprep.subr.mxu0 0.0
    %1833 = vmatpush1.msra.mxu0 0.0
    %1834 = vmatprep.subr.mxu0 0.0
    %1835 = vmatpush1.msra.mxu0 0.0
    %1836 = vmatprep.subr.mxu0 0.0
    %1837 = vmatpush1.msra.mxu0 0.0
    %1838 = vmatprep.subr.mxu0 0.0
    %1839 = vmatpush1.msra.mxu0 0.0
    %1840 = vmatprep.subr.mxu0 0.0
    %1841 = vmatpush1.msra.mxu0 0.0
    %1842 = vmatprep.subr.mxu0 0.0
    %1843 = vmatpush1.msra.mxu0 0.0
    %1844 = vmatprep.subr.mxu0 0.0
    %1845 = vmatpush1.msra.mxu0 0.0
    %1846 = vmatprep.subr.mxu0 0.0
    %1847 = vmatpush1.msra.mxu0 0.0
    %1848 = vmatprep.subr.mxu0 0.0
    %1849 = vmatpush1.msra.mxu0 0.0
    %1850 = vmatprep.subr.mxu0 0.0
    %1851 = vmatpush1.msra.mxu0 0.0
    %1852 = vmatprep.subr.mxu0 0.0
    %1853 = vmatpush1.msra.mxu0 0.0
    %1854 = vmatprep.subr.mxu0 0.0
    %1855 = vmatpush1.msra.mxu0 0.0
    %1856 = vmatprep.subr.mxu0 0.0
    %1857 = vmatpush1.msra.mxu0 0.0
    %1858 = vmatprep.subr.mxu0 0.0
    %1859 = vmatpush1.msra.mxu0 0.0
    %1860 = vmatprep.subr.mxu0 0.0
    %1861 = vmatpush1.msra.mxu0 0.0
    %1862 = vmatprep.subr.mxu0 0.0
    %1863 = vmatpush1.msra.mxu0 0.0
    %1864 = vmatprep.subr.mxu0 0.0
    %1865 = vmatpush1.msra.mxu0 0.0
    %1866 = vmatprep.subr.mxu0 0.0
    %1867 = vmatpush1.msra.mxu0 0.0
    %1868 = vmatprep.subr.mxu0 0.0
    %1869 = vmatpush1.msra.mxu0 0.0
    %1870 = vmatprep.subr.mxu0 0.0
    %1871 = vmatpush1.msra.mxu0 0.0
    %1872 = vmatprep.subr.mxu0 0.0
    %1873 = vmatpush1.msra.mxu0 0.0
    %1874 = vmatprep.mubr.f32.mxu0 0.0
    %1875 = vmatmul.mubr.f32.gmra.mrb[0].mxu0 %v1808
    %v1876 = vpop.f32.mrb[0].mxu0
    %v1877 = vadd.f32 0.0, %v1876
    %v1878 = vpop.f32.mrb[0].mxu0
    %1879 = vdwg.mxu0
    %v1881 = vrot.slane %v1802, 2
    %v1883 = vadd.f32 %v1881, %v1877
    %v1884 = vxor.u32 %v1883, 2147483648
    %v1885 = vmul.f32 %v1884, 1.442695
    %v1886 = vpow.pop %v1885
    %v1887 = vadd.f32 %v1886, 1.0
    %v1888 = vrcp.pop %v1887
    %v1889 = vmul.f32 1.0, %v1888
    %v1890 = vtanh.pop %v1883
    %v1893 = vunpack.c.l.s4 1983009808
    %v1894 = vunpack.c.0.s8 %v1893
    %v1895 = vlaneseq
    %v1896 = vshrl.u32 %v1895, 7
    %v1897 = vsub.s32 %v1894, %v1896
    %v1898 = vrot.slane %v1684, %v1897
    %1899 = vrot.lane.b32.xlu0 %v1898, 32
    %v1900 = vpop.permute.xlu0 %1899
    %v1902 = vmul.f32 %v1889, %v1900
    %1904 = vrot.lane.b32.xlu0 %v1890, 64
    %v1905 = vpop.permute.xlu0 %1904
    %v1907 = vmul.f32 %v1889, %v1905
    %1909 = vrot.lane.b32.xlu0 %v1907, 32
    %v1910 = vpop.permute.xlu0 %1909
    %v1912 = vadd.f32 %v1902, %v1910
    %v1913 = vtanh.pop %v1912
    %1915 = vrot.lane.b32.xlu0 %v1913, 64
    %v1916 = vpop.permute.xlu0 %1915
    %v1918 = vmul.f32 %v1889, %v1916
    %v1919 = vld [vmem:[%s982] sm:$0x3]
    %v1922 = vunpack.c.l.s4 1983009808
    %v1923 = vunpack.c.0.s8 %v1922
    %v1924 = vlaneseq
    %v1925 = vshrl.u32 %v1924, 7
    %v1926 = vsub.s32 %v1923, %v1925
    %v1927 = vrot.slane %v1918, %v1926
    %1928 = vrot.lane.b32.xlu0 %v1927, 32
    %v1929 = vpop.permute.xlu0 %1928
    %v1931 = vmul.f32 %v1919, %v1929
    %s1932 = scalar_lea.vmem [#allocation4], 4
    %1933 = vst.msk [vmem:[%s1932] sm:$0x3] %vm67, %v1931
    %v1934 = vsub.f32 1.0, %v1919
    %v1935 = vmul.f32 %v1934, %v1670
    %v1936 = vadd.f32 %v1931, %v1935
    %v1939 = vunpack.c.l.s4 1983009808
    %v1940 = vunpack.c.0.s8 %v1939
    %v1941 = vlaneseq
    %v1942 = vshrl.u32 %v1941, 7
    %v1943 = vsub.s32 %v1940, %v1942
    %v1944 = vrot.slane %v1912, %v1943
    %1945 = vrot.lane.b32.xlu0 %v1944, 96
    %v1946 = vpop.permute.xlu0 %1945
    %v1948 = vmul.f32 %v1919, %v1946
    %v1949 = vmul.f32 %v1934, %v1684
    %v1950 = vadd.f32 %v1948, %v1949
    %v1951 = vld [vmem:[%s728] sm:$0xf]
    %v1952 = vld [vmem:[%s5] sm:$0xff]
    %v1953 = vld [vmem:[%s5 + $0x8] sm:$0xff]
    %v1954 = vld [vmem:[%s5 + $0x10] sm:$0xff]
    %v1955 = vld [vmem:[%s5 + $0x18] sm:$0xff]
    %v1956 = vsel %vm360, %v1797, 0
    %1958 = vmatprep.subr.mxu0 0.0
    %1959 = vmatpush1.msra.mxu0 %v1952
    %1960 = vmatprep.subr.mxu0 0.0
    %1961 = vmatpush1.msra.mxu0 %v1953
    %1962 = vmatprep.subr.mxu0 0.0
    %1963 = vmatpush1.msra.mxu0 %v1954
    %1964 = vmatprep.subr.mxu0 0.0
    %1965 = vmatpush1.msra.mxu0 %v1955
    %1966 = vmatprep.subr.mxu0 0.0
    %1967 = vmatpush1.msra.mxu0 0.0
    %1968 = vmatprep.subr.mxu0 0.0
    %1969 = vmatpush1.msra.mxu0 0.0
    %1970 = vmatprep.subr.mxu0 0.0
    %1971 = vmatpush1.msra.mxu0 0.0
    %1972 = vmatprep.subr.mxu0 0.0
    %1973 = vmatpush1.msra.mxu0 0.0
    %1974 = vmatprep.subr.mxu0 0.0
    %1975 = vmatpush1.msra.mxu0 0.0
    %1976 = vmatprep.subr.mxu0 0.0
    %1977 = vmatpush1.msra.mxu0 0.0
    %1978 = vmatprep.subr.mxu0 0.0
    %1979 = vmatpush1.msra.mxu0 0.0
    %1980 = vmatprep.subr.mxu0 0.0
    %1981 = vmatpush1.msra.mxu0 0.0
    %1982 = vmatprep.subr.mxu0 0.0
    %1983 = vmatpush1.msra.mxu0 0.0
    %1984 = vmatprep.subr.mxu0 0.0
    %1985 = vmatpush1.msra.mxu0 0.0
    %1986 = vmatprep.subr.mxu0 0.0
    %1987 = vmatpush1.msra.mxu0 0.0
    %1988 = vmatprep.subr.mxu0 0.0
    %1989 = vmatpush1.msra.mxu0 0.0
    %1990 = vmatprep.subr.mxu0 0.0
    %1991 = vmatpush1.msra.mxu0 0.0
    %1992 = vmatprep.subr.mxu0 0.0
    %1993 = vmatpush1.msra.mxu0 0.0
    %1994 = vmatprep.subr.mxu0 0.0
    %1995 = vmatpush1.msra.mxu0 0.0
    %1996 = vmatprep.subr.mxu0 0.0
    %1997 = vmatpush1.msra.mxu0 0.0
    %1998 = vmatprep.subr.mxu0 0.0
    %1999 = vmatpush1.msra.mxu0 0.0
    %2000 = vmatprep.subr.mxu0 0.0
    %2001 = vmatpush1.msra.mxu0 0.0
    %2002 = vmatprep.subr.mxu0 0.0
    %2003 = vmatpush1.msra.mxu0 0.0
    %2004 = vmatprep.subr.mxu0 0.0
    %2005 = vmatpush1.msra.mxu0 0.0
    %2006 = vmatprep.subr.mxu0 0.0
    %2007 = vmatpush1.msra.mxu0 0.0
    %2008 = vmatprep.subr.mxu0 0.0
    %2009 = vmatpush1.msra.mxu0 0.0
    %2010 = vmatprep.subr.mxu0 0.0
    %2011 = vmatpush1.msra.mxu0 0.0
    %2012 = vmatprep.subr.mxu0 0.0
    %2013 = vmatpush1.msra.mxu0 0.0
    %2014 = vmatprep.subr.mxu0 0.0
    %2015 = vmatpush1.msra.mxu0 0.0
    %2016 = vmatprep.subr.mxu0 0.0
    %2017 = vmatpush1.msra.mxu0 0.0
    %2018 = vmatprep.subr.mxu0 0.0
    %2019 = vmatpush1.msra.mxu0 0.0
    %2020 = vmatprep.subr.mxu0 0.0
    %2021 = vmatpush1.msra.mxu0 0.0
    %2022 = vmatprep.mubr.f32.mxu0 0.0
    %2023 = vmatmul.mubr.f32.gmra.mrb[0].mxu0 %v1956
    %v2024 = vpop.f32.mrb[0].mxu0
    %v2025 = vadd.f32 0.0, %v2024
    %v2026 = vpop.f32.mrb[0].mxu0
    %2027 = vdwg.mxu0
    %v2028 = vadd.f32 %v1951, %v2025
    %v2029 = vxor.u32 %v2028, 2147483648
    %v2030 = vmul.f32 %v2029, 1.442695
    %v2031 = vpow.pop %v2030
    %v2032 = vadd.f32 %v2031, 1.0
    %v2033 = vrcp.pop %v2032
    %v2034 = vmul.f32 1.0, %v2033
    %v2035 = vtanh.pop %v2028
    %v2036 = vmul.f32 %v2034, %v1780
    %2038 = vrot.lane.b32.xlu0 %v2035, 64
    %v2039 = vpop.permute.xlu0 %2038
    %v2041 = vmul.f32 %v2034, %v2039
    %2043 = vrot.lane.b32.xlu0 %v2041, 32
    %v2044 = vpop.permute.xlu0 %2043
    %v2046 = vadd.f32 %v2036, %v2044
    %v2047 = vtanh.pop %v2046
    %2049 = vrot.lane.b32.xlu0 %v2047, 64
    %v2050 = vpop.permute.xlu0 %2049
    %v2052 = vmul.f32 %v2034, %v2050
    %v2053 = vld [vmem:[%s846] sm:$0x3]
    %v2056 = vunpack.c.l.s4 1983009808
    %v2057 = vunpack.c.0.s8 %v2056
    %v2058 = vlaneseq
    %v2059 = vshrl.u32 %v2058, 7
    %v2060 = vsub.s32 %v2057, %v2059
    %v2061 = vrot.slane %v2052, %v2060
    %2062 = vrot.lane.b32.xlu0 %v2061, 32
    %v2063 = vpop.permute.xlu0 %2062
    %v2065 = vmul.f32 %v2053, %v2063
    %s2066 = scalar_lea.vmem [#allocation3], 12
    %2067 = vst.msk [vmem:[%s2066] sm:$0x3] %vm67, %v2065
    %v2068 = vld [vmem:[%s609] sm:$0xf]
    %v2069 = vld [vmem:[%s6] sm:$0xff]
    %v2070 = vld [vmem:[%s6 + $0x8] sm:$0xff]
    %v2071 = vld [vmem:[%s6 + $0x10] sm:$0xff]
    %v2072 = vld [vmem:[%s6 + $0x18] sm:$0xff]
    %v2074 = vsel %vm360, %v1936, 0
    %2076 = vmatprep.subr.mxu0 0.0
    %2077 = vmatpush1.msra.mxu0 %v2069
    %2078 = vmatprep.subr.mxu0 0.0
    %2079 = vmatpush1.msra.mxu0 %v2070
    %2080 = vmatprep.subr.mxu0 0.0
    %2081 = vmatpush1.msra.mxu0 %v2071
    %2082 = vmatprep.subr.mxu0 0.0
    %2083 = vmatpush1.msra.mxu0 %v2072
    %2084 = vmatprep.subr.mxu0 0.0
    %2085 = vmatpush1.msra.mxu0 0.0
    %2086 = vmatprep.subr.mxu0 0.0
    %2087 = vmatpush1.msra.mxu0 0.0
    %2088 = vmatprep.subr.mxu0 0.0
    %2089 = vmatpush1.msra.mxu0 0.0
    %2090 = vmatprep.subr.mxu0 0.0
    %2091 = vmatpush1.msra.mxu0 0.0
    %2092 = vmatprep.subr.mxu0 0.0
    %2093 = vmatpush1.msra.mxu0 0.0
    %2094 = vmatprep.subr.mxu0 0.0
    %2095 = vmatpush1.msra.mxu0 0.0
    %2096 = vmatprep.subr.mxu0 0.0
    %2097 = vmatpush1.msra.mxu0 0.0
    %2098 = vmatprep.subr.mxu0 0.0
    %2099 = vmatpush1.msra.mxu0 0.0
    %2100 = vmatprep.subr.mxu0 0.0
    %2101 = vmatpush1.msra.mxu0 0.0
    %2102 = vmatprep.subr.mxu0 0.0
    %2103 = vmatpush1.msra.mxu0 0.0
    %2104 = vmatprep.subr.mxu0 0.0
    %2105 = vmatpush1.msra.mxu0 0.0
    %2106 = vmatprep.subr.mxu0 0.0
    %2107 = vmatpush1.msra.mxu0 0.0
    %2108 = vmatprep.subr.mxu0 0.0
    %2109 = vmatpush1.msra.mxu0 0.0
    %2110 = vmatprep.subr.mxu0 0.0
    %2111 = vmatpush1.msra.mxu0 0.0
    %2112 = vmatprep.subr.mxu0 0.0
    %2113 = vmatpush1.msra.mxu0 0.0
    %2114 = vmatprep.subr.mxu0 0.0
    %2115 = vmatpush1.msra.mxu0 0.0
    %2116 = vmatprep.subr.mxu0 0.0
    %2117 = vmatpush1.msra.mxu0 0.0
    %2118 = vmatprep.subr.mxu0 0.0
    %2119 = vmatpush1.msra.mxu0 0.0
    %2120 = vmatprep.subr.mxu0 0.0
    %2121 = vmatpush1.msra.mxu0 0.0
    %2122 = vmatprep.subr.mxu0 0.0
    %2123 = vmatpush1.msra.mxu0 0.0
    %2124 = vmatprep.subr.mxu0 0.0
    %2125 = vmatpush1.msra.mxu0 0.0
    %2126 = vmatprep.subr.mxu0 0.0
    %2127 = vmatpush1.msra.mxu0 0.0
    %2128 = vmatprep.subr.mxu0 0.0
    %2129 = vmatpush1.msra.mxu0 0.0
    %2130 = vmatprep.subr.mxu0 0.0
    %2131 = vmatpush1.msra.mxu0 0.0
    %2132 = vmatprep.subr.mxu0 0.0
    %2133 = vmatpush1.msra.mxu0 0.0
    %2134 = vmatprep.subr.mxu0 0.0
    %2135 = vmatpush1.msra.mxu0 0.0
    %2136 = vmatprep.subr.mxu0 0.0
    %2137 = vmatpush1.msra.mxu0 0.0
    %2138 = vmatprep.subr.mxu0 0.0
    %2139 = vmatpush1.msra.mxu0 0.0
    %2140 = vmatprep.mubr.f32.mxu0 0.0
    %2141 = vmatmul.mubr.f32.gmra.mrb[0].mxu0 %v2074
    %v2142 = vpop.f32.mrb[0].mxu0
    %v2143 = vadd.f32 0.0, %v2142
    %v2144 = vpop.f32.mrb[0].mxu0
    %2145 = vdwg.mxu0
    %v2147 = vrot.slane %v2068, 2
    %v2149 = vadd.f32 %v2147, %v2143
    %v2150 = vxor.u32 %v2149, 2147483648
    %v2151 = vmul.f32 %v2150, 1.442695
    %v2152 = vpow.pop %v2151
    %v2153 = vadd.f32 %v2152, 1.0
    %v2154 = vrcp.pop %v2153
    %v2155 = vmul.f32 1.0, %v2154
    %v2156 = vtanh.pop %v2149
    %v2159 = vunpack.c.l.s4 1983009808
    %v2160 = vunpack.c.0.s8 %v2159
    %v2161 = vlaneseq
    %v2162 = vshrl.u32 %v2161, 7
    %v2163 = vsub.s32 %v2160, %v2162
    %v2164 = vrot.slane %v1950, %v2163
    %2165 = vrot.lane.b32.xlu0 %v2164, 32
    %v2166 = vpop.permute.xlu0 %2165
    %v2168 = vmul.f32 %v2155, %v2166
    %2170 = vrot.lane.b32.xlu0 %v2156, 64
    %v2171 = vpop.permute.xlu0 %2170
    %v2173 = vmul.f32 %v2155, %v2171
    %2175 = vrot.lane.b32.xlu0 %v2173, 32
    %v2176 = vpop.permute.xlu0 %2175
    %v2178 = vadd.f32 %v2168, %v2176
    %v2179 = vtanh.pop %v2178
    %2181 = vrot.lane.b32.xlu0 %v2179, 64
    %v2182 = vpop.permute.xlu0 %2181
    %v2184 = vmul.f32 %v2155, %v2182
    %v2185 = vld [vmem:[%s712] sm:$0x3]
    %v2188 = vunpack.c.l.s4 1983009808
    %v2189 = vunpack.c.0.s8 %v2188
    %v2190 = vlaneseq
    %v2191 = vshrl.u32 %v2190, 7
    %v2192 = vsub.s32 %v2189, %v2191
    %v2193 = vrot.slane %v2184, %v2192
    %2194 = vrot.lane.b32.xlu0 %v2193, 32
    %v2195 = vpop.permute.xlu0 %2194
    %v2197 = vmul.f32 %v2185, %v2195
    %s2198 = scalar_lea.vmem [#allocation4], 2
    %2199 = vst.msk [vmem:[%s2198] sm:$0x3] %vm67, %v2197
    %v2200 = vsub.f32 1.0, %v2185
    %v2201 = vmul.f32 %v2200, %v1936
    %v2202 = vadd.f32 %v2197, %v2201
    %v2205 = vunpack.c.l.s4 1983009808
    %v2206 = vunpack.c.0.s8 %v2205
    %v2207 = vlaneseq
    %v2208 = vshrl.u32 %v2207, 7
    %v2209 = vsub.s32 %v2206, %v2208
    %v2210 = vrot.slane %v2178, %v2209
    %2211 = vrot.lane.b32.xlu0 %v2210, 96
    %v2212 = vpop.permute.xlu0 %2211
    %v2214 = vmul.f32 %v2185, %v2212
    %v2215 = vmul.f32 %v2200, %v1950
    %v2216 = vadd.f32 %v2214, %v2215
    %v2217 = vld [vmem:[%s473] sm:$0xf]
    %v2218 = vld [vmem:[%s5] sm:$0xff]
    %v2219 = vld [vmem:[%s5 + $0x8] sm:$0xff]
    %v2220 = vld [vmem:[%s5 + $0x10] sm:$0xff]
    %v2221 = vld [vmem:[%s5 + $0x18] sm:$0xff]
    %v2222 = vsel %vm360, %v2063, 0
    %2224 = vmatprep.subr.mxu0 0.0
    %2225 = vmatpush1.msra.mxu0 %v2218
    %2226 = vmatprep.subr.mxu0 0.0
    %2227 = vmatpush1.msra.mxu0 %v2219
    %2228 = vmatprep.subr.mxu0 0.0
    %2229 = vmatpush1.msra.mxu0 %v2220
    %2230 = vmatprep.subr.mxu0 0.0
    %2231 = vmatpush1.msra.mxu0 %v2221
    %2232 = vmatprep.subr.mxu0 0.0
    %2233 = vmatpush1.msra.mxu0 0.0
    %2234 = vmatprep.subr.mxu0 0.0
    %2235 = vmatpush1.msra.mxu0 0.0
    %2236 = vmatprep.subr.mxu0 0.0
    %2237 = vmatpush1.msra.mxu0 0.0
    %2238 = vmatprep.subr.mxu0 0.0
    %2239 = vmatpush1.msra.mxu0 0.0
    %2240 = vmatprep.subr.mxu0 0.0
    %2241 = vmatpush1.msra.mxu0 0.0
    %2242 = vmatprep.subr.mxu0 0.0
    %2243 = vmatpush1.msra.mxu0 0.0
    %2244 = vmatprep.subr.mxu0 0.0
    %2245 = vmatpush1.msra.mxu0 0.0
    %2246 = vmatprep.subr.mxu0 0.0
    %2247 = vmatpush1.msra.mxu0 0.0
    %2248 = vmatprep.subr.mxu0 0.0
    %2249 = vmatpush1.msra.mxu0 0.0
    %2250 = vmatprep.subr.mxu0 0.0
    %2251 = vmatpush1.msra.mxu0 0.0
    %2252 = vmatprep.subr.mxu0 0.0
    %2253 = vmatpush1.msra.mxu0 0.0
    %2254 = vmatprep.subr.mxu0 0.0
    %2255 = vmatpush1.msra.mxu0 0.0
    %2256 = vmatprep.subr.mxu0 0.0
    %2257 = vmatpush1.msra.mxu0 0.0
    %2258 = vmatprep.subr.mxu0 0.0
    %2259 = vmatpush1.msra.mxu0 0.0
    %2260 = vmatprep.subr.mxu0 0.0
    %2261 = vmatpush1.msra.mxu0 0.0
    %2262 = vmatprep.subr.mxu0 0.0
    %2263 = vmatpush1.msra.mxu0 0.0
    %2264 = vmatprep.subr.mxu0 0.0
    %2265 = vmatpush1.msra.mxu0 0.0
    %2266 = vmatprep.subr.mxu0 0.0
    %2267 = vmatpush1.msra.mxu0 0.0
    %2268 = vmatprep.subr.mxu0 0.0
    %2269 = vmatpush1.msra.mxu0 0.0
    %2270 = vmatprep.subr.mxu0 0.0
    %2271 = vmatpush1.msra.mxu0 0.0
    %2272 = vmatprep.subr.mxu0 0.0
    %2273 = vmatpush1.msra.mxu0 0.0
    %2274 = vmatprep.subr.mxu0 0.0
    %2275 = vmatpush1.msra.mxu0 0.0
    %2276 = vmatprep.subr.mxu0 0.0
    %2277 = vmatpush1.msra.mxu0 0.0
    %2278 = vmatprep.subr.mxu0 0.0
    %2279 = vmatpush1.msra.mxu0 0.0
    %2280 = vmatprep.subr.mxu0 0.0
    %2281 = vmatpush1.msra.mxu0 0.0
    %2282 = vmatprep.subr.mxu0 0.0
    %2283 = vmatpush1.msra.mxu0 0.0
    %2284 = vmatprep.subr.mxu0 0.0
    %2285 = vmatpush1.msra.mxu0 0.0
    %2286 = vmatprep.subr.mxu0 0.0
    %2287 = vmatpush1.msra.mxu0 0.0
    %2288 = vmatprep.mubr.f32.mxu0 0.0
    %2289 = vmatmul.mubr.f32.gmra.mrb[0].mxu0 %v2222
    %v2290 = vpop.f32.mrb[0].mxu0
    %v2291 = vadd.f32 0.0, %v2290
    %v2292 = vpop.f32.mrb[0].mxu0
    %2293 = vdwg.mxu0
    %v2294 = vadd.f32 %v2217, %v2291
    %v2295 = vxor.u32 %v2294, 2147483648
    %v2296 = vmul.f32 %v2295, 1.442695
    %v2297 = vpow.pop %v2296
    %v2298 = vadd.f32 %v2297, 1.0
    %v2299 = vrcp.pop %v2298
    %v2300 = vmul.f32 1.0, %v2299
    %v2301 = vtanh.pop %v2294
    %v2302 = vmul.f32 %v2300, %v2046
    %2304 = vrot.lane.b32.xlu0 %v2301, 64
    %v2305 = vpop.permute.xlu0 %2304
    %v2307 = vmul.f32 %v2300, %v2305
    %2309 = vrot.lane.b32.xlu0 %v2307, 32
    %v2310 = vpop.permute.xlu0 %2309
    %v2312 = vadd.f32 %v2302, %v2310
    %v2313 = vtanh.pop %v2312
    %2315 = vrot.lane.b32.xlu0 %v2313, 64
    %v2316 = vpop.permute.xlu0 %2315
    %v2318 = vmul.f32 %v2300, %v2316
    %v2319 = vld [vmem:[%s577] sm:$0x3]
    %v2322 = vunpack.c.l.s4 1983009808
    %v2323 = vunpack.c.0.s8 %v2322
    %v2324 = vlaneseq
    %v2325 = vshrl.u32 %v2324, 7
    %v2326 = vsub.s32 %v2323, %v2325
    %v2327 = vrot.slane %v2318, %v2326
    %2328 = vrot.lane.b32.xlu0 %v2327, 32
    %v2329 = vpop.permute.xlu0 %2328
    %v2331 = vmul.f32 %v2319, %v2329
    %s2332 = scalar_lea.vmem [#allocation3], 14
    %2333 = vst.msk [vmem:[%s2332] sm:$0x3] %vm67, %v2331
    %v2334 = vld [vmem:[#allocation2] sm:$0xf]
    %v2335 = vld [vmem:[%s6] sm:$0xff]
    %v2336 = vld [vmem:[%s6 + $0x8] sm:$0xff]
    %v2337 = vld [vmem:[%s6 + $0x10] sm:$0xff]
    %v2338 = vld [vmem:[%s6 + $0x18] sm:$0xff]
    %v2340 = vsel %vm360, %v2202, 0
    %2342 = vmatprep.subr.mxu0 0.0
    %2343 = vmatpush1.msra.mxu0 %v2335
    %2344 = vmatprep.subr.mxu0 0.0
    %2345 = vmatpush1.msra.mxu0 %v2336
    %2346 = vmatprep.subr.mxu0 0.0
    %2347 = vmatpush1.msra.mxu0 %v2337
    %2348 = vmatprep.subr.mxu0 0.0
    %2349 = vmatpush1.msra.mxu0 %v2338
    %2350 = vmatprep.subr.mxu0 0.0
    %2351 = vmatpush1.msra.mxu0 0.0
    %2352 = vmatprep.subr.mxu0 0.0
    %2353 = vmatpush1.msra.mxu0 0.0
    %2354 = vmatprep.subr.mxu0 0.0
    %2355 = vmatpush1.msra.mxu0 0.0
    %2356 = vmatprep.subr.mxu0 0.0
    %2357 = vmatpush1.msra.mxu0 0.0
    %2358 = vmatprep.subr.mxu0 0.0
    %2359 = vmatpush1.msra.mxu0 0.0
    %2360 = vmatprep.subr.mxu0 0.0
    %2361 = vmatpush1.msra.mxu0 0.0
    %2362 = vmatprep.subr.mxu0 0.0
    %2363 = vmatpush1.msra.mxu0 0.0
    %2364 = vmatprep.subr.mxu0 0.0
    %2365 = vmatpush1.msra.mxu0 0.0
    %2366 = vmatprep.subr.mxu0 0.0
    %2367 = vmatpush1.msra.mxu0 0.0
    %2368 = vmatprep.subr.mxu0 0.0
    %2369 = vmatpush1.msra.mxu0 0.0
    %2370 = vmatprep.subr.mxu0 0.0
    %2371 = vmatpush1.msra.mxu0 0.0
    %2372 = vmatprep.subr.mxu0 0.0
    %2373 = vmatpush1.msra.mxu0 0.0
    %2374 = vmatprep.subr.mxu0 0.0
    %2375 = vmatpush1.msra.mxu0 0.0
    %2376 = vmatprep.subr.mxu0 0.0
    %2377 = vmatpush1.msra.mxu0 0.0
    %2378 = vmatprep.subr.mxu0 0.0
    %2379 = vmatpush1.msra.mxu0 0.0
    %2380 = vmatprep.subr.mxu0 0.0
    %2381 = vmatpush1.msra.mxu0 0.0
    %2382 = vmatprep.subr.mxu0 0.0
    %2383 = vmatpush1.msra.mxu0 0.0
    %2384 = vmatprep.subr.mxu0 0.0
    %2385 = vmatpush1.msra.mxu0 0.0
    %2386 = vmatprep.subr.mxu0 0.0
    %2387 = vmatpush1.msra.mxu0 0.0
    %2388 = vmatprep.subr.mxu0 0.0
    %2389 = vmatpush1.msra.mxu0 0.0
    %2390 = vmatprep.subr.mxu0 0.0
    %2391 = vmatpush1.msra.mxu0 0.0
    %2392 = vmatprep.subr.mxu0 0.0
    %2393 = vmatpush1.msra.mxu0 0.0
    %2394 = vmatprep.subr.mxu0 0.0
    %2395 = vmatpush1.msra.mxu0 0.0
    %2396 = vmatprep.subr.mxu0 0.0
    %2397 = vmatpush1.msra.mxu0 0.0
    %2398 = vmatprep.subr.mxu0 0.0
    %2399 = vmatpush1.msra.mxu0 0.0
    %2400 = vmatprep.subr.mxu0 0.0
    %2401 = vmatpush1.msra.mxu0 0.0
    %2402 = vmatprep.subr.mxu0 0.0
    %2403 = vmatpush1.msra.mxu0 0.0
    %2404 = vmatprep.subr.mxu0 0.0
    %2405 = vmatpush1.msra.mxu0 0.0
    %2406 = vmatprep.mubr.f32.mxu0 0.0
    %2407 = vmatmul.mubr.f32.gmra.mrb[0].mxu0 %v2340
    %v2408 = vpop.f32.mrb[0].mxu0
    %v2409 = vadd.f32 0.0, %v2408
    %v2410 = vpop.f32.mrb[0].mxu0
    %2411 = vdwg.mxu0
    %v2413 = vrot.slane %v2334, 2
    %v2415 = vadd.f32 %v2413, %v2409
    %v2416 = vxor.u32 %v2415, 2147483648
    %v2417 = vmul.f32 %v2416, 1.442695
    %v2418 = vpow.pop %v2417
    %v2419 = vadd.f32 %v2418, 1.0
    %v2420 = vrcp.pop %v2419
    %v2421 = vmul.f32 1.0, %v2420
    %v2422 = vtanh.pop %v2415
    %v2425 = vunpack.c.l.s4 1983009808
    %v2426 = vunpack.c.0.s8 %v2425
    %v2427 = vlaneseq
    %v2428 = vshrl.u32 %v2427, 7
    %v2429 = vsub.s32 %v2426, %v2428
    %v2430 = vrot.slane %v2216, %v2429
    %2431 = vrot.lane.b32.xlu0 %v2430, 32
    %v2432 = vpop.permute.xlu0 %2431
    %v2434 = vmul.f32 %v2421, %v2432
    %2436 = vrot.lane.b32.xlu0 %v2422, 64
    %v2437 = vpop.permute.xlu0 %2436
    %v2439 = vmul.f32 %v2421, %v2437
    %2441 = vrot.lane.b32.xlu0 %v2439, 32
    %v2442 = vpop.permute.xlu0 %2441
    %v2444 = vadd.f32 %v2434, %v2442
    %v2445 = vtanh.pop %v2444
    %2447 = vrot.lane.b32.xlu0 %v2445, 64
    %v2448 = vpop.permute.xlu0 %2447
    %v2450 = vmul.f32 %v2421, %v2448
    %v2451 = vld [vmem:[#allocation5] sm:$0x3]
    %v2454 = vunpack.c.l.s4 1983009808
    %v2455 = vunpack.c.0.s8 %v2454
    %v2456 = vlaneseq
    %v2457 = vshrl.u32 %v2456, 7
    %v2458 = vsub.s32 %v2455, %v2457
    %v2459 = vrot.slane %v2450, %v2458
    %2460 = vrot.lane.b32.xlu0 %v2459, 32
    %v2461 = vpop.permute.xlu0 %2460
    %v2463 = vmul.f32 %v2451, %v2461
    %2464 = vst.msk [vmem:[#allocation4] sm:$0x3] %vm67, %v2463
    %v2465 = vld [vmem:[#allocation3] sm:$0x3]
    %v2466 = vld [vmem:[#allocation3 + $0x2] sm:$0x3]
    %v2467 = vld [vmem:[#allocation3 + $0x4] sm:$0x3]
    %v2468 = vld [vmem:[#allocation3 + $0x6] sm:$0x3]
    %v2469 = vld [vmem:[#allocation3 + $0x8] sm:$0x3]
    %v2470 = vld [vmem:[#allocation3 + $0xa] sm:$0x3]
    %v2471 = vld [vmem:[#allocation3 + $0xc] sm:$0x3]
    %v2472 = vld [vmem:[#allocation3 + $0xe] sm:$0x3]
    %v2473 = vld [vmem:[#allocation4] sm:$0x3]
    %v2474 = vld [vmem:[#allocation4 + $0x2] sm:$0x3]
    %v2475 = vld [vmem:[#allocation4 + $0x4] sm:$0x3]
    %v2476 = vld [vmem:[#allocation4 + $0x6] sm:$0x3]
    %v2477 = vld [vmem:[#allocation4 + $0x8] sm:$0x3]
    %v2478 = vld [vmem:[#allocation4 + $0xa] sm:$0x3]
    %v2479 = vld [vmem:[#allocation4 + $0xc] sm:$0x3]
    %v2480 = vld [vmem:[#allocation4 + $0xe] sm:$0x3]
    %2489 = vrot.lane.b32.xlu0 %v2473, 32
    %v2490 = vpop.permute.xlu0 %2489
    %2491 = vrot.lane.b32.xlu0 %v2474, 32
    %v2492 = vpop.permute.xlu0 %2491
    %2493 = vrot.lane.b32.xlu0 %v2475, 32
    %v2494 = vpop.permute.xlu0 %2493
    %2495 = vrot.lane.b32.xlu0 %v2476, 32
    %v2496 = vpop.permute.xlu0 %2495
    %2497 = vrot.lane.b32.xlu0 %v2477, 32
    %v2498 = vpop.permute.xlu0 %2497
    %2499 = vrot.lane.b32.xlu0 %v2478, 32
    %v2500 = vpop.permute.xlu0 %2499
    %2501 = vrot.lane.b32.xlu0 %v2479, 32
    %v2502 = vpop.permute.xlu0 %2501
    %2503 = vrot.lane.b32.xlu0 %v2480, 32
    %v2504 = vpop.permute.xlu0 %2503
    %v2513 = vsel %vm360, %v2465, %v2490
    %v2514 = vsel %vm360, %v2466, %v2492
    %v2515 = vsel %vm360, %v2467, %v2494
    %v2516 = vsel %vm360, %v2468, %v2496
    %v2517 = vsel %vm360, %v2469, %v2498
    %v2518 = vsel %vm360, %v2470, %v2500
    %v2519 = vsel %vm360, %v2471, %v2502
    %v2520 = vsel %vm360, %v2472, %v2504
    %v2521 = vld [vmem:[%s7] sm:$0xff]
    %v2522 = vld [vmem:[%s7 + $0x8] sm:$0xff]
    %v2523 = vld [vmem:[%s7 + $0x10] sm:$0xff]
    %v2524 = vld [vmem:[%s7 + $0x18] sm:$0xff]
    %v2525 = vld [vmem:[%s7 + $0x20] sm:$0xff]
    %v2526 = vld [vmem:[%s7 + $0x28] sm:$0xff]
    %v2527 = vld [vmem:[%s7 + $0x30] sm:$0xff]
    %v2528 = vld [vmem:[%s7 + $0x38] sm:$0xff]
    %v2529 = vld [vmem:[%s8] sm:$0x1]
    %v2531 = vlaneseq
    %v2532 = vshrl.u32 %v2531, 7
    %v2533 = vsub.s32 0, %v2532
    %v2534 = vrot.slane %v2529, %v2533
    %v2544 = vcombine.low %v2513, %v2514
    %v2545 = vcombine.low %v2515, %v2516
    %v2547 = vunpack.c.l.s4 1983009808
    %v2548 = vunpack.c.0.s8 %v2547
    %v2549 = vlaneseq
    %v2550 = vshrl.u32 %v2549, 7
    %v2551 = vsub.s32 %v2548, %v2550
    %v2552 = vrot.slane %v2544, %v2551
    %v2554 = vunpack.c.l.s4 1983009808
    %v2555 = vunpack.c.0.s8 %v2554
    %v2556 = vlaneseq
    %v2557 = vshrl.u32 %v2556, 7
    %v2558 = vsub.s32 %v2555, %v2557
    %v2559 = vrot.slane %v2545, %v2558
    %v2560 = vcombine.low %v2552, %v2559
    %v2561 = vcombine.low %v2517, %v2518
    %v2562 = vcombine.low %v2519, %v2520
    %v2564 = vunpack.c.l.s4 1983009808
    %v2565 = vunpack.c.0.s8 %v2564
    %v2566 = vlaneseq
    %v2567 = vshrl.u32 %v2566, 7
    %v2568 = vsub.s32 %v2565, %v2567
    %v2569 = vrot.slane %v2561, %v2568
    %v2571 = vunpack.c.l.s4 1983009808
    %v2572 = vunpack.c.0.s8 %v2571
    %v2573 = vlaneseq
    %v2574 = vshrl.u32 %v2573, 7
    %v2575 = vsub.s32 %v2572, %v2574
    %v2576 = vrot.slane %v2562, %v2575
    %v2577 = vcombine.low %v2569, %v2576
    %vm2578 = vcmask 523264
    %v2579 = vsel %vm2578, %v2560, 0
    %v2581 = vsel %vm2578, %v2577, 0
    %2583 = vmatprep.subr.mxu0 0.0
    %2584 = vmatpush1.msra.mxu0 %v2521
    %2585 = vmatprep.subr.mxu0 0.0
    %2586 = vmatpush1.msra.mxu0 %v2522
    %2587 = vmatprep.subr.mxu0 0.0
    %2588 = vmatpush1.msra.mxu0 %v2523
    %2589 = vmatprep.subr.mxu0 0.0
    %2590 = vmatpush1.msra.mxu0 %v2524
    %2591 = vmatprep.subr.mxu0 0.0
    %2592 = vmatpush1.msra.mxu0 %v2525
    %2593 = vmatprep.subr.mxu0 0.0
    %2594 = vmatpush1.msra.mxu0 %v2526
    %2595 = vmatprep.subr.mxu0 0.0
    %2596 = vmatpush1.msra.mxu0 %v2527
    %2597 = vmatprep.subr.mxu0 0.0
    %2598 = vmatpush1.msra.mxu0 %v2528
    %2599 = vmatprep.subr.mxu0 0.0
    %2600 = vmatpush1.msra.mxu0 0.0
    %2601 = vmatprep.subr.mxu0 0.0
    %2602 = vmatpush1.msra.mxu0 0.0
    %2603 = vmatprep.subr.mxu0 0.0
    %2604 = vmatpush1.msra.mxu0 0.0
    %2605 = vmatprep.subr.mxu0 0.0
    %2606 = vmatpush1.msra.mxu0 0.0
    %2607 = vmatprep.subr.mxu0 0.0
    %2608 = vmatpush1.msra.mxu0 0.0
    %2609 = vmatprep.subr.mxu0 0.0
    %2610 = vmatpush1.msra.mxu0 0.0
    %2611 = vmatprep.subr.mxu0 0.0
    %2612 = vmatpush1.msra.mxu0 0.0
    %2613 = vmatprep.subr.mxu0 0.0
    %2614 = vmatpush1.msra.mxu0 0.0
    %2615 = vmatprep.subr.mxu0 0.0
    %2616 = vmatpush1.msra.mxu0 0.0
    %2617 = vmatprep.subr.mxu0 0.0
    %2618 = vmatpush1.msra.mxu0 0.0
    %2619 = vmatprep.subr.mxu0 0.0
    %2620 = vmatpush1.msra.mxu0 0.0
    %2621 = vmatprep.subr.mxu0 0.0
    %2622 = vmatpush1.msra.mxu0 0.0
    %2623 = vmatprep.subr.mxu0 0.0
    %2624 = vmatpush1.msra.mxu0 0.0
    %2625 = vmatprep.subr.mxu0 0.0
    %2626 = vmatpush1.msra.mxu0 0.0
    %2627 = vmatprep.subr.mxu0 0.0
    %2628 = vmatpush1.msra.mxu0 0.0
    %2629 = vmatprep.subr.mxu0 0.0
    %2630 = vmatpush1.msra.mxu0 0.0
    %2631 = vmatprep.subr.mxu0 0.0
    %2632 = vmatpush1.msra.mxu0 0.0
    %2633 = vmatprep.subr.mxu0 0.0
    %2634 = vmatpush1.msra.mxu0 0.0
    %2635 = vmatprep.subr.mxu0 0.0
    %2636 = vmatpush1.msra.mxu0 0.0
    %2637 = vmatprep.subr.mxu0 0.0
    %2638 = vmatpush1.msra.mxu0 0.0
    %2639 = vmatprep.subr.mxu0 0.0
    %2640 = vmatpush1.msra.mxu0 0.0
    %2641 = vmatprep.subr.mxu0 0.0
    %2642 = vmatpush1.msra.mxu0 0.0
    %2643 = vmatprep.subr.mxu0 0.0
    %2644 = vmatpush1.msra.mxu0 0.0
    %2645 = vmatprep.subr.mxu0 0.0
    %2646 = vmatpush1.msra.mxu0 0.0
    %2647 = vmatprep.mubr.f32.mxu0 0.0
    %2648 = vmatmul.mubr.f32.gmra.mrb[0].mxu0 %v2579
    %v2649 = vpop.f32.mrb[0].mxu0
    %v2650 = vadd.f32 %v2534, %v2649
    %v2651 = vpop.f32.mrb[0].mxu0
    %2652 = vmatprep.mubr.f32.mxu0 0.0
    %2653 = vmatmul.mubr.f32.gmra.mrb[0].mxu0 %v2581
    %v2654 = vpop.f32.mrb[0].mxu0
    %v2655 = vadd.f32 %v2534, %v2654
    %v2656 = vpop.f32.mrb[0].mxu0
    %2657 = vdwg.mxu0
    %v2658 = vtanh.pop %v2650
    %v2659 = vtanh.pop %v2655
    %v2660 = vld [vmem:[%s9] sm:$0xff]
    %v2661 = vld [vmem:[%s9 + $0x8] sm:$0xff]
    %v2662 = vld [vmem:[%s9 + $0x10] sm:$0xff]
    %v2663 = vld [vmem:[%s9 + $0x18] sm:$0xff]
    %v2664 = vld [vmem:[%s10] sm:$0x1]
    %v2666 = vlaneseq
    %v2667 = vshrl.u32 %v2666, 7
    %v2668 = vsub.s32 0, %v2667
    %v2669 = vrot.slane %v2664, %v2668
    %v2672 = vsel %vm360, %v2658, 0
    %v2675 = vsel %vm360, %v2659, 0
    %2677 = vmatprep.subr.mxu0 0.0
    %2678 = vmatpush1.msra.mxu0 %v2660
    %2679 = vmatprep.subr.mxu0 0.0
    %2680 = vmatpush1.msra.mxu0 %v2661
    %2681 = vmatprep.subr.mxu0 0.0
    %2682 = vmatpush1.msra.mxu0 %v2662
    %2683 = vmatprep.subr.mxu0 0.0
    %2684 = vmatpush1.msra.mxu0 %v2663
    %2685 = vmatprep.subr.mxu0 0.0
    %2686 = vmatpush1.msra.mxu0 0.0
    %2687 = vmatprep.subr.mxu0 0.0
    %2688 = vmatpush1.msra.mxu0 0.0
    %2689 = vmatprep.subr.mxu0 0.0
    %2690 = vmatpush1.msra.mxu0 0.0
    %2691 = vmatprep.subr.mxu0 0.0
    %2692 = vmatpush1.msra.mxu0 0.0
    %2693 = vmatprep.subr.mxu0 0.0
    %2694 = vmatpush1.msra.mxu0 0.0
    %2695 = vmatprep.subr.mxu0 0.0
    %2696 = vmatpush1.msra.mxu0 0.0
    %2697 = vmatprep.subr.mxu0 0.0
    %2698 = vmatpush1.msra.mxu0 0.0
    %2699 = vmatprep.subr.mxu0 0.0
    %2700 = vmatpush1.msra.mxu0 0.0
    %2701 = vmatprep.subr.mxu0 0.0
    %2702 = vmatpush1.msra.mxu0 0.0
    %2703 = vmatprep.subr.mxu0 0.0
    %2704 = vmatpush1.msra.mxu0 0.0
    %2705 = vmatprep.subr.mxu0 0.0
    %2706 = vmatpush1.msra.mxu0 0.0
    %2707 = vmatprep.subr.mxu0 0.0
    %2708 = vmatpush1.msra.mxu0 0.0
    %2709 = vmatprep.subr.mxu0 0.0
    %2710 = vmatpush1.msra.mxu0 0.0
    %2711 = vmatprep.subr.mxu0 0.0
    %2712 = vmatpush1.msra.mxu0 0.0
    %2713 = vmatprep.subr.mxu0 0.0
    %2714 = vmatpush1.msra.mxu0 0.0
    %2715 = vmatprep.subr.mxu0 0.0
    %2716 = vmatpush1.msra.mxu0 0.0
    %2717 = vmatprep.subr.mxu0 0.0
    %2718 = vmatpush1.msra.mxu0 0.0
    %2719 = vmatprep.subr.mxu0 0.0
    %2720 = vmatpush1.msra.mxu0 0.0
    %2721 = vmatprep.subr.mxu0 0.0
    %2722 = vmatpush1.msra.mxu0 0.0
    %2723 = vmatprep.subr.mxu0 0.0
    %2724 = vmatpush1.msra.mxu0 0.0
    %2725 = vmatprep.subr.mxu0 0.0
    %2726 = vmatpush1.msra.mxu0 0.0
    %2727 = vmatprep.subr.mxu0 0.0
    %2728 = vmatpush1.msra.mxu0 0.0
    %2729 = vmatprep.subr.mxu0 0.0
    %2730 = vmatpush1.msra.mxu0 0.0
    %2731 = vmatprep.subr.mxu0 0.0
    %2732 = vmatpush1.msra.mxu0 0.0
    %2733 = vmatprep.subr.mxu0 0.0
    %2734 = vmatpush1.msra.mxu0 0.0
    %2735 = vmatprep.subr.mxu0 0.0
    %2736 = vmatpush1.msra.mxu0 0.0
    %2737 = vmatprep.subr.mxu0 0.0
    %2738 = vmatpush1.msra.mxu0 0.0
    %2739 = vmatprep.subr.mxu0 0.0
    %2740 = vmatpush1.msra.mxu0 0.0
    %2741 = vmatprep.mubr.f32.mxu0 0.0
    %2742 = vmatmul.mubr.f32.gmra.mrb[0].mxu0 %v2672
    %v2743 = vpop.f32.mrb[0].mxu0
    %v2744 = vadd.f32 %v2669, %v2743
    %v2745 = vpop.f32.mrb[0].mxu0
    %2746 = vmatprep.mubr.f32.mxu0 0.0
    %2747 = vmatmul.mubr.f32.gmra.mrb[0].mxu0 %v2675
    %v2748 = vpop.f32.mrb[0].mxu0
    %v2749 = vadd.f32 %v2669, %v2748
    %v2750 = vpop.f32.mrb[0].mxu0
    %2751 = vdwg.mxu0
    %v2754 = vcombine.high %v2744, %v2744
    %v2756 = vunpack.c.l.s4 1983009808
    %v2757 = vunpack.c.0.s8 %v2756
    %v2758 = vlaneseq
    %v2759 = vshrl.u32 %v2758, 7
    %v2760 = vsub.s32 %v2757, %v2759
    %v2761 = vrot.slane %v2744, %v2760
    %v2763 = vunpack.c.l.s4 1983009808
    %v2764 = vunpack.c.0.s8 %v2763
    %v2765 = vlaneseq
    %v2766 = vshrl.u32 %v2765, 7
    %v2767 = vsub.s32 %v2764, %v2766
    %v2768 = vrot.slane %v2754, %v2767
    %v2769 = vcombine.high %v2761, %v2761
    %v2770 = vcombine.high %v2768, %v2768
    %v2771 = vcombine.high %v2749, %v2749
    %v2773 = vunpack.c.l.s4 1983009808
    %v2774 = vunpack.c.0.s8 %v2773
    %v2775 = vlaneseq
    %v2776 = vshrl.u32 %v2775, 7
    %v2777 = vsub.s32 %v2774, %v2776
    %v2778 = vrot.slane %v2749, %v2777
    %v2780 = vunpack.c.l.s4 1983009808
    %v2781 = vunpack.c.0.s8 %v2780
    %v2782 = vlaneseq
    %v2783 = vshrl.u32 %v2782, 7
    %v2784 = vsub.s32 %v2781, %v2783
    %v2785 = vrot.slane %v2771, %v2784
    %v2786 = vcombine.high %v2778, %v2778
    %v2787 = vcombine.high %v2785, %v2785
    %vm2796 = vcmask 1041408
    %v2797 = vsel %vm2796, %v2761, -inf
    %v2798 = vsel %vm2796, %v2769, -inf
    %v2799 = vsel %vm2796, %v2768, -inf
    %v2800 = vsel %vm2796, %v2770, -inf
    %v2801 = vsel %vm2796, %v2778, -inf
    %v2802 = vmax.f32 %v2797, %v2801
    %v2803 = vsel %vm2796, %v2786, -inf
    %v2804 = vmax.f32 %v2798, %v2803
    %v2805 = vsel %vm2796, %v2785, -inf
    %v2806 = vmax.f32 %v2799, %v2805
    %v2807 = vsel %vm2796, %v2787, -inf
    %v2808 = vmax.f32 %v2800, %v2807
    %v2809 = vmax.f32 %v2802, %v2804
    %v2810 = vmax.f32 %v2806, %v2808
    %v2811 = vmax.f32 %v2809, %v2810
    %v2812 = vsub.f32 %v2761, %v2811
    %v2813 = vsub.f32 %v2769, %v2811
    %v2814 = vsub.f32 %v2768, %v2811
    %v2815 = vsub.f32 %v2770, %v2811
    %v2816 = vsub.f32 %v2778, %v2811
    %v2817 = vsub.f32 %v2786, %v2811
    %v2818 = vsub.f32 %v2785, %v2811
    %v2819 = vsub.f32 %v2787, %v2811
    %v2820 = vmul.f32 %v2812, 1.442695
    %v2821 = vpow.pop %v2820
    %v2822 = vmul.f32 %v2813, 1.442695
    %v2823 = vpow.pop %v2822
    %v2824 = vmul.f32 %v2814, 1.442695
    %v2825 = vpow.pop %v2824
    %v2826 = vmul.f32 %v2815, 1.442695
    %v2827 = vpow.pop %v2826
    %v2828 = vmul.f32 %v2816, 1.442695
    %v2829 = vpow.pop %v2828
    %v2830 = vmul.f32 %v2817, 1.442695
    %v2831 = vpow.pop %v2830
    %v2832 = vmul.f32 %v2818, 1.442695
    %v2833 = vpow.pop %v2832
    %v2834 = vmul.f32 %v2819, 1.442695
    %v2835 = vpow.pop %v2834
    %v2836 = vsel %vm2796, %v2821, 0.0
    %v2837 = vsel %vm2796, %v2823, 0.0
    %v2838 = vadd.f32 %v2836, %v2837
    %v2839 = vsel %vm2796, %v2825, 0.0
    %v2840 = vadd.f32 %v2838, %v2839
    %v2841 = vsel %vm2796, %v2827, 0.0
    %v2842 = vadd.f32 %v2840, %v2841
    %v2843 = vsel %vm2796, %v2829, 0.0
    %v2844 = vadd.f32 %v2842, %v2843
    %v2845 = vsel %vm2796, %v2831, 0.0
    %v2846 = vadd.f32 %v2844, %v2845
    %v2847 = vsel %vm2796, %v2833, 0.0
    %v2848 = vadd.f32 %v2846, %v2847
    %v2849 = vsel %vm2796, %v2835, 0.0
    %v2850 = vadd.f32 %v2848, %v2849
    %v2851 = vrcp.pop %v2850
    %v2852 = vmul.f32 %v2821, %v2851
    %v2853 = vmul.f32 %v2823, %v2851
    %v2854 = vmul.f32 %v2825, %v2851
    %v2855 = vmul.f32 %v2827, %v2851
    %v2856 = vmul.f32 %v2829, %v2851
    %v2857 = vmul.f32 %v2831, %v2851
    %v2858 = vmul.f32 %v2833, %v2851
    %v2859 = vmul.f32 %v2835, %v2851
    %2860 = vrot.lane.b32.xlu0 %v2513, 64
    %v2861 = vpop.permute.xlu0 %2860
    %2862 = vrot.lane.b32.xlu0 %v2514, 64
    %v2863 = vpop.permute.xlu0 %2862
    %2864 = vrot.lane.b32.xlu0 %v2515, 64
    %v2865 = vpop.permute.xlu0 %2864
    %2866 = vrot.lane.b32.xlu0 %v2516, 64
    %v2867 = vpop.permute.xlu0 %2866
    %2868 = vrot.lane.b32.xlu0 %v2517, 64
    %v2869 = vpop.permute.xlu0 %2868
    %2870 = vrot.lane.b32.xlu0 %v2518, 64
    %v2871 = vpop.permute.xlu0 %2870
    %2872 = vrot.lane.b32.xlu0 %v2519, 64
    %v2873 = vpop.permute.xlu0 %2872
    %2874 = vrot.lane.b32.xlu0 %v2520, 64
    %v2875 = vpop.permute.xlu0 %2874
    %v2884 = vsel %vm2578, %v2513, %v2861
    %v2885 = vsel %vm2578, %v2514, %v2863
    %v2886 = vsel %vm2578, %v2515, %v2865
    %v2887 = vsel %vm2578, %v2516, %v2867
    %v2888 = vsel %vm2578, %v2517, %v2869
    %v2889 = vsel %vm2578, %v2518, %v2871
    %v2890 = vsel %vm2578, %v2519, %v2873
    %v2891 = vsel %vm2578, %v2520, %v2875
    %v2892 = vmul.f32 %v2852, %v2884
    %v2893 = vmul.f32 %v2853, %v2885
    %v2894 = vmul.f32 %v2854, %v2886
    %v2895 = vmul.f32 %v2855, %v2887
    %v2896 = vmul.f32 %v2856, %v2888
    %v2897 = vmul.f32 %v2857, %v2889
    %v2898 = vmul.f32 %v2858, %v2890
    %v2899 = vmul.f32 %v2859, %v2891
    %v2900 = vsel %vm2796, %v2892, 0.0
    %v2901 = vsel %vm2796, %v2893, 0.0
    %v2902 = vadd.f32 %v2900, %v2901
    %v2903 = vsel %vm2796, %v2894, 0.0
    %v2904 = vadd.f32 %v2902, %v2903
    %v2905 = vsel %vm2796, %v2895, 0.0
    %v2906 = vadd.f32 %v2904, %v2905
    %v2907 = vsel %vm2796, %v2896, 0.0
    %v2908 = vadd.f32 %v2906, %v2907
    %v2909 = vsel %vm2796, %v2897, 0.0
    %v2910 = vadd.f32 %v2908, %v2909
    %v2911 = vsel %vm2796, %v2898, 0.0
    %v2912 = vadd.f32 %v2910, %v2911
    %v2913 = vsel %vm2796, %v2899, 0.0
    %v2914 = vadd.f32 %v2912, %v2913
    %v2915 = vmul.f32 %v2914, %v2914
    %v2916 = vsel %vm2796, %v2915, 0.0
    %2917 = vadd.xlane.f32.xlu0 %v2916
    %v2918 = vpop.xlane.xlu0 %2917
    %v2919 = vmax.f32 %v2918, 1e-24
    %v2920 = vrsqrt.pop %v2919
    %v2921 = vmul.f32 %v2914, %v2920
    %2922 = vst [vmem:[#allocation6] sm:$0x3] %v2921
    // Predicated region
    $region46: #{text_rnn_encoder_forward.1} parent=1 // pred_check
      _
    $region47: #{text_rnn_encoder_forward.1} parent=1 // pred_check_branch
      %2924 = sbr.rel (0) target = $region49
    $region48: #{text_rnn_encoder_forward.1} parent=1 // pred_region
      %s2926 = ssub.s32 32, 32
      %2927 = vsyncadd [#allocation7], %s2926
      %s2929 = sshll.u32 [#allocation6], 4
      %s2930 = int_to_ptr.vmem [resolvable:$true] %s2929
      %2932 = dma.vmem_to_hbm [thread:$0]  %s2930, 32, %s11, [#allocation7]
    $region49: #{text_rnn_encoder_forward.1} parent=1 // pred_fallthru
      _
    // Predicated region
    $region50: #{text_rnn_encoder_forward.1} parent=1 // pred_check
      _
    $region51: #{text_rnn_encoder_forward.1} parent=1 // pred_check_branch
      %2934 = sbr.rel (0) target = $region53
    $region52: #{text_rnn_encoder_forward.1} parent=1 // pred_region
      %2935 = dma.done [#allocation7], 32
    $region53: #{text_rnn_encoder_forward.1} parent=1 // pred_fallthru
      _
    %2936 = vsyncpa [#allocation7], 1

</llo_original>
